<compile_context>
chip_gen: v6e
topology: v6e:2x2x1
jax: 0.10.0
libtpu: 0.0.40
codegen_flags: <defaults>
</compile_context>

<pallas_src>
import jax
import jax.numpy as jnp
from jax import lax
from jax.experimental import pallas as pl
from jax.experimental.pallas import tpu as pltpu

# ----- tiny BERT config (synthetic; weights are NOT a checkpoint) -----
VOCAB = 100
VOCAB_PAD = 128                 # one-hot gather lane width (next multiple of 128)
HIDDEN = 128
N_LAYERS = 2
N_HEADS = 2
HEAD_DIM = HIDDEN // N_HEADS
INTERMEDIATE = 4 * HIDDEN
MAX_POS = 16
TYPE_VOCAB = 2
LN_EPS = 1e-12


# ---------------------------- in-kernel helpers ----------------------------

def _ln(x, g, b):
    """LayerNorm over the last axis, f32 statistics."""
    mean = jnp.mean(x, axis=-1, keepdims=True)
    c = x - mean
    var = jnp.mean(c * c, axis=-1, keepdims=True)
    return c * lax.rsqrt(var + LN_EPS) * g + b


# ---------------------------- the fused kernel ----------------------------

def _bert_kernel(onehot_ref, word_emb_ref, pos_type_ref,
                 emb_ln_g_ref, emb_ln_b_ref, mask_ref,
                 qkv_w_ref, qkv_b_ref, ao_w_ref, ao_b_ref,
                 ao_ln_g_ref, ao_ln_b_ref,
                 i_w_ref, i_b_ref, o_w_ref, o_b_ref,
                 o_ln_g_ref, o_ln_b_ref,
                 pooler_w_ref, pooler_b_ref,
                 hidden_ref, pooled_ref,
                 h_scratch):
    """Grid = (batch, layer).  One batch element's (S, H) block per step."""
    l = pl.program_id(1)
    last = pl.num_programs(1) - 1

    # ---- layer-0 prologue: embeddings (one-hot gather on the MXU) + embedding LN ----
    @pl.when(l == 0)
    def _():
        we = jnp.dot(onehot_ref[...], word_emb_ref[...],
                     preferred_element_type=jnp.float32)            # (S, H)
        h_scratch[...] = _ln(we + pos_type_ref[...],
                             emb_ln_g_ref[...], emb_ln_b_ref[...])

    h = h_scratch[...]                                              # (S, H) f32

    # additive attention-mask bias, built in-kernel from the int32 mask
    bias = jnp.where(mask_ref[0] == 0,
                     jnp.float32(-10000.0), jnp.float32(0.0))       # (1, S)

    # ---- fused QKV projection (bf16 MXU, f32 acc); 1/sqrt(dH) folded into Wq ----
    qkv = jnp.dot(h.astype(jnp.bfloat16), qkv_w_ref[...],
                  preferred_element_type=jnp.float32) + qkv_b_ref[...]   # (S, 3H)

    # ---- per-head attention; heads are lane segments, no transposes ----
    ctx_parts = []
    for hh in range(N_HEADS):
        lo = hh * HEAD_DIM
        q = qkv[:, lo:lo + HEAD_DIM]                                # pre-scaled
        k = qkv[:, HIDDEN + lo:HIDDEN + lo + HEAD_DIM]
        v = qkv[:, 2 * HIDDEN + lo:2 * HIDDEN + lo + HEAD_DIM]

        s = lax.dot_general(q.astype(jnp.bfloat16), k.astype(jnp.bfloat16),
                            (((1,), (1,)), ((), ())),
                            preferred_element_type=jnp.float32)     # (S, S)
        s = s + bias
        p = jnp.exp(s - jnp.max(s, axis=-1, keepdims=True))         # f32 softmax
        p = p * pl.reciprocal(jnp.sum(p, axis=-1, keepdims=True), approx=True)

        ctx_parts.append(jnp.dot(p.astype(jnp.bfloat16), v.astype(jnp.bfloat16),
                                 preferred_element_type=jnp.float32))    # (S, dH)

    ctx = jnp.concatenate(ctx_parts, axis=-1)                        # (S, H) lane-dense

    # ---- attention output projection (single 128-wide matmul) + residual LN ----
    attn = jnp.dot(ctx.astype(jnp.bfloat16), ao_w_ref[...],
                   preferred_element_type=jnp.float32) + ao_b_ref[...]
    h1 = _ln(attn + h, ao_ln_g_ref[...], ao_ln_b_ref[...])

    # ---- feed-forward (tanh-approx GELU -> EUP) + residual LN ----
    inter = jnp.dot(h1.astype(jnp.bfloat16), i_w_ref[...],
                    preferred_element_type=jnp.float32) + i_b_ref[...]
    inter = jax.nn.gelu(inter, approximate=True)
    ffn = jnp.dot(inter.astype(jnp.bfloat16), o_w_ref[...],
                  preferred_element_type=jnp.float32) + o_b_ref[...]
    h_new = _ln(ffn + h1, o_ln_g_ref[...], o_ln_b_ref[...])
    h_scratch[...] = h_new                                           # carry to next layer

    # ---- last-layer epilogue: write sequence output + fused pooler ----
    @pl.when(l == last)
    def _():
        hidden_ref[...] = h_new
        cls = h_new[0:1, :]                                          # (1, H)
        pooled_ref[0] = jnp.tanh(
            jnp.dot(cls.astype(jnp.bfloat16), pooler_w_ref[...],
                    preferred_element_type=jnp.float32) + pooler_b_ref[...])


# ---------------------------- parameters ----------------------------

def init_params(key):
    # TODO(synk): BertModel.from_pretrained('bert') loads checkpoint weights;
    # here we use deterministic synthetic weights of the same structure.
    keys = jax.random.split(key, 64)
    kit = iter(keys)

    def w(shape):
        return (0.02 * jax.random.normal(next(kit), shape)).astype(jnp.float32)

    def zeros(n):
        return jnp.zeros((n,), jnp.float32)

    def ones(n):
        return jnp.ones((n,), jnp.float32)

    params = {
        "word_emb": w((VOCAB, HIDDEN)),
        "pos_emb": w((MAX_POS, HIDDEN)),
        "type_emb": w((TYPE_VOCAB, HIDDEN)),
        "emb_ln_g": ones(HIDDEN),
        "emb_ln_b": zeros(HIDDEN),
        "layers": [],
        "pooler_w": w((HIDDEN, HIDDEN)),
        "pooler_b": zeros(HIDDEN),
    }
    for _ in range(N_LAYERS):
        params["layers"].append({
            "q_w": w((HIDDEN, HIDDEN)), "q_b": zeros(HIDDEN),
            "k_w": w((HIDDEN, HIDDEN)), "k_b": zeros(HIDDEN),
            "v_w": w((HIDDEN, HIDDEN)), "v_b": zeros(HIDDEN),
            "ao_w": w((HIDDEN, HIDDEN)), "ao_b": zeros(HIDDEN),
            "ao_ln_g": ones(HIDDEN), "ao_ln_b": zeros(HIDDEN),
            "i_w": w((HIDDEN, INTERMEDIATE)), "i_b": zeros(INTERMEDIATE),
            "o_w": w((INTERMEDIATE, HIDDEN)), "o_b": zeros(HIDDEN),
            "o_ln_g": ones(HIDDEN), "o_ln_b": zeros(HIDDEN),
        })
    return params


def pack_params(p):
    """One-time packing: pad word emb, bake pos+type, concat QKV, fold 1/sqrt(dH)
    into Q, cast matmul weights to bf16, stack per-layer weights on a layer axis."""
    scale = 1.0 / (HEAD_DIM ** 0.5)
    layers = p["layers"]

    def stack(name):
        return jnp.stack([lyr[name] for lyr in layers])

    word_pad = jnp.zeros((VOCAB_PAD, HIDDEN), jnp.float32).at[:VOCAB].set(p["word_emb"])

    packed = {
        "word_emb_pad": word_pad.astype(jnp.bfloat16),                      # (128, H)
        # token_type_ids default to 0 -> bake type_emb[0] into the position rows
        "pos_type": p["pos_emb"] + p["type_emb"][0][None, :],               # (MAX_POS, H) f32
        "emb_ln_g": p["emb_ln_g"].reshape(1, HIDDEN),
        "emb_ln_b": p["emb_ln_b"].reshape(1, HIDDEN),
        "pooler_w": p["pooler_w"].astype(jnp.bfloat16),
        "pooler_b": p["pooler_b"].reshape(1, HIDDEN),
        # stacked per-layer weights (leading layer axis streamed by the grid)
        "qkv_w": jnp.stack([
            jnp.concatenate([lyr["q_w"] * scale, lyr["k_w"], lyr["v_w"]], axis=1)
            for lyr in layers]).astype(jnp.bfloat16),                        # (L, H, 3H)
        "qkv_b": jnp.stack([
            jnp.concatenate([lyr["q_b"] * scale, lyr["k_b"], lyr["v_b"]]
                            ).reshape(1, 3 * HIDDEN)
            for lyr in layers]),                                             # (L, 1, 3H) f32
        "ao_w": stack("ao_w").astype(jnp.bfloat16),                          # (L, H, H)
        "ao_b": stack("ao_b").reshape(N_LAYERS, 1, HIDDEN),
        "ao_ln_g": stack("ao_ln_g").reshape(N_LAYERS, 1, HIDDEN),
        "ao_ln_b": stack("ao_ln_b").reshape(N_LAYERS, 1, HIDDEN),
        "i_w": stack("i_w").astype(jnp.bfloat16),                            # (L, H, I)
        "i_b": stack("i_b").reshape(N_LAYERS, 1, INTERMEDIATE),
        "o_w": stack("o_w").astype(jnp.bfloat16),                            # (L, I, H)
        "o_b": stack("o_b").reshape(N_LAYERS, 1, HIDDEN),
        "o_ln_g": stack("o_ln_g").reshape(N_LAYERS, 1, HIDDEN),
        "o_ln_b": stack("o_ln_b").reshape(N_LAYERS, 1, HIDDEN),
    }
    return packed


_LAYER_WEIGHT_NAMES = ("qkv_w", "qkv_b", "ao_w", "ao_b", "ao_ln_g", "ao_ln_b",
                       "i_w", "i_b", "o_w", "o_b", "o_ln_g", "o_ln_b")


# ---------------------------- forward ----------------------------

def bert_forward(packed, input_ids, attention_mask):
    B, S = input_ids.shape
    L = packed["qkv_w"].shape[0]

    # one-hot token ids (lane-dense, bf16) -> in-kernel MXU gather at layer 0
    onehot = (input_ids.reshape(B * S, 1)
              == jnp.arange(VOCAB_PAD, dtype=jnp.int32)[None, :]).astype(jnp.bfloat16)
    mask3 = attention_mask.astype(jnp.int32).reshape(B, 1, S)

    layer_ws = [packed[n] for n in _LAYER_WEIGHT_NAMES]

    def const_spec(arr):
        nd = arr.ndim
        return pl.BlockSpec(arr.shape, lambda b, l, _nd=nd: (0,) * _nd)

    def layer_spec(arr):
        # (L, d0, d1) stacked weights -> per-layer (d0, d1), indexed by the layer axis
        return pl.BlockSpec((None,) + arr.shape[1:], lambda b, l: (l, 0, 0))

    in_specs = ([pl.BlockSpec((S, VOCAB_PAD), lambda b, l: (b, 0)),   # one-hot ids
                 const_spec(packed["word_emb_pad"]),
                 pl.BlockSpec((S, HIDDEN), lambda b, l: (0, 0)),      # pos+type rows [0:S)
                 const_spec(packed["emb_ln_g"]),
                 const_spec(packed["emb_ln_b"]),
                 pl.BlockSpec((1, 1, S), lambda b, l: (b, 0, 0))]     # int32 mask
                + [layer_spec(w) for w in layer_ws]
                + [const_spec(packed["pooler_w"]),
                   const_spec(packed["pooler_b"])])

    out_shape = (jax.ShapeDtypeStruct((B * S, HIDDEN), jnp.float32),
                 jax.ShapeDtypeStruct((B, 1, HIDDEN), jnp.float32))
    out_specs = (pl.BlockSpec((S, HIDDEN), lambda b, l: (b, 0)),
                 pl.BlockSpec((1, 1, HIDDEN), lambda b, l: (b, 0, 0)))

    hidden, pooled = pl.pallas_call(
        _bert_kernel,
        out_shape=out_shape,
        grid_spec=pltpu.PrefetchScalarGridSpec(
            num_scalar_prefetch=0,
            grid=(B, L),                                   # layer axis last (innermost)
            in_specs=in_specs,
            out_specs=out_specs,
            scratch_shapes=[pltpu.VMEM((S, HIDDEN), jnp.float32)]),
        compiler_params=pltpu.CompilerParams(
            dimension_semantics=("parallel", "arbitrary")),
    )(onehot, packed["word_emb_pad"], packed["pos_type"],
      packed["emb_ln_g"], packed["emb_ln_b"], mask3,
      *layer_ws, packed["pooler_w"], packed["pooler_b"])

    # Mimics BertModel outputs: (sequence_output, pooled_output)
    return hidden.reshape(B, S, HIDDEN), pooled.reshape(B, HIDDEN)


# ---------------------------- main ----------------------------

if __name__ == "__main__":
    key = jax.random.PRNGKey(0)
    pkey, ikey = jax.random.split(key)
    params = init_params(pkey)
    packed = pack_params(params)

    B, S = 2, 8
    input_ids = jax.random.randint(ikey, (B, S), 0, VOCAB, dtype=jnp.int32)
    # last two tokens of each sequence are padding
    attention_mask = jnp.ones((B, S), dtype=jnp.int32).at[:, S - 2:].set(0)

    fwd = jax.jit(bert_forward)
    last_hidden, pooled = fwd(packed, input_ids, attention_mask)
    jax.block_until_ready((last_hidden, pooled))

    assert last_hidden.shape == (B, S, HIDDEN)
    assert pooled.shape == (B, HIDDEN)
    assert bool(jnp.all(jnp.isfinite(last_hidden))) and bool(jnp.all(jnp.isfinite(pooled)))
    print("KERNEL_OK")
</pallas_src>

<mosaic_0001>
module attributes {stable_mosaic.version = 11 : i64} {
  func.func @_bert_kernel(%arg0: i32, %arg1: i32, %arg2: memref<8x128xbf16, #tpu.memory_space<vmem>>, %arg3: memref<128x128xbf16, #tpu.memory_space<vmem>>, %arg4: memref<8x128xf32, #tpu.memory_space<vmem>>, %arg5: memref<1x128xf32, #tpu.memory_space<vmem>>, %arg6: memref<1x128xf32, #tpu.memory_space<vmem>>, %arg7: memref<1x1x8xi32, #tpu.memory_space<vmem>>, %arg8: memref<1x128x384xbf16, #tpu.memory_space<vmem>>, %arg9: memref<1x1x384xf32, #tpu.memory_space<vmem>>, %arg10: memref<1x128x128xbf16, #tpu.memory_space<vmem>>, %arg11: memref<1x1x128xf32, #tpu.memory_space<vmem>>, %arg12: memref<1x1x128xf32, #tpu.memory_space<vmem>>, %arg13: memref<1x1x128xf32, #tpu.memory_space<vmem>>, %arg14: memref<1x128x512xbf16, #tpu.memory_space<vmem>>, %arg15: memref<1x1x512xf32, #tpu.memory_space<vmem>>, %arg16: memref<1x512x128xbf16, #tpu.memory_space<vmem>>, %arg17: memref<1x1x128xf32, #tpu.memory_space<vmem>>, %arg18: memref<1x1x128xf32, #tpu.memory_space<vmem>>, %arg19: memref<1x1x128xf32, #tpu.memory_space<vmem>>, %arg20: memref<128x128xbf16, #tpu.memory_space<vmem>>, %arg21: memref<1x128xf32, #tpu.memory_space<vmem>>, %arg22: memref<8x128xf32, #tpu.memory_space<vmem>>, %arg23: memref<1x1x128xf32, #tpu.memory_space<vmem>>, %arg24: memref<8x128xf32, #tpu.memory_space<vmem>>) attributes {dimension_semantics = [#tpu.dimension_semantics<parallel>, #tpu.dimension_semantics<arbitrary>], iteration_bounds = array<i64: 2, 2>, scalar_prefetch = 0 : i64, scratch_operands = 1 : i64, tpu.core_type = #tpu.core_type<tc>, window_params = [{transform_indices = @transform_0, window_bounds = array<i64: 8, 128>}, {pipeline_mode = #tpu.pipeline_mode<synchronous>, transform_indices = @transform_1, window_bounds = array<i64: 128, 128>}, {transform_indices = @transform_2, window_bounds = array<i64: 8, 128>}, {pipeline_mode = #tpu.pipeline_mode<synchronous>, transform_indices = @transform_3, window_bounds = array<i64: 1, 128>}, {pipeline_mode = #tpu.pipeline_mode<synchronous>, transform_indices = @transform_4, window_bounds = array<i64: 1, 128>}, {transform_indices = @transform_5, window_bounds = array<i64: 1, 1, 8>}, {transform_indices = @transform_6, window_bounds = array<i64: 1, 128, 384>}, {transform_indices = @transform_7, window_bounds = array<i64: 1, 1, 384>}, {transform_indices = @transform_8, window_bounds = array<i64: 1, 128, 128>}, {transform_indices = @transform_9, window_bounds = array<i64: 1, 1, 128>}, {transform_indices = @transform_10, window_bounds = array<i64: 1, 1, 128>}, {transform_indices = @transform_11, window_bounds = array<i64: 1, 1, 128>}, {transform_indices = @transform_12, window_bounds = array<i64: 1, 128, 512>}, {transform_indices = @transform_13, window_bounds = array<i64: 1, 1, 512>}, {transform_indices = @transform_14, window_bounds = array<i64: 1, 512, 128>}, {transform_indices = @transform_15, window_bounds = array<i64: 1, 1, 128>}, {transform_indices = @transform_16, window_bounds = array<i64: 1, 1, 128>}, {transform_indices = @transform_17, window_bounds = array<i64: 1, 1, 128>}, {pipeline_mode = #tpu.pipeline_mode<synchronous>, transform_indices = @transform_18, window_bounds = array<i64: 128, 128>}, {pipeline_mode = #tpu.pipeline_mode<synchronous>, transform_indices = @transform_19, window_bounds = array<i64: 1, 128>}, {transform_indices = @transform_20, window_bounds = array<i64: 8, 128>}, {transform_indices = @transform_21, window_bounds = array<i64: 1, 1, 128>}]} {
    %c0_i32 = arith.constant 0 : i32
    %0 = arith.cmpi eq, %arg1, %c0_i32 : i32
    %1 = arith.extui %0 : i1 to i32
    %c0_i32_0 = arith.constant 0 : i32
    %2 = arith.cmpi ne, %1, %c0_i32_0 : i32
    scf.if %2 {
      %c0_72 = arith.constant 0 : index
      %c0_73 = arith.constant 0 : index
      %153 = vector.load %arg2[%c0_72, %c0_73] : memref<8x128xbf16, #tpu.memory_space<vmem>>, vector<8x128xbf16>
      %c0_74 = arith.constant 0 : index
      %c0_75 = arith.constant 0 : index
      %154 = vector.load %arg3[%c0_74, %c0_75] : memref<128x128xbf16, #tpu.memory_space<vmem>>, vector<128x128xbf16>
      %cst_76 = arith.constant dense<0.000000e+00> : vector<8x128xf32>
      %155 = tpu.matmul %153, %154, %cst_76 {dimension_numbers = #tpu.dot_dimension_numbers<[1], [0], [0], [1], [0, 0, 1, 1], [], []>} : vector<8x128xbf16>, vector<128x128xbf16>, vector<8x128xf32> -> vector<8x128xf32>
      %c0_77 = arith.constant 0 : index
      %c0_78 = arith.constant 0 : index
      %156 = vector.load %arg4[%c0_77, %c0_78] : memref<8x128xf32, #tpu.memory_space<vmem>>, vector<8x128xf32>
      %157 = arith.addf %155, %156 : vector<8x128xf32>
      %c0_79 = arith.constant 0 : index
      %c0_80 = arith.constant 0 : index
      %158 = vector.load %arg5[%c0_79, %c0_80] : memref<1x128xf32, #tpu.memory_space<vmem>>, vector<1x128xf32>
      %c0_81 = arith.constant 0 : index
      %c0_82 = arith.constant 0 : index
      %159 = vector.load %arg6[%c0_81, %c0_82] : memref<1x128xf32, #tpu.memory_space<vmem>>, vector<1x128xf32>
      %cst_83 = arith.constant dense<0.000000e+00> : vector<8xf32>
      %160 = vector.multi_reduction <add>, %157, %cst_83 [1] : vector<8x128xf32> to vector<8xf32>
      %161 = vector.shape_cast %160 : vector<8xf32> to vector<8x1xf32>
      %cst_84 = arith.constant 1.280000e+02 : f32
      %162 = vector.broadcast %cst_84 : f32 to vector<8x1xf32>
      %163 = arith.divf %161, %162 : vector<8x1xf32>
      %164 = vector.broadcast %163 : vector<8x1xf32> to vector<8x128xf32>
      %165 = arith.subf %157, %164 : vector<8x128xf32>
      %166 = arith.mulf %165, %165 : vector<8x128xf32>
      %cst_85 = arith.constant dense<0.000000e+00> : vector<8xf32>
      %167 = vector.multi_reduction <add>, %166, %cst_85 [1] : vector<8x128xf32> to vector<8xf32>
      %168 = vector.shape_cast %167 : vector<8xf32> to vector<8x1xf32>
      %cst_86 = arith.constant 1.280000e+02 : f32
      %169 = vector.broadcast %cst_86 : f32 to vector<8x1xf32>
      %170 = arith.divf %168, %169 : vector<8x1xf32>
      %cst_87 = arith.constant 9.99999996E-13 : f32
      %171 = vector.broadcast %cst_87 : f32 to vector<8x1xf32>
      %172 = arith.addf %170, %171 : vector<8x1xf32>
      %173 = math.rsqrt %172 : vector<8x1xf32>
      %174 = vector.broadcast %173 : vector<8x1xf32> to vector<8x128xf32>
      %175 = arith.mulf %165, %174 : vector<8x128xf32>
      %176 = vector.broadcast %158 : vector<1x128xf32> to vector<8x128xf32>
      %177 = arith.mulf %175, %176 : vector<8x128xf32>
      %178 = vector.broadcast %159 : vector<1x128xf32> to vector<8x128xf32>
      %179 = arith.addf %177, %178 : vector<8x128xf32>
      %c0_88 = arith.constant 0 : index
      %c0_89 = arith.constant 0 : index
      %180 = vector.load %arg24[%c0_88, %c0_89] : memref<8x128xf32, #tpu.memory_space<vmem>>, vector<8x128xf32>
      tpu.vector_store %arg24[%c0_88, %c0_89], %179 {strides = array<i32>} : memref<8x128xf32, #tpu.memory_space<vmem>>, vector<8x128xf32>,
    } else {
    }
    %c0 = arith.constant 0 : index
    %c0_1 = arith.constant 0 : index
    %3 = vector.load %arg24[%c0, %c0_1] : memref<8x128xf32, #tpu.memory_space<vmem>>, vector<8x128xf32>
    %c0_2 = arith.constant 0 : index
    %c0_3 = arith.constant 0 : index
    %c0_4 = arith.constant 0 : index
    %4 = vector.load %arg7[%c0_2, %c0_3, %c0_4] : memref<1x1x8xi32, #tpu.memory_space<vmem>>, vector<1x1x8xi32>
    %5 = vector.shape_cast %4 : vector<1x1x8xi32> to vector<1x8xi32>
    %c0_i32_5 = arith.constant 0 : i32
    %6 = vector.broadcast %c0_i32_5 : i32 to vector<1x8xi32>
    %7 = arith.cmpi eq, %5, %6 : vector<1x8xi32>
    %cst = arith.constant -1.000000e+04 : f32
    %cst_6 = arith.constant 0.000000e+00 : f32
    %8 = vector.broadcast %cst : f32 to vector<1x8xf32>
    %9 = vector.broadcast %cst_6 : f32 to vector<1x8xf32>
    %10 = arith.select %7, %8, %9 : vector<1x8xi1>, vector<1x8xf32>
    %11 = arith.truncf %3 : vector<8x128xf32> to vector<8x128xbf16>
    %c0_7 = arith.constant 0 : index
    %c0_8 = arith.constant 0 : index
    %c0_9 = arith.constant 0 : index
    %12 = vector.load %arg8[%c0_7, %c0_8, %c0_9] : memref<1x128x384xbf16, #tpu.memory_space<vmem>>, vector<1x128x384xbf16>
    %13 = vector.shape_cast %12 : vector<1x128x384xbf16> to vector<128x384xbf16>
    %cst_10 = arith.constant dense<0.000000e+00> : vector<8x384xf32>
    %14 = tpu.matmul %11, %13, %cst_10 {dimension_numbers = #tpu.dot_dimension_numbers<[1], [0], [0], [1], [0, 0, 1, 1], [], []>} : vector<8x128xbf16>, vector<128x384xbf16>, vector<8x384xf32> -> vector<8x384xf32>
    %c0_11 = arith.constant 0 : index
    %c0_12 = arith.constant 0 : index
    %c0_13 = arith.constant 0 : index
    %15 = vector.load %arg9[%c0_11, %c0_12, %c0_13] : memref<1x1x384xf32, #tpu.memory_space<vmem>>, vector<1x1x384xf32>
    %16 = vector.shape_cast %15 : vector<1x1x384xf32> to vector<1x384xf32>
    %17 = vector.broadcast %16 : vector<1x384xf32> to vector<8x384xf32>
    %18 = arith.addf %14, %17 : vector<8x384xf32>
    %19 = vector.extract_strided_slice %18 {offsets = [0, 0], sizes = [8, 64], strides = [1, 1]} : vector<8x384xf32> to vector<8x64xf32>
    %20 = vector.extract_strided_slice %18 {offsets = [0, 128], sizes = [8, 64], strides = [1, 1]} : vector<8x384xf32> to vector<8x64xf32>
    %21 = vector.extract_strided_slice %18 {offsets = [0, 256], sizes = [8, 64], strides = [1, 1]} : vector<8x384xf32> to vector<8x64xf32>
    %22 = arith.truncf %19 : vector<8x64xf32> to vector<8x64xbf16>
    %23 = arith.truncf %20 : vector<8x64xf32> to vector<8x64xbf16>
    %cst_14 = arith.constant dense<0.000000e+00> : vector<8x8xf32>
    %24 = tpu.matmul %22, %23, %cst_14 {dimension_numbers = #tpu.dot_dimension_numbers<[1], [1], [0], [0], [0, 0, 1, 0], [], []>} : vector<8x64xbf16>, vector<8x64xbf16>, vector<8x8xf32> -> vector<8x8xf32>
    %25 = vector.broadcast %10 : vector<1x8xf32> to vector<8x8xf32>
    %26 = arith.addf %24, %25 : vector<8x8xf32>
    %cst_15 = arith.constant dense<0xFF800000> : vector<8xf32>
    %27 = vector.multi_reduction <maximumf>, %26, %cst_15 [1] : vector<8x8xf32> to vector<8xf32>
    %28 = vector.shape_cast %27 : vector<8xf32> to vector<8x1xf32>
    %29 = vector.broadcast %28 : vector<8x1xf32> to vector<8x8xf32>
    %30 = arith.subf %26, %29 : vector<8x8xf32>
    %31 = math.exp %30 : vector<8x8xf32>
    %cst_16 = arith.constant dense<0.000000e+00> : vector<8xf32>
    %32 = vector.multi_reduction <add>, %31, %cst_16 [1] : vector<8x8xf32> to vector<8xf32>
    %33 = vector.shape_cast %32 : vector<8xf32> to vector<8x1xf32>
    %34 = tpu.reciprocal %33 {approx = true} : vector<8x1xf32> -> vector<8x1xf32>
    %35 = vector.broadcast %34 : vector<8x1xf32> to vector<8x8xf32>
    %36 = arith.mulf %31, %35 : vector<8x8xf32>
    %37 = arith.truncf %36 : vector<8x8xf32> to vector<8x8xbf16>
    %38 = arith.truncf %21 : vector<8x64xf32> to vector<8x64xbf16>
    %cst_17 = arith.constant dense<0.000000e+00> : vector<8x64xf32>
    %39 = tpu.matmul %37, %38, %cst_17 {dimension_numbers = #tpu.dot_dimension_numbers<[1], [0], [0], [1], [0, 0, 1, 1], [], []>} : vector<8x8xbf16>, vector<8x64xbf16>, vector<8x64xf32> -> vector<8x64xf32>
    %40 = vector.extract_strided_slice %18 {offsets = [0, 64], sizes = [8, 64], strides = [1, 1]} : vector<8x384xf32> to vector<8x64xf32>
    %41 = vector.extract_strided_slice %18 {offsets = [0, 192], sizes = [8, 64], strides = [1, 1]} : vector<8x384xf32> to vector<8x64xf32>
    %42 = vector.extract_strided_slice %18 {offsets = [0, 320], sizes = [8, 64], strides = [1, 1]} : vector<8x384xf32> to vector<8x64xf32>
    %43 = arith.truncf %40 : vector<8x64xf32> to vector<8x64xbf16>
    %44 = arith.truncf %41 : vector<8x64xf32> to vector<8x64xbf16>
    %cst_18 = arith.constant dense<0.000000e+00> : vector<8x8xf32>
    %45 = tpu.matmul %43, %44, %cst_18 {dimension_numbers = #tpu.dot_dimension_numbers<[1], [1], [0], [0], [0, 0, 1, 0], [], []>} : vector<8x64xbf16>, vector<8x64xbf16>, vector<8x8xf32> -> vector<8x8xf32>
    %46 = vector.broadcast %10 : vector<1x8xf32> to vector<8x8xf32>
    %47 = arith.addf %45, %46 : vector<8x8xf32>
    %cst_19 = arith.constant dense<0xFF800000> : vector<8xf32>
    %48 = vector.multi_reduction <maximumf>, %47, %cst_19 [1] : vector<8x8xf32> to vector<8xf32>
    %49 = vector.shape_cast %48 : vector<8xf32> to vector<8x1xf32>
    %50 = vector.broadcast %49 : vector<8x1xf32> to vector<8x8xf32>
    %51 = arith.subf %47, %50 : vector<8x8xf32>
    %52 = math.exp %51 : vector<8x8xf32>
    %cst_20 = arith.constant dense<0.000000e+00> : vector<8xf32>
    %53 = vector.multi_reduction <add>, %52, %cst_20 [1] : vector<8x8xf32> to vector<8xf32>
    %54 = vector.shape_cast %53 : vector<8xf32> to vector<8x1xf32>
    %55 = tpu.reciprocal %54 {approx = true} : vector<8x1xf32> -> vector<8x1xf32>
    %56 = vector.broadcast %55 : vector<8x1xf32> to vector<8x8xf32>
    %57 = arith.mulf %52, %56 : vector<8x8xf32>
    %58 = arith.truncf %57 : vector<8x8xf32> to vector<8x8xbf16>
    %59 = arith.truncf %42 : vector<8x64xf32> to vector<8x64xbf16>
    %cst_21 = arith.constant dense<0.000000e+00> : vector<8x64xf32>
    %60 = tpu.matmul %58, %59, %cst_21 {dimension_numbers = #tpu.dot_dimension_numbers<[1], [0], [0], [1], [0, 0, 1, 1], [], []>} : vector<8x8xbf16>, vector<8x64xbf16>, vector<8x64xf32> -> vector<8x64xf32>
    %61 = tpu.concatenate %39, %60 in 1 : vector<8x64xf32>, vector<8x64xf32> -> vector<8x128xf32>
    %62 = arith.truncf %61 : vector<8x128xf32> to vector<8x128xbf16>
    %c0_22 = arith.constant 0 : index
    %c0_23 = arith.constant 0 : index
    %c0_24 = arith.constant 0 : index
    %63 = vector.load %arg10[%c0_22, %c0_23, %c0_24] : memref<1x128x128xbf16, #tpu.memory_space<vmem>>, vector<1x128x128xbf16>
    %64 = vector.shape_cast %63 : vector<1x128x128xbf16> to vector<128x128xbf16>
    %cst_25 = arith.constant dense<0.000000e+00> : vector<8x128xf32>
    %65 = tpu.matmul %62, %64, %cst_25 {dimension_numbers = #tpu.dot_dimension_numbers<[1], [0], [0], [1], [0, 0, 1, 1], [], []>} : vector<8x128xbf16>, vector<128x128xbf16>, vector<8x128xf32> -> vector<8x128xf32>
    %c0_26 = arith.constant 0 : index
    %c0_27 = arith.constant 0 : index
    %c0_28 = arith.constant 0 : index
    %66 = vector.load %arg11[%c0_26, %c0_27, %c0_28] : memref<1x1x128xf32, #tpu.memory_space<vmem>>, vector<1x1x128xf32>
    %67 = vector.shape_cast %66 : vector<1x1x128xf32> to vector<1x128xf32>
    %68 = vector.broadcast %67 : vector<1x128xf32> to vector<8x128xf32>
    %69 = arith.addf %65, %68 : vector<8x128xf32>
    %70 = arith.addf %69, %3 : vector<8x128xf32>
    %c0_29 = arith.constant 0 : index
    %c0_30 = arith.constant 0 : index
    %c0_31 = arith.constant 0 : index
    %71 = vector.load %arg12[%c0_29, %c0_30, %c0_31] : memref<1x1x128xf32, #tpu.memory_space<vmem>>, vector<1x1x128xf32>
    %72 = vector.shape_cast %71 : vector<1x1x128xf32> to vector<1x128xf32>
    %c0_32 = arith.constant 0 : index
    %c0_33 = arith.constant 0 : index
    %c0_34 = arith.constant 0 : index
    %73 = vector.load %arg13[%c0_32, %c0_33, %c0_34] : memref<1x1x128xf32, #tpu.memory_space<vmem>>, vector<1x1x128xf32>
    %74 = vector.shape_cast %73 : vector<1x1x128xf32> to vector<1x128xf32>
    %cst_35 = arith.constant dense<0.000000e+00> : vector<8xf32>
    %75 = vector.multi_reduction <add>, %70, %cst_35 [1] : vector<8x128xf32> to vector<8xf32>
    %76 = vector.shape_cast %75 : vector<8xf32> to vector<8x1xf32>
    %cst_36 = arith.constant 1.280000e+02 : f32
    %77 = vector.broadcast %cst_36 : f32 to vector<8x1xf32>
    %78 = arith.divf %76, %77 : vector<8x1xf32>
    %79 = vector.broadcast %78 : vector<8x1xf32> to vector<8x128xf32>
    %80 = arith.subf %70, %79 : vector<8x128xf32>
    %81 = arith.mulf %80, %80 : vector<8x128xf32>
    %cst_37 = arith.constant dense<0.000000e+00> : vector<8xf32>
    %82 = vector.multi_reduction <add>, %81, %cst_37 [1] : vector<8x128xf32> to vector<8xf32>
    %83 = vector.shape_cast %82 : vector<8xf32> to vector<8x1xf32>
    %cst_38 = arith.constant 1.280000e+02 : f32
    %84 = vector.broadcast %cst_38 : f32 to vector<8x1xf32>
    %85 = arith.divf %83, %84 : vector<8x1xf32>
    %cst_39 = arith.constant 9.99999996E-13 : f32
    %86 = vector.broadcast %cst_39 : f32 to vector<8x1xf32>
    %87 = arith.addf %85, %86 : vector<8x1xf32>
    %88 = math.rsqrt %87 : vector<8x1xf32>
    %89 = vector.broadcast %88 : vector<8x1xf32> to vector<8x128xf32>
    %90 = arith.mulf %80, %89 : vector<8x128xf32>
    %91 = vector.broadcast %72 : vector<1x128xf32> to vector<8x128xf32>
    %92 = arith.mulf %90, %91 : vector<8x128xf32>
    %93 = vector.broadcast %74 : vector<1x128xf32> to vector<8x128xf32>
    %94 = arith.addf %92, %93 : vector<8x128xf32>
    %95 = arith.truncf %94 : vector<8x128xf32> to vector<8x128xbf16>
    %c0_40 = arith.constant 0 : index
    %c0_41 = arith.constant 0 : index
    %c0_42 = arith.constant 0 : index
    %96 = vector.load %arg14[%c0_40, %c0_41, %c0_42] : memref<1x128x512xbf16, #tpu.memory_space<vmem>>, vector<1x128x512xbf16>
    %97 = vector.shape_cast %96 : vector<1x128x512xbf16> to vector<128x512xbf16>
    %cst_43 = arith.constant dense<0.000000e+00> : vector<8x512xf32>
    %98 = tpu.matmul %95, %97, %cst_43 {dimension_numbers = #tpu.dot_dimension_numbers<[1], [0], [0], [1], [0, 0, 1, 1], [], []>} : vector<8x128xbf16>, vector<128x512xbf16>, vector<8x512xf32> -> vector<8x512xf32>
    %c0_44 = arith.constant 0 : index
    %c0_45 = arith.constant 0 : index
    %c0_46 = arith.constant 0 : index
    %99 = vector.load %arg15[%c0_44, %c0_45, %c0_46] : memref<1x1x512xf32, #tpu.memory_space<vmem>>, vector<1x1x512xf32>
    %100 = vector.shape_cast %99 : vector<1x1x512xf32> to vector<1x512xf32>
    %101 = vector.broadcast %100 : vector<1x512xf32> to vector<8x512xf32>
    %102 = arith.addf %98, %101 : vector<8x512xf32>
    %103 = arith.mulf %102, %102 : vector<8x512xf32>
    %104 = arith.mulf %102, %103 : vector<8x512xf32>
    %cst_47 = arith.constant 4.471500e-02 : f32
    %105 = vector.broadcast %cst_47 : f32 to vector<8x512xf32>
    %106 = arith.mulf %105, %104 : vector<8x512xf32>
    %107 = arith.addf %102, %106 : vector<8x512xf32>
    %cst_48 = arith.constant 0.797884583 : f32
    %108 = vector.broadcast %cst_48 : f32 to vector<8x512xf32>
    %109 = arith.mulf %108, %107 : vector<8x512xf32>
    %110 = math.tanh %109 : vector<8x512xf32>
    %cst_49 = arith.constant 1.000000e+00 : f32
    %111 = vector.broadcast %cst_49 : f32 to vector<8x512xf32>
    %112 = arith.addf %111, %110 : vector<8x512xf32>
    %cst_50 = arith.constant 5.000000e-01 : f32
    %113 = vector.broadcast %cst_50 : f32 to vector<8x512xf32>
    %114 = arith.mulf %113, %112 : vector<8x512xf32>
    %115 = arith.mulf %102, %114 : vector<8x512xf32>
    %116 = arith.truncf %115 : vector<8x512xf32> to vector<8x512xbf16>
    %c0_51 = arith.constant 0 : index
    %c0_52 = arith.constant 0 : index
    %c0_53 = arith.constant 0 : index
    %117 = vector.load %arg16[%c0_51, %c0_52, %c0_53] : memref<1x512x128xbf16, #tpu.memory_space<vmem>>, vector<1x512x128xbf16>
    %118 = vector.shape_cast %117 : vector<1x512x128xbf16> to vector<512x128xbf16>
    %cst_54 = arith.constant dense<0.000000e+00> : vector<8x128xf32>
    %119 = tpu.matmul %116, %118, %cst_54 {dimension_numbers = #tpu.dot_dimension_numbers<[1], [0], [0], [1], [0, 0, 1, 1], [], []>} : vector<8x512xbf16>, vector<512x128xbf16>, vector<8x128xf32> -> vector<8x128xf32>
    %c0_55 = arith.constant 0 : index
    %c0_56 = arith.constant 0 : index
    %c0_57 = arith.constant 0 : index
    %120 = vector.load %arg17[%c0_55, %c0_56, %c0_57] : memref<1x1x128xf32, #tpu.memory_space<vmem>>, vector<1x1x128xf32>
    %121 = vector.shape_cast %120 : vector<1x1x128xf32> to vector<1x128xf32>
    %122 = vector.broadcast %121 : vector<1x128xf32> to vector<8x128xf32>
    %123 = arith.addf %119, %122 : vector<8x128xf32>
    %124 = arith.addf %123, %94 : vector<8x128xf32>
    %c0_58 = arith.constant 0 : index
    %c0_59 = arith.constant 0 : index
    %c0_60 = arith.constant 0 : index
    %125 = vector.load %arg18[%c0_58, %c0_59, %c0_60] : memref<1x1x128xf32, #tpu.memory_space<vmem>>, vector<1x1x128xf32>
    %126 = vector.shape_cast %125 : vector<1x1x128xf32> to vector<1x128xf32>
    %c0_61 = arith.constant 0 : index
    %c0_62 = arith.constant 0 : index
    %c0_63 = arith.constant 0 : index
    %127 = vector.load %arg19[%c0_61, %c0_62, %c0_63] : memref<1x1x128xf32, #tpu.memory_space<vmem>>, vector<1x1x128xf32>
    %128 = vector.shape_cast %127 : vector<1x1x128xf32> to vector<1x128xf32>
    %cst_64 = arith.constant dense<0.000000e+00> : vector<8xf32>
    %129 = vector.multi_reduction <add>, %124, %cst_64 [1] : vector<8x128xf32> to vector<8xf32>
    %130 = vector.shape_cast %129 : vector<8xf32> to vector<8x1xf32>
    %cst_65 = arith.constant 1.280000e+02 : f32
    %131 = vector.broadcast %cst_65 : f32 to vector<8x1xf32>
    %132 = arith.divf %130, %131 : vector<8x1xf32>
    %133 = vector.broadcast %132 : vector<8x1xf32> to vector<8x128xf32>
    %134 = arith.subf %124, %133 : vector<8x128xf32>
    %135 = arith.mulf %134, %134 : vector<8x128xf32>
    %cst_66 = arith.constant dense<0.000000e+00> : vector<8xf32>
    %136 = vector.multi_reduction <add>, %135, %cst_66 [1] : vector<8x128xf32> to vector<8xf32>
    %137 = vector.shape_cast %136 : vector<8xf32> to vector<8x1xf32>
    %cst_67 = arith.constant 1.280000e+02 : f32
    %138 = vector.broadcast %cst_67 : f32 to vector<8x1xf32>
    %139 = arith.divf %137, %138 : vector<8x1xf32>
    %cst_68 = arith.constant 9.99999996E-13 : f32
    %140 = vector.broadcast %cst_68 : f32 to vector<8x1xf32>
    %141 = arith.addf %139, %140 : vector<8x1xf32>
    %142 = math.rsqrt %141 : vector<8x1xf32>
    %143 = vector.broadcast %142 : vector<8x1xf32> to vector<8x128xf32>
    %144 = arith.mulf %134, %143 : vector<8x128xf32>
    %145 = vector.broadcast %126 : vector<1x128xf32> to vector<8x128xf32>
    %146 = arith.mulf %144, %145 : vector<8x128xf32>
    %147 = vector.broadcast %128 : vector<1x128xf32> to vector<8x128xf32>
    %148 = arith.addf %146, %147 : vector<8x128xf32>
    %c0_69 = arith.constant 0 : index
    %c0_70 = arith.constant 0 : index
    %149 = vector.load %arg24[%c0_69, %c0_70] : memref<8x128xf32, #tpu.memory_space<vmem>>, vector<8x128xf32>
    tpu.vector_store %arg24[%c0_69, %c0_70], %148 {strides = array<i32>} : memref<8x128xf32, #tpu.memory_space<vmem>>, vector<8x128xf32>,
    %c1_i32 = arith.constant 1 : i32
    %150 = arith.cmpi eq, %arg1, %c1_i32 : i32
    %151 = arith.extui %150 : i1 to i32
    %c0_i32_71 = arith.constant 0 : i32
    %152 = arith.cmpi ne, %151, %c0_i32_71 : i32
    scf.if %152 {
      %c0_72 = arith.constant 0 : index
      %c0_73 = arith.constant 0 : index
      %153 = vector.load %arg22[%c0_72, %c0_73] : memref<8x128xf32, #tpu.memory_space<vmem>>, vector<8x128xf32>
      tpu.vector_store %arg22[%c0_72, %c0_73], %148 {strides = array<i32>} : memref<8x128xf32, #tpu.memory_space<vmem>>, vector<8x128xf32>,
      %154 = vector.extract_strided_slice %148 {offsets = [0, 0], sizes = [1, 128], strides = [1, 1]} : vector<8x128xf32> to vector<1x128xf32>
      %155 = arith.truncf %154 : vector<1x128xf32> to vector<1x128xbf16>
      %c0_74 = arith.constant 0 : index
      %c0_75 = arith.constant 0 : index
      %156 = vector.load %arg20[%c0_74, %c0_75] : memref<128x128xbf16, #tpu.memory_space<vmem>>, vector<128x128xbf16>
      %cst_76 = arith.constant dense<0.000000e+00> : vector<1x128xf32>
      %157 = tpu.matmul %155, %156, %cst_76 {dimension_numbers = #tpu.dot_dimension_numbers<[1], [0], [0], [1], [0, 0, 1, 1], [], []>} : vector<1x128xbf16>, vector<128x128xbf16>, vector<1x128xf32> -> vector<1x128xf32>
      %c0_77 = arith.constant 0 : index
      %c0_78 = arith.constant 0 : index
      %158 = vector.load %arg21[%c0_77, %c0_78] : memref<1x128xf32, #tpu.memory_space<vmem>>, vector<1x128xf32>
      %159 = arith.addf %157, %158 : vector<1x128xf32>
      %160 = math.tanh %159 : vector<1x128xf32>
      %c0_79 = arith.constant 0 : index
      %c0_80 = arith.constant 0 : index
      %c0_81 = arith.constant 0 : index
      %161 = vector.load %arg23[%c0_79, %c0_80, %c0_81] : memref<1x1x128xf32, #tpu.memory_space<vmem>>, vector<1x1x128xf32>
      %162 = vector.shape_cast %161 : vector<1x1x128xf32> to vector<1x128xf32>
      %163 = vector.shape_cast %160 : vector<1x128xf32> to vector<1x1x128xf32>
      tpu.vector_store %arg23[%c0_79, %c0_80, %c0_81], %163 {strides = array<i32>} : memref<1x1x128xf32, #tpu.memory_space<vmem>>, vector<1x1x128xf32>,
    } else {
    }
    return
  }
  func.func @transform_0(%arg0: i32, %arg1: i32) -> (i32, i32) {
    %c0_i32 = arith.constant 0 : i32
    %c0_i32_0 = arith.constant 0 : i32
    return %arg0, %c0_i32 : i32, i32
  }
  func.func @transform_1(%arg0: i32, %arg1: i32) -> (i32, i32) {
    %c0_i32 = arith.constant 0 : i32
    %c0_i32_0 = arith.constant 0 : i32
    %c0_i32_1 = arith.constant 0 : i32
    return %c0_i32, %c0_i32_0 : i32, i32
  }
  func.func @transform_2(%arg0: i32, %arg1: i32) -> (i32, i32) {
    %c0_i32 = arith.constant 0 : i32
    %c0_i32_0 = arith.constant 0 : i32
    %c0_i32_1 = arith.constant 0 : i32
    return %c0_i32, %c0_i32_0 : i32, i32
  }
  func.func @transform_3(%arg0: i32, %arg1: i32) -> (i32, i32) {
    %c0_i32 = arith.constant 0 : i32
    %c0_i32_0 = arith.constant 0 : i32
    %c0_i32_1 = arith.constant 0 : i32
    return %c0_i32, %c0_i32_0 : i32, i32
  }
  func.func @transform_4(%arg0: i32, %arg1: i32) -> (i32, i32) {
    %c0_i32 = arith.constant 0 : i32
    %c0_i32_0 = arith.constant 0 : i32
    %c0_i32_1 = arith.constant 0 : i32
    return %c0_i32, %c0_i32_0 : i32, i32
  }
  func.func @transform_5(%arg0: i32, %arg1: i32) -> (i32, i32, i32) {
    %c0_i32 = arith.constant 0 : i32
    %c0_i32_0 = arith.constant 0 : i32
    %c0_i32_1 = arith.constant 0 : i32
    return %arg0, %c0_i32, %c0_i32_0 : i32, i32, i32
  }
  func.func @transform_6(%arg0: i32, %arg1: i32) -> (i32, i32, i32) {
    %c0_i32 = arith.constant 0 : i32
    %c0_i32_0 = arith.constant 0 : i32
    %c0_i32_1 = arith.constant 0 : i32
    return %arg1, %c0_i32, %c0_i32_0 : i32, i32, i32
  }
  func.func @transform_7(%arg0: i32, %arg1: i32) -> (i32, i32, i32) {
    %c0_i32 = arith.constant 0 : i32
    %c0_i32_0 = arith.constant 0 : i32
    %c0_i32_1 = arith.constant 0 : i32
    return %arg1, %c0_i32, %c0_i32_0 : i32, i32, i32
  }
  func.func @transform_8(%arg0: i32, %arg1: i32) -> (i32, i32, i32) {
    %c0_i32 = arith.constant 0 : i32
    %c0_i32_0 = arith.constant 0 : i32
    %c0_i32_1 = arith.constant 0 : i32
    return %arg1, %c0_i32, %c0_i32_0 : i32, i32, i32
  }
  func.func @transform_9(%arg0: i32, %arg1: i32) -> (i32, i32, i32) {
    %c0_i32 = arith.constant 0 : i32
    %c0_i32_0 = arith.constant 0 : i32
    %c0_i32_1 = arith.constant 0 : i32
    return %arg1, %c0_i32, %c0_i32_0 : i32, i32, i32
  }
  func.func @transform_10(%arg0: i32, %arg1: i32) -> (i32, i32, i32) {
    %c0_i32 = arith.constant 0 : i32
    %c0_i32_0 = arith.constant 0 : i32
    %c0_i32_1 = arith.constant 0 : i32
    return %arg1, %c0_i32, %c0_i32_0 : i32, i32, i32
  }
  func.func @transform_11(%arg0: i32, %arg1: i32) -> (i32, i32, i32) {
    %c0_i32 = arith.constant 0 : i32
    %c0_i32_0 = arith.constant 0 : i32
    %c0_i32_1 = arith.constant 0 : i32
    return %arg1, %c0_i32, %c0_i32_0 : i32, i32, i32
  }
  func.func @transform_12(%arg0: i32, %arg1: i32) -> (i32, i32, i32) {
    %c0_i32 = arith.constant 0 : i32
    %c0_i32_0 = arith.constant 0 : i32
    %c0_i32_1 = arith.constant 0 : i32
    return %arg1, %c0_i32, %c0_i32_0 : i32, i32, i32
  }
  func.func @transform_13(%arg0: i32, %arg1: i32) -> (i32, i32, i32) {
    %c0_i32 = arith.constant 0 : i32
    %c0_i32_0 = arith.constant 0 : i32
    %c0_i32_1 = arith.constant 0 : i32
    return %arg1, %c0_i32, %c0_i32_0 : i32, i32, i32
  }
  func.func @transform_14(%arg0: i32, %arg1: i32) -> (i32, i32, i32) {
    %c0_i32 = arith.constant 0 : i32
    %c0_i32_0 = arith.constant 0 : i32
    %c0_i32_1 = arith.constant 0 : i32
    return %arg1, %c0_i32, %c0_i32_0 : i32, i32, i32
  }
  func.func @transform_15(%arg0: i32, %arg1: i32) -> (i32, i32, i32) {
    %c0_i32 = arith.constant 0 : i32
    %c0_i32_0 = arith.constant 0 : i32
    %c0_i32_1 = arith.constant 0 : i32
    return %arg1, %c0_i32, %c0_i32_0 : i32, i32, i32
  }
  func.func @transform_16(%arg0: i32, %arg1: i32) -> (i32, i32, i32) {
    %c0_i32 = arith.constant 0 : i32
    %c0_i32_0 = arith.constant 0 : i32
    %c0_i32_1 = arith.constant 0 : i32
    return %arg1, %c0_i32, %c0_i32_0 : i32, i32, i32
  }
  func.func @transform_17(%arg0: i32, %arg1: i32) -> (i32, i32, i32) {
    %c0_i32 = arith.constant 0 : i32
    %c0_i32_0 = arith.constant 0 : i32
    %c0_i32_1 = arith.constant 0 : i32
    return %arg1, %c0_i32, %c0_i32_0 : i32, i32, i32
  }
  func.func @transform_18(%arg0: i32, %arg1: i32) -> (i32, i32) {
    %c0_i32 = arith.constant 0 : i32
    %c0_i32_0 = arith.constant 0 : i32
    %c0_i32_1 = arith.constant 0 : i32
    return %c0_i32, %c0_i32_0 : i32, i32
  }
  func.func @transform_19(%arg0: i32, %arg1: i32) -> (i32, i32) {
    %c0_i32 = arith.constant 0 : i32
    %c0_i32_0 = arith.constant 0 : i32
    %c0_i32_1 = arith.constant 0 : i32
    return %c0_i32, %c0_i32_0 : i32, i32
  }
  func.func @transform_20(%arg0: i32, %arg1: i32) -> (i32, i32) {
    %c0_i32 = arith.constant 0 : i32
    %c0_i32_0 = arith.constant 0 : i32
    return %arg0, %c0_i32 : i32, i32
  }
  func.func @transform_21(%arg0: i32, %arg1: i32) -> (i32, i32, i32) {
    %c0_i32 = arith.constant 0 : i32
    %c0_i32_0 = arith.constant 0 : i32
    %c0_i32_1 = arith.constant 0 : i32
    return %arg0, %c0_i32, %c0_i32_0 : i32, i32, i32
  }
}

</mosaic_0001>

<llo_original>
// kernel: eq.8
$region0: #{eq.8}
  %s0 = inlined_call_operand.vmem [shape: s32[2,8], index: 0, kind: input, shape index: {}]
  %s1 = inlined_call_operand.vmem [shape: s32[16], index: 1, kind: output, shape index: {}]
  $region1: #{eq.8} parent=0
    #allocation0 [shape = 'u8[4096]{0}', space=vmem, size = 0x1000, scoped, tag = 'scoped mem for output reshape']
    #allocation1 [shape = 'u8[4096]{0}', space=vmem, size = 0x1000, scoped, tag = 'scoped mem for input reshape']
    %s3 = sshll.u32 1, 2
    %s4 = ssub.s32 %s3, 1
    %v5 = vld [vmem:[%s0] sm:%s4]
    %6 = vst [vmem:[#allocation1] sm:%s4] %v5
    %v7 = vld [vmem:[#allocation1] sm:$0x1]
    %vm8 = vcmask 64512
    %9 = vst.msk [vmem:[#allocation0] sm:$0x1] %vm8, %v7
    %s10 = scalar_lea.vmem [#allocation1], 1
    %v11 = vld [vmem:[%s10] sm:$0x1]
    %12 = vrot.lane.b32.xlu0 %v11, 8
    %v13 = vpop.permute.xlu0 %12
    %vm14 = vcmask 130112
    %15 = vst.msk [vmem:[#allocation0] sm:$0x1] %vm14, %v13
    %s17 = sshll.u32 1, 1
    %s18 = ssub.s32 %s17, 1
    %v20 = vld [vmem:[#allocation0] sm:%s18]
    %s21 = sshll.u32 1, 1
    %s22 = ssub.s32 %s21, 1
    %23 = vst [vmem:[%s1] sm:%s22] %v20

// kernel: bert_forward.1
$region0: #{bert_forward.1}
  #allocation0 [shape = 'u32[]', space=smem, size = 0x4, offset = 0x4, fixed_abs, tag = 'smem constant byte address 0x4 - core index']
  #allocation1 [shape = 'u32[144,128]{1,0:T(1,128)}', space=vmem, size = 0x12000, scoped, tag = 'internal scratch']
  #allocation2 [shape = 'f32[8,128]{1,0:T(8,128)}', space=vmem, size = 0x1000, scoped, tag = 'scratch operand']
  %s0 = inlined_call_operand.vmem [shape: bf16[16,128], index: 0, kind: input, shape index: {}]
  %s1 = inlined_call_operand.hbm [shape: bf16[128,128], index: 1, kind: input, shape index: {}]
  %s2 = inlined_call_operand.vmem [shape: f32[16,128], index: 2, kind: input, shape index: {}]
  %s3 = inlined_call_operand.hbm [shape: f32[1,128], index: 3, kind: input, shape index: {}]
  %s4 = inlined_call_operand.hbm [shape: f32[1,128], index: 4, kind: input, shape index: {}]
  %s5 = inlined_call_operand.vmem [shape: s32[2,1,8], index: 5, kind: input, shape index: {}]
  %s6 = inlined_call_operand.hbm [shape: bf16[2,128,384], index: 6, kind: input, shape index: {}]
  %s7 = inlined_call_operand.vmem [shape: f32[2,1,384], index: 7, kind: input, shape index: {}]
  %s8 = inlined_call_operand.hbm [shape: bf16[2,128,128], index: 8, kind: input, shape index: {}]
  %s9 = inlined_call_operand.hbm [shape: f32[2,1,128], index: 9, kind: input, shape index: {}]
  %s10 = inlined_call_operand.hbm [shape: f32[2,1,128], index: 10, kind: input, shape index: {}]
  %s11 = inlined_call_operand.hbm [shape: f32[2,1,128], index: 11, kind: input, shape index: {}]
  %s12 = inlined_call_operand.hbm [shape: bf16[2,128,512], index: 12, kind: input, shape index: {}]
  %s13 = inlined_call_operand.vmem [shape: f32[2,1,512], index: 13, kind: input, shape index: {}]
  %s14 = inlined_call_operand.hbm [shape: bf16[2,512,128], index: 14, kind: input, shape index: {}]
  %s15 = inlined_call_operand.hbm [shape: f32[2,1,128], index: 15, kind: input, shape index: {}]
  %s16 = inlined_call_operand.hbm [shape: f32[2,1,128], index: 16, kind: input, shape index: {}]
  %s17 = inlined_call_operand.hbm [shape: f32[2,1,128], index: 17, kind: input, shape index: {}]
  %s18 = inlined_call_operand.hbm [shape: bf16[128,128], index: 18, kind: input, shape index: {}]
  %s19 = inlined_call_operand.vmem [shape: f32[1,128], index: 19, kind: input, shape index: {}]
  %s20 = inlined_call_operand.hbm [shape: f32[16,128], index: 20, kind: output, shape index: {0}]
  %s21 = inlined_call_operand.hbm [shape: f32[2,1,128], index: 21, kind: output, shape index: {1}]
  %22 = xla_tuple %s20, %s21
  %s23 = sld [smem:[#allocation0]]
  $region185: #{bert_forward.1} parent=0
    _
  %s25 = ssub.s32 1, %s23
  %s26 = scalar_select 0, %s25, %s23
  $region1: #{bert_forward.1} parent=0
    #allocation3 [shape = 'u8[32768]{0}', space=vmem, size = 0x8000, scoped, tag = 'input window, operand 1, single buffered']
    #allocation4 [shape = 's32[2]{0}', space=sflag, size = 0x8, scoped, tag = 'scoped memory for bert_forward.1']
    #allocation5 [shape = 's32[2]{0}', space=sflag, size = 0x8, scoped, tag = 'scoped memory for bert_forward.1']
    #allocation6 [shape = 'u8[512]{0}', space=vmem, size = 0x400, scoped, tag = 'input window, operand 3, single buffered']
    #allocation7 [shape = 's32[1]{0}', space=sflag, size = 0x4, scoped, tag = 'scoped memory for bert_forward.1']
    #allocation8 [shape = 'u8[512]{0}', space=vmem, size = 0x400, scoped, tag = 'input window, operand 4, single buffered']
    #allocation9 [shape = 'u8[196608]{0}', space=vmem, size = 0x30000, scoped, tag = 'input window, operand 6']
    #allocation10 [shape = 's32[2]{0}', space=sflag, size = 0x8, scoped, tag = 'scoped memory for bert_forward.1']
    #allocation11 [shape = 'u8[65536]{0}', space=vmem, size = 0x10000, scoped, tag = 'input window, operand 8']
    #allocation12 [shape = 'u8[1024]{0}', space=vmem, size = 0x400, scoped, tag = 'input window, operand 9']
    #allocation13 [shape = 's32[2]{0}', space=sflag, size = 0x8, scoped, tag = 'scoped memory for bert_forward.1']
    #allocation14 [shape = 'u8[1024]{0}', space=vmem, size = 0x400, scoped, tag = 'input window, operand 10']
    #allocation15 [shape = 'u8[1024]{0}', space=vmem, size = 0x400, scoped, tag = 'input window, operand 11']
    #allocation16 [shape = 's32[2]{0}', space=sflag, size = 0x8, scoped, tag = 'scoped memory for bert_forward.1']
    #allocation17 [shape = 'u8[262144]{0}', space=vmem, size = 0x40000, scoped, tag = 'input window, operand 12']
    #allocation18 [shape = 'u8[262144]{0}', space=vmem, size = 0x40000, scoped, tag = 'input window, operand 14']
    #allocation19 [shape = 's32[2]{0}', space=sflag, size = 0x8, scoped, tag = 'scoped memory for bert_forward.1']
    #allocation20 [shape = 'u8[1024]{0}', space=vmem, size = 0x400, scoped, tag = 'input window, operand 15']
    #allocation21 [shape = 'u8[1024]{0}', space=vmem, size = 0x400, scoped, tag = 'input window, operand 16']
    #allocation22 [shape = 's32[2]{0}', space=sflag, size = 0x8, scoped, tag = 'scoped memory for bert_forward.1']
    #allocation23 [shape = 'u8[1024]{0}', space=vmem, size = 0x400, scoped, tag = 'input window, operand 17']
    #allocation24 [shape = 'u8[32768]{0}', space=vmem, size = 0x8000, scoped, tag = 'input window, operand 18, single buffered']
    #allocation25 [shape = 's32[1]{0}', space=sflag, size = 0x4, scoped, tag = 'scoped memory for bert_forward.1']
    #allocation26 [shape = 'u8[8192]{0}', space=vmem, size = 0x2000, scoped, tag = 'output window, operand 0']
    #allocation27 [shape = 'u8[1024]{0}', space=vmem, size = 0x400, scoped, tag = 'output window, operand 1']
    #allocation28 [shape = 's32[2]{0}', space=sflag, size = 0x8, scoped, tag = 'scoped memory for bert_forward.1']
    %27 = vsyncpa [#allocation4], 0
    %28 = vsyncpa [#allocation7], 0
    %29 = vsyncpa [#allocation10], 0
    %s30 = scalar_lea.sflag [#allocation10], 1
    %31 = vsyncpa %s30, 0
    %32 = vsyncpa [#allocation13], 0
    %s33 = scalar_lea.sflag [#allocation13], 1
    %34 = vsyncpa %s33, 0
    %35 = vsyncpa [#allocation16], 0
    %s36 = scalar_lea.sflag [#allocation16], 1
    %37 = vsyncpa %s36, 0
    %38 = vsyncpa [#allocation19], 0
    %s39 = scalar_lea.sflag [#allocation19], 1
    %40 = vsyncpa %s39, 0
    %41 = vsyncpa [#allocation22], 0
    %s42 = scalar_lea.sflag [#allocation22], 1
    %43 = vsyncpa %s42, 0
    %44 = vsyncpa [#allocation25], 0
    %45 = vsyncpa [#allocation5], 0
    %s46 = scalar_lea.sflag [#allocation5], 1
    %47 = vsyncpa %s46, 0
    %48 = vsyncpa [#allocation28], 0
    %s49 = scalar_lea.sflag [#allocation28], 1
    %50 = vsyncpa %s49, 0
    loop: start=0, step=1, limit=6
    $region2: #{bert_forward.1} parent=1 // loop_pre_header
      _
    $region3: #{bert_forward.1} parent=1 // loop_header
      %s52 = sphi 0, %s56
      %p53 = scmp.ge.s32.totalorder %s52, 6
      %s59 = sphi 0, %s71
      %s60 = sphi 0, %s67
      %s61 = sphi 0, %s59
      %s62 = sphi 0, %s60
      %s63 = sphi 0, %s61
      %s64 = sphi 0, %s62
      %s74 = sphi 0, %s76
      %s77 = sphi 0, %s74
      %s78 = sphi 0, %s77
      %s94 = sphi 0, %s78
      %s98 = sphi 0, %s98
      %s100 = sphi 0, %s98
      %s101 = sphi 0, %s100
      %s115 = sphi 0, %s101
      %s119 = sphi 0, %s119
      %s121 = sphi 0, %s119
      %s122 = sphi 0, %s121
      %s136 = sphi 0, %s122
      %s140 = sphi 0, %s140
      %s142 = sphi 0, %s140
      %s143 = sphi 0, %s142
      %s157 = sphi 0, %s143
      %s161 = sphi 0, %s161
      %s163 = sphi 0, %s161
      %s164 = sphi 0, %s163
      %s178 = sphi 0, %s164
      %s184 = sphi 0, %s186
      %s187 = sphi 0, %s184
      %s188 = sphi 0, %s187
      %s204 = sphi 0, %s188
      %s210 = sphi 0, %s212
      %s213 = sphi 0, %s210
      %s214 = sphi 0, %s213
      %s230 = sphi 0, %s214
      %s236 = sphi 0, %s238
      %s239 = sphi 0, %s236
      %s240 = sphi 0, %s239
      %s256 = sphi 0, %s240
      %s262 = sphi 0, %s264
      %s265 = sphi 0, %s262
      %s266 = sphi 0, %s265
      %s282 = sphi 0, %s266
      %s288 = sphi 0, %s290
      %s291 = sphi 0, %s288
      %s292 = sphi 0, %s291
      %s308 = sphi 0, %s292
      %s314 = sphi 0, %s316
      %s317 = sphi 0, %s314
      %s318 = sphi 0, %s317
      %s334 = sphi 0, %s318
      %s340 = sphi 0, %s342
      %s343 = sphi 0, %s340
      %s344 = sphi 0, %s343
      %s360 = sphi 0, %s344
      %s366 = sphi 0, %s368
      %s369 = sphi 0, %s366
      %s370 = sphi 0, %s369
      %s386 = sphi 0, %s370
      %s392 = sphi 0, %s394
      %s395 = sphi 0, %s392
      %s396 = sphi 0, %s395
      %s412 = sphi 0, %s396
      %s418 = sphi 0, %s420
      %s421 = sphi 0, %s418
      %s422 = sphi 0, %s421
      %s438 = sphi 0, %s422
      %s444 = sphi 0, %s446
      %s447 = sphi 0, %s444
      %s448 = sphi 0, %s447
      %s464 = sphi 0, %s448
      %s470 = sphi 0, %s472
      %s473 = sphi 0, %s470
      %s474 = sphi 0, %s473
      %s490 = sphi 0, %s474
      %s496 = sphi 0, %s498
      %s499 = sphi 0, %s496
      %s500 = sphi 0, %s499
      %s516 = sphi 0, %s500
      %s520 = sphi 0, %s520
      %s522 = sphi 0, %s520
      %s523 = sphi 0, %s522
      %s537 = sphi 0, %s523
      %s541 = sphi 0, %s541
      %s543 = sphi 0, %s541
      %s544 = sphi 0, %s543
      %s558 = sphi 0, %s544
      %s564 = sphi 0, %s566
      %s567 = sphi 0, %s564
      %s568 = sphi 0, %s567
      %s584 = sphi 0, %s568
      %s590 = sphi 0, %s592
      %s593 = sphi 0, %s590
      %s594 = sphi 0, %s593
      %s610 = sphi 0, %s594
    $region4: #{bert_forward.1} parent=1 // loop_header_branch
      %55 = sbr.rel (%p53) target = $region8
    $region5: #{bert_forward.1} parent=1 // loop_body
      %s57 = ssub.s32 %s52, 1
      %s58 = ssub.s32 %s52, 2
      %s65 = sadd.s32 1, %s60
      %p66 = scmp.ge.s32.totalorder %s65, 2
      %s67 = scalar_select %p66, 0, %s65
      %s68 = sadd.s32 1, %s59
      %s69 = scalar_select %p66, %s68, %s59
      %p70 = scmp.ge.s32.totalorder %s69, 2
      %s71 = scalar_select %p70, 0, %s69
      %s72 = ssub.s32 %s59, %s71
      %p73 = scmp.eq.s32.totalorder %s72, 0
      %s75 = sadd.s32 %s74, 1
      %s76 = scalar_select %p73, %s74, %s75
      %p79 = pneg %p73
      %p80 = scmp.eq.s32.totalorder %s52, 3
      %p81 = por %p79, %p80
      %p82 = scmp.ne.s32.totalorder %s74, %s77
      %p83 = scmp.eq.s32.totalorder %s52, 0
      %p84 = por %p82, %p83
      %p85 = scmp.ne.s32.totalorder %s74, %s77
      %p86 = scmp.eq.s32.totalorder %s57, 3
      %p87 = por %p85, %p86
      %p88 = scmp.ne.s32.totalorder %s77, %s78
      %p89 = scmp.eq.s32.totalorder %s57, 0
      %p90 = por %p88, %p89
      %p91 = scmp.ne.s32.totalorder %s77, %s78
      %p92 = scmp.eq.s32.totalorder %s58, 3
      %p93 = por %p91, %p92
      %p95 = scmp.ne.s32.totalorder %s78, %s94
      %p96 = scmp.eq.s32.totalorder %s58, 0
      %p97 = por %p95, %p96
      %s99 = sadd.s32 %s98, 1
      %p102 = scmp.eq.s32.totalorder %s52, 3
      %p103 = scmp.ne.s32.totalorder %s98, %s100
      %p104 = scmp.eq.s32.totalorder %s52, 0
      %p105 = por %p103, %p104
      %p106 = scmp.ne.s32.totalorder %s98, %s100
      %p107 = scmp.eq.s32.totalorder %s57, 3
      %p108 = por %p106, %p107
      %p109 = scmp.ne.s32.totalorder %s100, %s101
      %p110 = scmp.eq.s32.totalorder %s57, 0
      %p111 = por %p109, %p110
      %p112 = scmp.ne.s32.totalorder %s100, %s101
      %p113 = scmp.eq.s32.totalorder %s58, 3
      %p114 = por %p112, %p113
      %p116 = scmp.ne.s32.totalorder %s101, %s115
      %p117 = scmp.eq.s32.totalorder %s58, 0
      %p118 = por %p116, %p117
      %s120 = sadd.s32 %s119, 1
      %p123 = scmp.eq.s32.totalorder %s52, 3
      %p124 = scmp.ne.s32.totalorder %s119, %s121
      %p125 = scmp.eq.s32.totalorder %s52, 0
      %p126 = por %p124, %p125
      %p127 = scmp.ne.s32.totalorder %s119, %s121
      %p128 = scmp.eq.s32.totalorder %s57, 3
      %p129 = por %p127, %p128
      %p130 = scmp.ne.s32.totalorder %s121, %s122
      %p131 = scmp.eq.s32.totalorder %s57, 0
      %p132 = por %p130, %p131
      %p133 = scmp.ne.s32.totalorder %s121, %s122
      %p134 = scmp.eq.s32.totalorder %s58, 3
      %p135 = por %p133, %p134
      %p137 = scmp.ne.s32.totalorder %s122, %s136
      %p138 = scmp.eq.s32.totalorder %s58, 0
      %p139 = por %p137, %p138
      %s141 = sadd.s32 %s140, 1
      %p144 = scmp.eq.s32.totalorder %s52, 3
      %p145 = scmp.ne.s32.totalorder %s140, %s142
      %p146 = scmp.eq.s32.totalorder %s52, 0
      %p147 = por %p145, %p146
      %p148 = scmp.ne.s32.totalorder %s140, %s142
      %p149 = scmp.eq.s32.totalorder %s57, 3
      %p150 = por %p148, %p149
      %p151 = scmp.ne.s32.totalorder %s142, %s143
      %p152 = scmp.eq.s32.totalorder %s57, 0
      %p153 = por %p151, %p152
      %p154 = scmp.ne.s32.totalorder %s142, %s143
      %p155 = scmp.eq.s32.totalorder %s58, 3
      %p156 = por %p154, %p155
      %p158 = scmp.ne.s32.totalorder %s143, %s157
      %p159 = scmp.eq.s32.totalorder %s58, 0
      %p160 = por %p158, %p159
      %s162 = sadd.s32 %s161, 1
      %p165 = scmp.eq.s32.totalorder %s52, 3
      %p166 = scmp.ne.s32.totalorder %s161, %s163
      %p167 = scmp.eq.s32.totalorder %s52, 0
      %p168 = por %p166, %p167
      %p169 = scmp.ne.s32.totalorder %s161, %s163
      %p170 = scmp.eq.s32.totalorder %s57, 3
      %p171 = por %p169, %p170
      %p172 = scmp.ne.s32.totalorder %s163, %s164
      %p173 = scmp.eq.s32.totalorder %s57, 0
      %p174 = por %p172, %p173
      %p175 = scmp.ne.s32.totalorder %s163, %s164
      %p176 = scmp.eq.s32.totalorder %s58, 3
      %p177 = por %p175, %p176
      %p179 = scmp.ne.s32.totalorder %s164, %s178
      %p180 = scmp.eq.s32.totalorder %s58, 0
      %p181 = por %p179, %p180
      %s182 = ssub.s32 %s59, %s71
      %p183 = scmp.eq.s32.totalorder %s182, 0
      %s185 = sadd.s32 %s184, 1
      %s186 = scalar_select %p183, %s184, %s185
      %p189 = pneg %p183
      %p190 = scmp.eq.s32.totalorder %s52, 3
      %p191 = por %p189, %p190
      %p192 = scmp.ne.s32.totalorder %s184, %s187
      %p193 = scmp.eq.s32.totalorder %s52, 0
      %p194 = por %p192, %p193
      %p195 = scmp.ne.s32.totalorder %s184, %s187
      %p196 = scmp.eq.s32.totalorder %s57, 3
      %p197 = por %p195, %p196
      %p198 = scmp.ne.s32.totalorder %s187, %s188
      %p199 = scmp.eq.s32.totalorder %s57, 0
      %p200 = por %p198, %p199
      %p201 = scmp.ne.s32.totalorder %s187, %s188
      %p202 = scmp.eq.s32.totalorder %s58, 3
      %p203 = por %p201, %p202
      %p205 = scmp.ne.s32.totalorder %s188, %s204
      %p206 = scmp.eq.s32.totalorder %s58, 0
      %p207 = por %p205, %p206
      %s208 = ssub.s32 %s60, %s67
      %p209 = scmp.eq.s32.totalorder %s208, 0
      %s211 = sadd.s32 %s210, 1
      %s212 = scalar_select %p209, %s210, %s211
      %p215 = pneg %p209
      %p216 = scmp.eq.s32.totalorder %s52, 3
      %p217 = por %p215, %p216
      %p218 = scmp.ne.s32.totalorder %s210, %s213
      %p219 = scmp.eq.s32.totalorder %s52, 0
      %p220 = por %p218, %p219
      %p221 = scmp.ne.s32.totalorder %s210, %s213
      %p222 = scmp.eq.s32.totalorder %s57, 3
      %p223 = por %p221, %p222
      %p224 = scmp.ne.s32.totalorder %s213, %s214
      %p225 = scmp.eq.s32.totalorder %s57, 0
      %p226 = por %p224, %p225
      %p227 = scmp.ne.s32.totalorder %s213, %s214
      %p228 = scmp.eq.s32.totalorder %s58, 3
      %p229 = por %p227, %p228
      %p231 = scmp.ne.s32.totalorder %s214, %s230
      %p232 = scmp.eq.s32.totalorder %s58, 0
      %p233 = por %p231, %p232
      %s234 = ssub.s32 %s60, %s67
      %p235 = scmp.eq.s32.totalorder %s234, 0
      %s237 = sadd.s32 %s236, 1
      %s238 = scalar_select %p235, %s236, %s237
      %p241 = pneg %p235
      %p242 = scmp.eq.s32.totalorder %s52, 3
      %p243 = por %p241, %p242
      %p244 = scmp.ne.s32.totalorder %s236, %s239
      %p245 = scmp.eq.s32.totalorder %s52, 0
      %p246 = por %p244, %p245
      %p247 = scmp.ne.s32.totalorder %s236, %s239
      %p248 = scmp.eq.s32.totalorder %s57, 3
      %p249 = por %p247, %p248
      %p250 = scmp.ne.s32.totalorder %s239, %s240
      %p251 = scmp.eq.s32.totalorder %s57, 0
      %p252 = por %p250, %p251
      %p253 = scmp.ne.s32.totalorder %s239, %s240
      %p254 = scmp.eq.s32.totalorder %s58, 3
      %p255 = por %p253, %p254
      %p257 = scmp.ne.s32.totalorder %s240, %s256
      %p258 = scmp.eq.s32.totalorder %s58, 0
      %p259 = por %p257, %p258
      %s260 = ssub.s32 %s60, %s67
      %p261 = scmp.eq.s32.totalorder %s260, 0
      %s263 = sadd.s32 %s262, 1
      %s264 = scalar_select %p261, %s262, %s263
      %p267 = pneg %p261
      %p268 = scmp.eq.s32.totalorder %s52, 3
      %p269 = por %p267, %p268
      %p270 = scmp.ne.s32.totalorder %s262, %s265
      %p271 = scmp.eq.s32.totalorder %s52, 0
      %p272 = por %p270, %p271
      %p273 = scmp.ne.s32.totalorder %s262, %s265
      %p274 = scmp.eq.s32.totalorder %s57, 3
      %p275 = por %p273, %p274
      %p276 = scmp.ne.s32.totalorder %s265, %s266
      %p277 = scmp.eq.s32.totalorder %s57, 0
      %p278 = por %p276, %p277
      %p279 = scmp.ne.s32.totalorder %s265, %s266
      %p280 = scmp.eq.s32.totalorder %s58, 3
      %p281 = por %p279, %p280
      %p283 = scmp.ne.s32.totalorder %s266, %s282
      %p284 = scmp.eq.s32.totalorder %s58, 0
      %p285 = por %p283, %p284
      %s286 = ssub.s32 %s60, %s67
      %p287 = scmp.eq.s32.totalorder %s286, 0
      %s289 = sadd.s32 %s288, 1
      %s290 = scalar_select %p287, %s288, %s289
      %p293 = pneg %p287
      %p294 = scmp.eq.s32.totalorder %s52, 3
      %p295 = por %p293, %p294
      %p296 = scmp.ne.s32.totalorder %s288, %s291
      %p297 = scmp.eq.s32.totalorder %s52, 0
      %p298 = por %p296, %p297
      %p299 = scmp.ne.s32.totalorder %s288, %s291
      %p300 = scmp.eq.s32.totalorder %s57, 3
      %p301 = por %p299, %p300
      %p302 = scmp.ne.s32.totalorder %s291, %s292
      %p303 = scmp.eq.s32.totalorder %s57, 0
      %p304 = por %p302, %p303
      %p305 = scmp.ne.s32.totalorder %s291, %s292
      %p306 = scmp.eq.s32.totalorder %s58, 3
      %p307 = por %p305, %p306
      %p309 = scmp.ne.s32.totalorder %s292, %s308
      %p310 = scmp.eq.s32.totalorder %s58, 0
      %p311 = por %p309, %p310
      %s312 = ssub.s32 %s60, %s67
      %p313 = scmp.eq.s32.totalorder %s312, 0
      %s315 = sadd.s32 %s314, 1
      %s316 = scalar_select %p313, %s314, %s315
      %p319 = pneg %p313
      %p320 = scmp.eq.s32.totalorder %s52, 3
      %p321 = por %p319, %p320
      %p322 = scmp.ne.s32.totalorder %s314, %s317
      %p323 = scmp.eq.s32.totalorder %s52, 0
      %p324 = por %p322, %p323
      %p325 = scmp.ne.s32.totalorder %s314, %s317
      %p326 = scmp.eq.s32.totalorder %s57, 3
      %p327 = por %p325, %p326
      %p328 = scmp.ne.s32.totalorder %s317, %s318
      %p329 = scmp.eq.s32.totalorder %s57, 0
      %p330 = por %p328, %p329
      %p331 = scmp.ne.s32.totalorder %s317, %s318
      %p332 = scmp.eq.s32.totalorder %s58, 3
      %p333 = por %p331, %p332
      %p335 = scmp.ne.s32.totalorder %s318, %s334
      %p336 = scmp.eq.s32.totalorder %s58, 0
      %p337 = por %p335, %p336
      %s338 = ssub.s32 %s60, %s67
      %p339 = scmp.eq.s32.totalorder %s338, 0
      %s341 = sadd.s32 %s340, 1
      %s342 = scalar_select %p339, %s340, %s341
      %p345 = pneg %p339
      %p346 = scmp.eq.s32.totalorder %s52, 3
      %p347 = por %p345, %p346
      %p348 = scmp.ne.s32.totalorder %s340, %s343
      %p349 = scmp.eq.s32.totalorder %s52, 0
      %p350 = por %p348, %p349
      %p351 = scmp.ne.s32.totalorder %s340, %s343
      %p352 = scmp.eq.s32.totalorder %s57, 3
      %p353 = por %p351, %p352
      %p354 = scmp.ne.s32.totalorder %s343, %s344
      %p355 = scmp.eq.s32.totalorder %s57, 0
      %p356 = por %p354, %p355
      %p357 = scmp.ne.s32.totalorder %s343, %s344
      %p358 = scmp.eq.s32.totalorder %s58, 3
      %p359 = por %p357, %p358
      %p361 = scmp.ne.s32.totalorder %s344, %s360
      %p362 = scmp.eq.s32.totalorder %s58, 0
      %p363 = por %p361, %p362
      %s364 = ssub.s32 %s60, %s67
      %p365 = scmp.eq.s32.totalorder %s364, 0
      %s367 = sadd.s32 %s366, 1
      %s368 = scalar_select %p365, %s366, %s367
      %p371 = pneg %p365
      %p372 = scmp.eq.s32.totalorder %s52, 3
      %p373 = por %p371, %p372
      %p374 = scmp.ne.s32.totalorder %s366, %s369
      %p375 = scmp.eq.s32.totalorder %s52, 0
      %p376 = por %p374, %p375
      %p377 = scmp.ne.s32.totalorder %s366, %s369
      %p378 = scmp.eq.s32.totalorder %s57, 3
      %p379 = por %p377, %p378
      %p380 = scmp.ne.s32.totalorder %s369, %s370
      %p381 = scmp.eq.s32.totalorder %s57, 0
      %p382 = por %p380, %p381
      %p383 = scmp.ne.s32.totalorder %s369, %s370
      %p384 = scmp.eq.s32.totalorder %s58, 3
      %p385 = por %p383, %p384
      %p387 = scmp.ne.s32.totalorder %s370, %s386
      %p388 = scmp.eq.s32.totalorder %s58, 0
      %p389 = por %p387, %p388
      %s390 = ssub.s32 %s60, %s67
      %p391 = scmp.eq.s32.totalorder %s390, 0
      %s393 = sadd.s32 %s392, 1
      %s394 = scalar_select %p391, %s392, %s393
      %p397 = pneg %p391
      %p398 = scmp.eq.s32.totalorder %s52, 3
      %p399 = por %p397, %p398
      %p400 = scmp.ne.s32.totalorder %s392, %s395
      %p401 = scmp.eq.s32.totalorder %s52, 0
      %p402 = por %p400, %p401
      %p403 = scmp.ne.s32.totalorder %s392, %s395
      %p404 = scmp.eq.s32.totalorder %s57, 3
      %p405 = por %p403, %p404
      %p406 = scmp.ne.s32.totalorder %s395, %s396
      %p407 = scmp.eq.s32.totalorder %s57, 0
      %p408 = por %p406, %p407
      %p409 = scmp.ne.s32.totalorder %s395, %s396
      %p410 = scmp.eq.s32.totalorder %s58, 3
      %p411 = por %p409, %p410
      %p413 = scmp.ne.s32.totalorder %s396, %s412
      %p414 = scmp.eq.s32.totalorder %s58, 0
      %p415 = por %p413, %p414
      %s416 = ssub.s32 %s60, %s67
      %p417 = scmp.eq.s32.totalorder %s416, 0
      %s419 = sadd.s32 %s418, 1
      %s420 = scalar_select %p417, %s418, %s419
      %p423 = pneg %p417
      %p424 = scmp.eq.s32.totalorder %s52, 3
      %p425 = por %p423, %p424
      %p426 = scmp.ne.s32.totalorder %s418, %s421
      %p427 = scmp.eq.s32.totalorder %s52, 0
      %p428 = por %p426, %p427
      %p429 = scmp.ne.s32.totalorder %s418, %s421
      %p430 = scmp.eq.s32.totalorder %s57, 3
      %p431 = por %p429, %p430
      %p432 = scmp.ne.s32.totalorder %s421, %s422
      %p433 = scmp.eq.s32.totalorder %s57, 0
      %p434 = por %p432, %p433
      %p435 = scmp.ne.s32.totalorder %s421, %s422
      %p436 = scmp.eq.s32.totalorder %s58, 3
      %p437 = por %p435, %p436
      %p439 = scmp.ne.s32.totalorder %s422, %s438
      %p440 = scmp.eq.s32.totalorder %s58, 0
      %p441 = por %p439, %p440
      %s442 = ssub.s32 %s60, %s67
      %p443 = scmp.eq.s32.totalorder %s442, 0
      %s445 = sadd.s32 %s444, 1
      %s446 = scalar_select %p443, %s444, %s445
      %p449 = pneg %p443
      %p450 = scmp.eq.s32.totalorder %s52, 3
      %p451 = por %p449, %p450
      %p452 = scmp.ne.s32.totalorder %s444, %s447
      %p453 = scmp.eq.s32.totalorder %s52, 0
      %p454 = por %p452, %p453
      %p455 = scmp.ne.s32.totalorder %s444, %s447
      %p456 = scmp.eq.s32.totalorder %s57, 3
      %p457 = por %p455, %p456
      %p458 = scmp.ne.s32.totalorder %s447, %s448
      %p459 = scmp.eq.s32.totalorder %s57, 0
      %p460 = por %p458, %p459
      %p461 = scmp.ne.s32.totalorder %s447, %s448
      %p462 = scmp.eq.s32.totalorder %s58, 3
      %p463 = por %p461, %p462
      %p465 = scmp.ne.s32.totalorder %s448, %s464
      %p466 = scmp.eq.s32.totalorder %s58, 0
      %p467 = por %p465, %p466
      %s468 = ssub.s32 %s60, %s67
      %p469 = scmp.eq.s32.totalorder %s468, 0
      %s471 = sadd.s32 %s470, 1
      %s472 = scalar_select %p469, %s470, %s471
      %p475 = pneg %p469
      %p476 = scmp.eq.s32.totalorder %s52, 3
      %p477 = por %p475, %p476
      %p478 = scmp.ne.s32.totalorder %s470, %s473
      %p479 = scmp.eq.s32.totalorder %s52, 0
      %p480 = por %p478, %p479
      %p481 = scmp.ne.s32.totalorder %s470, %s473
      %p482 = scmp.eq.s32.totalorder %s57, 3
      %p483 = por %p481, %p482
      %p484 = scmp.ne.s32.totalorder %s473, %s474
      %p485 = scmp.eq.s32.totalorder %s57, 0
      %p486 = por %p484, %p485
      %p487 = scmp.ne.s32.totalorder %s473, %s474
      %p488 = scmp.eq.s32.totalorder %s58, 3
      %p489 = por %p487, %p488
      %p491 = scmp.ne.s32.totalorder %s474, %s490
      %p492 = scmp.eq.s32.totalorder %s58, 0
      %p493 = por %p491, %p492
      %s494 = ssub.s32 %s60, %s67
      %p495 = scmp.eq.s32.totalorder %s494, 0
      %s497 = sadd.s32 %s496, 1
      %s498 = scalar_select %p495, %s496, %s497
      %p501 = pneg %p495
      %p502 = scmp.eq.s32.totalorder %s52, 3
      %p503 = por %p501, %p502
      %p504 = scmp.ne.s32.totalorder %s496, %s499
      %p505 = scmp.eq.s32.totalorder %s52, 0
      %p506 = por %p504, %p505
      %p507 = scmp.ne.s32.totalorder %s496, %s499
      %p508 = scmp.eq.s32.totalorder %s57, 3
      %p509 = por %p507, %p508
      %p510 = scmp.ne.s32.totalorder %s499, %s500
      %p511 = scmp.eq.s32.totalorder %s57, 0
      %p512 = por %p510, %p511
      %p513 = scmp.ne.s32.totalorder %s499, %s500
      %p514 = scmp.eq.s32.totalorder %s58, 3
      %p515 = por %p513, %p514
      %p517 = scmp.ne.s32.totalorder %s500, %s516
      %p518 = scmp.eq.s32.totalorder %s58, 0
      %p519 = por %p517, %p518
      %s521 = sadd.s32 %s520, 1
      %p524 = scmp.eq.s32.totalorder %s52, 3
      %p525 = scmp.ne.s32.totalorder %s520, %s522
      %p526 = scmp.eq.s32.totalorder %s52, 0
      %p527 = por %p525, %p526
      %p528 = scmp.ne.s32.totalorder %s520, %s522
      %p529 = scmp.eq.s32.totalorder %s57, 3
      %p530 = por %p528, %p529
      %p531 = scmp.ne.s32.totalorder %s522, %s523
      %p532 = scmp.eq.s32.totalorder %s57, 0
      %p533 = por %p531, %p532
      %p534 = scmp.ne.s32.totalorder %s522, %s523
      %p535 = scmp.eq.s32.totalorder %s58, 3
      %p536 = por %p534, %p535
      %p538 = scmp.ne.s32.totalorder %s523, %s537
      %p539 = scmp.eq.s32.totalorder %s58, 0
      %p540 = por %p538, %p539
      %s542 = sadd.s32 %s541, 1
      %p545 = scmp.eq.s32.totalorder %s52, 3
      %p546 = scmp.ne.s32.totalorder %s541, %s543
      %p547 = scmp.eq.s32.totalorder %s52, 0
      %p548 = por %p546, %p547
      %p549 = scmp.ne.s32.totalorder %s541, %s543
      %p550 = scmp.eq.s32.totalorder %s57, 3
      %p551 = por %p549, %p550
      %p552 = scmp.ne.s32.totalorder %s543, %s544
      %p553 = scmp.eq.s32.totalorder %s57, 0
      %p554 = por %p552, %p553
      %p555 = scmp.ne.s32.totalorder %s543, %s544
      %p556 = scmp.eq.s32.totalorder %s58, 3
      %p557 = por %p555, %p556
      %p559 = scmp.ne.s32.totalorder %s544, %s558
      %p560 = scmp.eq.s32.totalorder %s58, 0
      %p561 = por %p559, %p560
      %s562 = ssub.s32 %s59, %s71
      %p563 = scmp.eq.s32.totalorder %s562, 0
      %s565 = sadd.s32 %s564, 1
      %s566 = scalar_select %p563, %s564, %s565
      %p569 = pneg %p563
      %p570 = scmp.eq.s32.totalorder %s52, 3
      %p571 = por %p569, %p570
      %p572 = scmp.ne.s32.totalorder %s564, %s567
      %p573 = scmp.eq.s32.totalorder %s52, 0
      %p574 = por %p572, %p573
      %p575 = scmp.ne.s32.totalorder %s564, %s567
      %p576 = scmp.eq.s32.totalorder %s57, 3
      %p577 = por %p575, %p576
      %p578 = scmp.ne.s32.totalorder %s567, %s568
      %p579 = scmp.eq.s32.totalorder %s57, 0
      %p580 = por %p578, %p579
      %p581 = scmp.ne.s32.totalorder %s567, %s568
      %p582 = scmp.eq.s32.totalorder %s58, 3
      %p583 = por %p581, %p582
      %p585 = scmp.ne.s32.totalorder %s568, %s584
      %p586 = scmp.eq.s32.totalorder %s58, 0
      %p587 = por %p585, %p586
      %s588 = ssub.s32 %s59, %s71
      %p589 = scmp.eq.s32.totalorder %s588, 0
      %s591 = sadd.s32 %s590, 1
      %s592 = scalar_select %p589, %s590, %s591
      %p595 = pneg %p589
      %p596 = scmp.eq.s32.totalorder %s52, 3
      %p597 = por %p595, %p596
      %p598 = scmp.ne.s32.totalorder %s590, %s593
      %p599 = scmp.eq.s32.totalorder %s52, 0
      %p600 = por %p598, %p599
      %p601 = scmp.ne.s32.totalorder %s590, %s593
      %p602 = scmp.eq.s32.totalorder %s57, 3
      %p603 = por %p601, %p602
      %p604 = scmp.ne.s32.totalorder %s593, %s594
      %p605 = scmp.eq.s32.totalorder %s57, 0
      %p606 = por %p604, %p605
      %p607 = scmp.ne.s32.totalorder %s593, %s594
      %p608 = scmp.eq.s32.totalorder %s58, 3
      %p609 = por %p607, %p608
      %p611 = scmp.ne.s32.totalorder %s594, %s610
      %p612 = scmp.eq.s32.totalorder %s58, 0
      %p613 = por %p611, %p612
      %p614 = scmp.le.s32.totalorder 1, %s52
      %p615 = scmp.lt.s32.totalorder %s52, 5
      %p616 = pnand %p614, %p615
      %p617 = pneg %p616
      // Predicated region
      $region9: #{bert_forward.1} parent=5 // pred_check
        _
      $region10: #{bert_forward.1} parent=5 // pred_check_branch
        %619 = sbr.rel (%p616) target = $region12
      $region11: #{bert_forward.1} parent=5 // pred_region
        %s620 = ssub.s32 %s52, 1
        // Predicated region
        $region13: #{bert_forward.1} parent=11 // pred_check
          %p621 = pneg %p111
        $region14: #{bert_forward.1} parent=11 // pred_check_branch
          %623 = sbr.rel (%p621) target = $region16
        $region15: #{bert_forward.1} parent=11 // pred_region
          %s625 = ssub.s32 1024, 1024
          %626 = vsyncadd [#allocation4], %s625
          %s627 = sshll.u32 [#allocation3], 4
          %s628 = int_to_ptr.vmem [resolvable:$true] %s627
          %633 = dma.hbm_to_vmem [thread:$0]  %s1, 1024, %s628, [#allocation4], 64, 64, 4
        $region16: #{bert_forward.1} parent=11 // pred_fallthru
          _
        // Predicated region
        $region17: #{bert_forward.1} parent=11 // pred_check
          %p634 = pneg %p132
        $region18: #{bert_forward.1} parent=11 // pred_check_branch
          %636 = sbr.rel (%p634) target = $region20
        $region19: #{bert_forward.1} parent=11 // pred_region
          _
        $region20: #{bert_forward.1} parent=11 // pred_fallthru
          _
        // Predicated region
        $region21: #{bert_forward.1} parent=11 // pred_check
          %p637 = pneg %p153
        $region22: #{bert_forward.1} parent=11 // pred_check_branch
          %639 = sbr.rel (%p637) target = $region24
        $region23: #{bert_forward.1} parent=11 // pred_region
          %s641 = ssub.s32 16, 16
          %642 = vsyncadd [#allocation7], %s641
          %s644 = sshll.u32 [#allocation6], 4
          %s645 = int_to_ptr.vmem [resolvable:$true] %s644
          %647 = dma.hbm_to_vmem [thread:$0]  %s3, 16, %s645, [#allocation7]
        $region24: #{bert_forward.1} parent=11 // pred_fallthru
          _
        // Predicated region
        $region25: #{bert_forward.1} parent=11 // pred_check
          %p648 = pneg %p174
        $region26: #{bert_forward.1} parent=11 // pred_check_branch
          %650 = sbr.rel (%p648) target = $region28
        $region27: #{bert_forward.1} parent=11 // pred_region
          %s652 = ssub.s32 16, 16
          %653 = vsyncadd [#allocation7], %s652
          %s655 = sshll.u32 [#allocation8], 4
          %s656 = int_to_ptr.vmem [resolvable:$true] %s655
          %658 = dma.hbm_to_vmem [thread:$0]  %s4, 16, %s656, [#allocation7]
        $region28: #{bert_forward.1} parent=11 // pred_fallthru
          _
        // Predicated region
        $region29: #{bert_forward.1} parent=11 // pred_check
          %p659 = pneg %p533
        $region30: #{bert_forward.1} parent=11 // pred_check_branch
          %661 = sbr.rel (%p659) target = $region32
        $region31: #{bert_forward.1} parent=11 // pred_region
          %s663 = ssub.s32 1024, 1024
          %664 = vsyncadd [#allocation25], %s663
          %s665 = sshll.u32 [#allocation24], 4
          %s666 = int_to_ptr.vmem [resolvable:$true] %s665
          %671 = dma.hbm_to_vmem [thread:$0]  %s18, 1024, %s666, [#allocation25], 64, 64, 4
        $region32: #{bert_forward.1} parent=11 // pred_fallthru
          _
        // Predicated region
        $region33: #{bert_forward.1} parent=11 // pred_check
          %p672 = pneg %p554
        $region34: #{bert_forward.1} parent=11 // pred_check_branch
          %674 = sbr.rel (%p672) target = $region36
        $region35: #{bert_forward.1} parent=11 // pred_region
          _
        $region36: #{bert_forward.1} parent=11 // pred_fallthru
          _
      $region12: #{bert_forward.1} parent=5 // pred_fallthru
        _
      %p675 = scmp.lt.s32.totalorder %s52, 4
      // Predicated region
      $region37: #{bert_forward.1} parent=5 // pred_check
        %p676 = pneg %p675
      $region38: #{bert_forward.1} parent=5 // pred_check_branch
        %678 = sbr.rel (%p676) target = $region40
      $region39: #{bert_forward.1} parent=5 // pred_region
        // Predicated region
        $region41: #{bert_forward.1} parent=39 // pred_check
          %p679 = pneg %p84
        $region42: #{bert_forward.1} parent=39 // pred_check_branch
          %681 = sbr.rel (%p679) target = $region44
        $region43: #{bert_forward.1} parent=39 // pred_region
          %p682 = scmp.lt.s32.totalorder %s59, 1
          %s683 = scalar_select %p682, %s59, 1
          %s684 = smul.addr %s683, 4
          %s685 = scalar_lea.vmem %s0, %s684
        $region44: #{bert_forward.1} parent=39 // pred_fallthru
          _
        // Predicated region
        $region45: #{bert_forward.1} parent=39 // pred_check
          %p686 = pneg %p194
        $region46: #{bert_forward.1} parent=39 // pred_check_branch
          %688 = sbr.rel (%p686) target = $region48
        $region47: #{bert_forward.1} parent=39 // pred_region
          %p689 = scmp.lt.s32.totalorder %s59, 1
          %s690 = scalar_select %p689, %s59, 1
          %s691 = scalar_lea.vmem %s5, %s690
        $region48: #{bert_forward.1} parent=39 // pred_fallthru
          _
        // Predicated region
        $region49: #{bert_forward.1} parent=39 // pred_check
          %p692 = pneg %p220
        $region50: #{bert_forward.1} parent=39 // pred_check_branch
          %694 = sbr.rel (%p692) target = $region52
        $region51: #{bert_forward.1} parent=39 // pred_region
          %s695 = sand.u32 %s52, 1
          %s696 = scalar_lea.sflag [#allocation10], %s695
          %s697 = sand.u32 %s210, 1
          %s698 = smul.addr %s697, 192
          %s699 = scalar_lea.vmem [#allocation9], %s698
          %s701 = ssub.s32 3072, 3072
          %702 = vsyncadd %s696, %s701
          %s703 = smul.addr %s60, 48
          %s704 = smul.addr %s703, 64
          %s705 = scalar_lea.hbm %s6, %s704
          %s706 = sshll.u32 %s699, 4
          %s707 = int_to_ptr.vmem [resolvable:$true] %s706
          %712 = dma.hbm_to_vmem [thread:$0]  %s705, 3072, %s707, %s696, 192, 192, 12
        $region52: #{bert_forward.1} parent=39 // pred_fallthru
          _
        // Predicated region
        $region53: #{bert_forward.1} parent=39 // pred_check
          %p713 = pneg %p246
        $region54: #{bert_forward.1} parent=39 // pred_check_branch
          %715 = sbr.rel (%p713) target = $region56
        $region55: #{bert_forward.1} parent=39 // pred_region
          %p716 = scmp.lt.s32.totalorder %s60, 1
          %s717 = scalar_select %p716, %s60, 1
          %s718 = smul.addr %s717, 3
          %s719 = scalar_lea.vmem %s7, %s718
        $region56: #{bert_forward.1} parent=39 // pred_fallthru
          _
        // Predicated region
        $region57: #{bert_forward.1} parent=39 // pred_check
          %p720 = pneg %p272
        $region58: #{bert_forward.1} parent=39 // pred_check_branch
          %722 = sbr.rel (%p720) target = $region60
        $region59: #{bert_forward.1} parent=39 // pred_region
          %s723 = sand.u32 %s52, 1
          %s724 = scalar_lea.sflag [#allocation10], %s723
          %s725 = sand.u32 %s262, 1
          %s726 = smul.addr %s725, 64
          %s727 = scalar_lea.vmem [#allocation11], %s726
          %s729 = ssub.s32 1024, 1024
          %730 = vsyncadd %s724, %s729
          %s731 = smul.addr %s60, 16
          %s732 = smul.addr %s731, 64
          %s733 = scalar_lea.hbm %s8, %s732
          %s734 = sshll.u32 %s727, 4
          %s735 = int_to_ptr.vmem [resolvable:$true] %s734
          %740 = dma.hbm_to_vmem [thread:$0]  %s733, 1024, %s735, %s724, 64, 64, 4
        $region60: #{bert_forward.1} parent=39 // pred_fallthru
          _
        // Predicated region
        $region61: #{bert_forward.1} parent=39 // pred_check
          %p741 = pneg %p298
        $region62: #{bert_forward.1} parent=39 // pred_check_branch
          %743 = sbr.rel (%p741) target = $region64
        $region63: #{bert_forward.1} parent=39 // pred_region
          %s744 = sand.u32 %s52, 1
          %s745 = scalar_lea.sflag [#allocation13], %s744
          %s746 = sand.u32 %s288, 1
          %s747 = scalar_lea.vmem [#allocation12], %s746
          %s749 = ssub.s32 16, 16
          %750 = vsyncadd %s745, %s749
          %s751 = smul.addr %s60, 16
          %s752 = scalar_lea.hbm %s9, %s751
          %s754 = sshll.u32 %s747, 4
          %s755 = int_to_ptr.vmem [resolvable:$true] %s754
          %757 = dma.hbm_to_vmem [thread:$0]  %s752, 16, %s755, %s745
        $region64: #{bert_forward.1} parent=39 // pred_fallthru
          _
        // Predicated region
        $region65: #{bert_forward.1} parent=39 // pred_check
          %p758 = pneg %p324
        $region66: #{bert_forward.1} parent=39 // pred_check_branch
          %760 = sbr.rel (%p758) target = $region68
        $region67: #{bert_forward.1} parent=39 // pred_region
          %s761 = sand.u32 %s52, 1
          %s762 = scalar_lea.sflag [#allocation13], %s761
          %s763 = sand.u32 %s314, 1
          %s764 = scalar_lea.vmem [#allocation14], %s763
          %s766 = ssub.s32 16, 16
          %767 = vsyncadd %s762, %s766
          %s768 = smul.addr %s60, 16
          %s769 = scalar_lea.hbm %s10, %s768
          %s771 = sshll.u32 %s764, 4
          %s772 = int_to_ptr.vmem [resolvable:$true] %s771
          %774 = dma.hbm_to_vmem [thread:$0]  %s769, 16, %s772, %s762
        $region68: #{bert_forward.1} parent=39 // pred_fallthru
          _
        // Predicated region
        $region69: #{bert_forward.1} parent=39 // pred_check
          %p775 = pneg %p350
        $region70: #{bert_forward.1} parent=39 // pred_check_branch
          %777 = sbr.rel (%p775) target = $region72
        $region71: #{bert_forward.1} parent=39 // pred_region
          %s778 = sand.u32 %s52, 1
          %s779 = scalar_lea.sflag [#allocation16], %s778
          %s780 = sand.u32 %s340, 1
          %s781 = scalar_lea.vmem [#allocation15], %s780
          %s783 = ssub.s32 16, 16
          %784 = vsyncadd %s779, %s783
          %s785 = smul.addr %s60, 16
          %s786 = scalar_lea.hbm %s11, %s785
          %s788 = sshll.u32 %s781, 4
          %s789 = int_to_ptr.vmem [resolvable:$true] %s788
          %791 = dma.hbm_to_vmem [thread:$0]  %s786, 16, %s789, %s779
        $region72: #{bert_forward.1} parent=39 // pred_fallthru
          _
        // Predicated region
        $region73: #{bert_forward.1} parent=39 // pred_check
          %p792 = pneg %p376
        $region74: #{bert_forward.1} parent=39 // pred_check_branch
          %794 = sbr.rel (%p792) target = $region76
        $region75: #{bert_forward.1} parent=39 // pred_region
          %s795 = sand.u32 %s52, 1
          %s796 = scalar_lea.sflag [#allocation16], %s795
          %s797 = sand.u32 %s366, 1
          %s798 = smul.addr %s797, 256
          %s799 = scalar_lea.vmem [#allocation17], %s798
          %s801 = ssub.s32 4096, 4096
          %802 = vsyncadd %s796, %s801
          %s803 = smul.addr %s60, 64
          %s804 = smul.addr %s803, 64
          %s805 = scalar_lea.hbm %s12, %s804
          %s806 = sshll.u32 %s799, 4
          %s807 = int_to_ptr.vmem [resolvable:$true] %s806
          %812 = dma.hbm_to_vmem [thread:$0]  %s805, 4096, %s807, %s796, 256, 256, 16
        $region76: #{bert_forward.1} parent=39 // pred_fallthru
          _
        // Predicated region
        $region77: #{bert_forward.1} parent=39 // pred_check
          %p813 = pneg %p402
        $region78: #{bert_forward.1} parent=39 // pred_check_branch
          %815 = sbr.rel (%p813) target = $region80
        $region79: #{bert_forward.1} parent=39 // pred_region
          %p816 = scmp.lt.s32.totalorder %s60, 1
          %s817 = scalar_select %p816, %s60, 1
          %s818 = smul.addr %s817, 4
          %s819 = scalar_lea.vmem %s13, %s818
        $region80: #{bert_forward.1} parent=39 // pred_fallthru
          _
        // Predicated region
        $region81: #{bert_forward.1} parent=39 // pred_check
          %p820 = pneg %p428
        $region82: #{bert_forward.1} parent=39 // pred_check_branch
          %822 = sbr.rel (%p820) target = $region84
        $region83: #{bert_forward.1} parent=39 // pred_region
          %s823 = sand.u32 %s52, 1
          %s824 = scalar_lea.sflag [#allocation19], %s823
          %s825 = sand.u32 %s418, 1
          %s826 = smul.addr %s825, 256
          %s827 = scalar_lea.vmem [#allocation18], %s826
          %s829 = ssub.s32 4096, 4096
          %830 = vsyncadd %s824, %s829
          %s831 = smul.addr %s60, 64
          %s832 = smul.addr %s831, 64
          %s833 = scalar_lea.hbm %s14, %s832
          %s834 = sshll.u32 %s827, 4
          %s835 = int_to_ptr.vmem [resolvable:$true] %s834
          %840 = dma.hbm_to_vmem [thread:$0]  %s833, 4096, %s835, %s824, 64, 64, 4
        $region84: #{bert_forward.1} parent=39 // pred_fallthru
          _
        // Predicated region
        $region85: #{bert_forward.1} parent=39 // pred_check
          %p841 = pneg %p454
        $region86: #{bert_forward.1} parent=39 // pred_check_branch
          %843 = sbr.rel (%p841) target = $region88
        $region87: #{bert_forward.1} parent=39 // pred_region
          %s844 = sand.u32 %s52, 1
          %s845 = scalar_lea.sflag [#allocation19], %s844
          %s846 = sand.u32 %s444, 1
          %s847 = scalar_lea.vmem [#allocation20], %s846
          %s849 = ssub.s32 16, 16
          %850 = vsyncadd %s845, %s849
          %s851 = smul.addr %s60, 16
          %s852 = scalar_lea.hbm %s15, %s851
          %s854 = sshll.u32 %s847, 4
          %s855 = int_to_ptr.vmem [resolvable:$true] %s854
          %857 = dma.hbm_to_vmem [thread:$0]  %s852, 16, %s855, %s845
        $region88: #{bert_forward.1} parent=39 // pred_fallthru
          _
        // Predicated region
        $region89: #{bert_forward.1} parent=39 // pred_check
          %p858 = pneg %p480
        $region90: #{bert_forward.1} parent=39 // pred_check_branch
          %860 = sbr.rel (%p858) target = $region92
        $region91: #{bert_forward.1} parent=39 // pred_region
          %s861 = sand.u32 %s52, 1
          %s862 = scalar_lea.sflag [#allocation22], %s861
          %s863 = sand.u32 %s470, 1
          %s864 = scalar_lea.vmem [#allocation21], %s863
          %s866 = ssub.s32 16, 16
          %867 = vsyncadd %s862, %s866
          %s868 = smul.addr %s60, 16
          %s869 = scalar_lea.hbm %s16, %s868
          %s871 = sshll.u32 %s864, 4
          %s872 = int_to_ptr.vmem [resolvable:$true] %s871
          %874 = dma.hbm_to_vmem [thread:$0]  %s869, 16, %s872, %s862
        $region92: #{bert_forward.1} parent=39 // pred_fallthru
          _
        // Predicated region
        $region93: #{bert_forward.1} parent=39 // pred_check
          %p875 = pneg %p506
        $region94: #{bert_forward.1} parent=39 // pred_check_branch
          %877 = sbr.rel (%p875) target = $region96
        $region95: #{bert_forward.1} parent=39 // pred_region
          %s878 = sand.u32 %s52, 1
          %s879 = scalar_lea.sflag [#allocation22], %s878
          %s880 = sand.u32 %s496, 1
          %s881 = scalar_lea.vmem [#allocation23], %s880
          %s883 = ssub.s32 16, 16
          %884 = vsyncadd %s879, %s883
          %s885 = smul.addr %s60, 16
          %s886 = scalar_lea.hbm %s17, %s885
          %s888 = sshll.u32 %s881, 4
          %s889 = int_to_ptr.vmem [resolvable:$true] %s888
          %891 = dma.hbm_to_vmem [thread:$0]  %s886, 16, %s889, %s879
        $region96: #{bert_forward.1} parent=39 // pred_fallthru
          _
      $region40: #{bert_forward.1} parent=5 // pred_fallthru
        _
      %p892 = scmp.le.s32.totalorder 1, %s52
      %p893 = scmp.lt.s32.totalorder %s52, 5
      %p894 = pnand %p892, %p893
      %p895 = pneg %p894
      // Predicated region
      $region97: #{bert_forward.1} parent=5 // pred_check
        _
      $region98: #{bert_forward.1} parent=5 // pred_check_branch
        %897 = sbr.rel (%p894) target = $region100
      $region99: #{bert_forward.1} parent=5 // pred_region
        %s898 = ssub.s32 %s52, 1
        // Predicated region
        $region101: #{bert_forward.1} parent=99 // pred_check
          %p899 = pneg %p111
        $region102: #{bert_forward.1} parent=99 // pred_check_branch
          %901 = sbr.rel (%p899) target = $region104
        $region103: #{bert_forward.1} parent=99 // pred_region
          %902 = dma.done [#allocation4], 1024
        $region104: #{bert_forward.1} parent=99 // pred_fallthru
          _
        // Predicated region
        $region105: #{bert_forward.1} parent=99 // pred_check
          %p903 = pneg %p153
        $region106: #{bert_forward.1} parent=99 // pred_check_branch
          %905 = sbr.rel (%p903) target = $region108
        $region107: #{bert_forward.1} parent=99 // pred_region
          %906 = dma.done [#allocation7], 16
        $region108: #{bert_forward.1} parent=99 // pred_fallthru
          _
        // Predicated region
        $region109: #{bert_forward.1} parent=99 // pred_check
          %p907 = pneg %p174
        $region110: #{bert_forward.1} parent=99 // pred_check_branch
          %909 = sbr.rel (%p907) target = $region112
        $region111: #{bert_forward.1} parent=99 // pred_region
          %910 = dma.done [#allocation7], 16
        $region112: #{bert_forward.1} parent=99 // pred_fallthru
          _
        %s911 = sand.u32 %s57, 1
        %s912 = scalar_lea.sflag [#allocation10], %s911
        %s913 = sand.u32 %s213, 1
        %s914 = smul.addr %s913, 192
        %s915 = scalar_lea.vmem [#allocation9], %s914
        // Predicated region
        $region113: #{bert_forward.1} parent=99 // pred_check
          %p916 = pneg %p226
        $region114: #{bert_forward.1} parent=99 // pred_check_branch
          %918 = sbr.rel (%p916) target = $region116
        $region115: #{bert_forward.1} parent=99 // pred_region
          %919 = dma.done %s912, 3072
        $region116: #{bert_forward.1} parent=99 // pred_fallthru
          _
        %s920 = sand.u32 %s57, 1
        %s921 = scalar_lea.sflag [#allocation10], %s920
        %s922 = sand.u32 %s265, 1
        %s923 = smul.addr %s922, 64
        %s924 = scalar_lea.vmem [#allocation11], %s923
        // Predicated region
        $region117: #{bert_forward.1} parent=99 // pred_check
          %p925 = pneg %p278
        $region118: #{bert_forward.1} parent=99 // pred_check_branch
          %927 = sbr.rel (%p925) target = $region120
        $region119: #{bert_forward.1} parent=99 // pred_region
          %928 = dma.done %s921, 1024
        $region120: #{bert_forward.1} parent=99 // pred_fallthru
          _
        %s929 = sand.u32 %s57, 1
        %s930 = scalar_lea.sflag [#allocation13], %s929
        %s931 = sand.u32 %s291, 1
        %s932 = scalar_lea.vmem [#allocation12], %s931
        // Predicated region
        $region121: #{bert_forward.1} parent=99 // pred_check
          %p933 = pneg %p304
        $region122: #{bert_forward.1} parent=99 // pred_check_branch
          %935 = sbr.rel (%p933) target = $region124
        $region123: #{bert_forward.1} parent=99 // pred_region
          %936 = dma.done %s930, 16
        $region124: #{bert_forward.1} parent=99 // pred_fallthru
          _
        %s937 = sand.u32 %s57, 1
        %s938 = scalar_lea.sflag [#allocation13], %s937
        %s939 = sand.u32 %s317, 1
        %s940 = scalar_lea.vmem [#allocation14], %s939
        // Predicated region
        $region125: #{bert_forward.1} parent=99 // pred_check
          %p941 = pneg %p330
        $region126: #{bert_forward.1} parent=99 // pred_check_branch
          %943 = sbr.rel (%p941) target = $region128
        $region127: #{bert_forward.1} parent=99 // pred_region
          %944 = dma.done %s938, 16
        $region128: #{bert_forward.1} parent=99 // pred_fallthru
          _
        %s945 = sand.u32 %s57, 1
        %s946 = scalar_lea.sflag [#allocation16], %s945
        %s947 = sand.u32 %s343, 1
        %s948 = scalar_lea.vmem [#allocation15], %s947
        // Predicated region
        $region129: #{bert_forward.1} parent=99 // pred_check
          %p949 = pneg %p356
        $region130: #{bert_forward.1} parent=99 // pred_check_branch
          %951 = sbr.rel (%p949) target = $region132
        $region131: #{bert_forward.1} parent=99 // pred_region
          %952 = dma.done %s946, 16
        $region132: #{bert_forward.1} parent=99 // pred_fallthru
          _
        %s953 = sand.u32 %s57, 1
        %s954 = scalar_lea.sflag [#allocation16], %s953
        %s955 = sand.u32 %s369, 1
        %s956 = smul.addr %s955, 256
        %s957 = scalar_lea.vmem [#allocation17], %s956
        // Predicated region
        $region133: #{bert_forward.1} parent=99 // pred_check
          %p958 = pneg %p382
        $region134: #{bert_forward.1} parent=99 // pred_check_branch
          %960 = sbr.rel (%p958) target = $region136
        $region135: #{bert_forward.1} parent=99 // pred_region
          %961 = dma.done %s954, 4096
        $region136: #{bert_forward.1} parent=99 // pred_fallthru
          _
        %s962 = sand.u32 %s57, 1
        %s963 = scalar_lea.sflag [#allocation19], %s962
        %s964 = sand.u32 %s421, 1
        %s965 = smul.addr %s964, 256
        %s966 = scalar_lea.vmem [#allocation18], %s965
        // Predicated region
        $region137: #{bert_forward.1} parent=99 // pred_check
          %p967 = pneg %p434
        $region138: #{bert_forward.1} parent=99 // pred_check_branch
          %969 = sbr.rel (%p967) target = $region140
        $region139: #{bert_forward.1} parent=99 // pred_region
          %970 = dma.done %s963, 4096
        $region140: #{bert_forward.1} parent=99 // pred_fallthru
          _
        %s971 = sand.u32 %s57, 1
        %s972 = scalar_lea.sflag [#allocation19], %s971
        %s973 = sand.u32 %s447, 1
        %s974 = scalar_lea.vmem [#allocation20], %s973
        // Predicated region
        $region141: #{bert_forward.1} parent=99 // pred_check
          %p975 = pneg %p460
        $region142: #{bert_forward.1} parent=99 // pred_check_branch
          %977 = sbr.rel (%p975) target = $region144
        $region143: #{bert_forward.1} parent=99 // pred_region
          %978 = dma.done %s972, 16
        $region144: #{bert_forward.1} parent=99 // pred_fallthru
          _
        %s979 = sand.u32 %s57, 1
        %s980 = scalar_lea.sflag [#allocation22], %s979
        %s981 = sand.u32 %s473, 1
        %s982 = scalar_lea.vmem [#allocation21], %s981
        // Predicated region
        $region145: #{bert_forward.1} parent=99 // pred_check
          %p983 = pneg %p486
        $region146: #{bert_forward.1} parent=99 // pred_check_branch
          %985 = sbr.rel (%p983) target = $region148
        $region147: #{bert_forward.1} parent=99 // pred_region
          %986 = dma.done %s980, 16
        $region148: #{bert_forward.1} parent=99 // pred_fallthru
          _
        %s987 = sand.u32 %s57, 1
        %s988 = scalar_lea.sflag [#allocation22], %s987
        %s989 = sand.u32 %s499, 1
        %s990 = scalar_lea.vmem [#allocation23], %s989
        // Predicated region
        $region149: #{bert_forward.1} parent=99 // pred_check
          %p991 = pneg %p512
        $region150: #{bert_forward.1} parent=99 // pred_check_branch
          %993 = sbr.rel (%p991) target = $region152
        $region151: #{bert_forward.1} parent=99 // pred_region
          %994 = dma.done %s988, 16
        $region152: #{bert_forward.1} parent=99 // pred_fallthru
          _
        // Predicated region
        $region153: #{bert_forward.1} parent=99 // pred_check
          %p995 = pneg %p533
        $region154: #{bert_forward.1} parent=99 // pred_check_branch
          %997 = sbr.rel (%p995) target = $region156
        $region155: #{bert_forward.1} parent=99 // pred_region
          %998 = dma.done [#allocation25], 1024
        $region156: #{bert_forward.1} parent=99 // pred_fallthru
          _
        %p999 = scmp.lt.s32.totalorder %s61, 1
        %s1000 = scalar_select %p999, %s61, 1
        %s1001 = smul.addr %s1000, 4
        %s1002 = scalar_lea.vmem %s0, %s1001
        %p1003 = pneg %p90
        %p1004 = pneg %p87
        %p1005 = pneg %p111
        %p1006 = pneg %p108
        %p1007 = pneg %p132
        %p1008 = pneg %p129
        %p1009 = pneg %p153
        %p1010 = pneg %p150
        %p1011 = pneg %p174
        %p1012 = pneg %p171
        %p1013 = scmp.lt.s32.totalorder %s61, 1
        %s1014 = scalar_select %p1013, %s61, 1
        %s1015 = scalar_lea.vmem %s5, %s1014
        %p1016 = pneg %p200
        %p1017 = pneg %p197
        %s1018 = sand.u32 %s57, 1
        %s1019 = scalar_lea.sflag [#allocation10], %s1018
        %s1020 = sand.u32 %s213, 1
        %s1021 = smul.addr %s1020, 192
        %s1022 = scalar_lea.vmem [#allocation9], %s1021
        %p1023 = pneg %p226
        %p1024 = pneg %p223
        %p1025 = scmp.lt.s32.totalorder %s62, 1
        %s1026 = scalar_select %p1025, %s62, 1
        %s1027 = smul.addr %s1026, 3
        %s1028 = scalar_lea.vmem %s7, %s1027
        %p1029 = pneg %p252
        %p1030 = pneg %p249
        %s1031 = sand.u32 %s57, 1
        %s1032 = scalar_lea.sflag [#allocation10], %s1031
        %s1033 = sand.u32 %s265, 1
        %s1034 = smul.addr %s1033, 64
        %s1035 = scalar_lea.vmem [#allocation11], %s1034
        %p1036 = pneg %p278
        %p1037 = pneg %p275
        %s1038 = sand.u32 %s57, 1
        %s1039 = scalar_lea.sflag [#allocation13], %s1038
        %s1040 = sand.u32 %s291, 1
        %s1041 = scalar_lea.vmem [#allocation12], %s1040
        %p1042 = pneg %p304
        %p1043 = pneg %p301
        %s1044 = sand.u32 %s57, 1
        %s1045 = scalar_lea.sflag [#allocation13], %s1044
        %s1046 = sand.u32 %s317, 1
        %s1047 = scalar_lea.vmem [#allocation14], %s1046
        %p1048 = pneg %p330
        %p1049 = pneg %p327
        %s1050 = sand.u32 %s57, 1
        %s1051 = scalar_lea.sflag [#allocation16], %s1050
        %s1052 = sand.u32 %s343, 1
        %s1053 = scalar_lea.vmem [#allocation15], %s1052
        %p1054 = pneg %p356
        %p1055 = pneg %p353
        %s1056 = sand.u32 %s57, 1
        %s1057 = scalar_lea.sflag [#allocation16], %s1056
        %s1058 = sand.u32 %s369, 1
        %s1059 = smul.addr %s1058, 256
        %s1060 = scalar_lea.vmem [#allocation17], %s1059
        %p1061 = pneg %p382
        %p1062 = pneg %p379
        %p1063 = scmp.lt.s32.totalorder %s62, 1
        %s1064 = scalar_select %p1063, %s62, 1
        %s1065 = smul.addr %s1064, 4
        %s1066 = scalar_lea.vmem %s13, %s1065
        %p1067 = pneg %p408
        %p1068 = pneg %p405
        %s1069 = sand.u32 %s57, 1
        %s1070 = scalar_lea.sflag [#allocation19], %s1069
        %s1071 = sand.u32 %s421, 1
        %s1072 = smul.addr %s1071, 256
        %s1073 = scalar_lea.vmem [#allocation18], %s1072
        %p1074 = pneg %p434
        %p1075 = pneg %p431
        %s1076 = sand.u32 %s57, 1
        %s1077 = scalar_lea.sflag [#allocation19], %s1076
        %s1078 = sand.u32 %s447, 1
        %s1079 = scalar_lea.vmem [#allocation20], %s1078
        %p1080 = pneg %p460
        %p1081 = pneg %p457
        %s1082 = sand.u32 %s57, 1
        %s1083 = scalar_lea.sflag [#allocation22], %s1082
        %s1084 = sand.u32 %s473, 1
        %s1085 = scalar_lea.vmem [#allocation21], %s1084
        %p1086 = pneg %p486
        %p1087 = pneg %p483
        %s1088 = sand.u32 %s57, 1
        %s1089 = scalar_lea.sflag [#allocation22], %s1088
        %s1090 = sand.u32 %s499, 1
        %s1091 = scalar_lea.vmem [#allocation23], %s1090
        %p1092 = pneg %p512
        %p1093 = pneg %p509
        %p1094 = pneg %p533
        %p1095 = pneg %p530
        %p1096 = pneg %p554
        %p1097 = pneg %p551
        %p1098 = pneg %p580
        %p1099 = pneg %p577
        %s1100 = sand.u32 %s567, 1
        %s1101 = scalar_lea.sflag [#allocation5], %s1100
        %s1102 = sand.u32 %s567, 1
        %s1103 = smul.addr %s1102, 8
        %s1104 = scalar_lea.vmem [#allocation26], %s1103
        %p1105 = pneg %p606
        %p1106 = pneg %p603
        %s1107 = sand.u32 %s593, 1
        %s1108 = scalar_lea.sflag [#allocation28], %s1107
        %s1109 = sand.u32 %s593, 1
        %s1110 = scalar_lea.vmem [#allocation27], %s1109
        %p1111 = scmp.lt.s32.totalorder %s61, 1
        %s1112 = scalar_select %p1111, %s61, 1
        %s1113 = smul.addr %s1112, 4
        %s1114 = scalar_lea.vmem %s0, %s1113
        %p1115 = scmp.lt.s32.totalorder %s61, 1
        %s1116 = scalar_select %p1115, %s61, 1
        %s1117 = scalar_lea.vmem %s5, %s1116
        %p1118 = scmp.lt.s32.totalorder %s62, 1
        %s1119 = scalar_select %p1118, %s62, 1
        %s1120 = smul.addr %s1119, 3
        %s1121 = scalar_lea.vmem %s7, %s1120
        %p1122 = scmp.lt.s32.totalorder %s62, 1
        %s1123 = scalar_select %p1122, %s62, 1
        %s1124 = smul.addr %s1123, 4
        %s1125 = scalar_lea.vmem %s13, %s1124
        %p1127 = scmp.eq.s32.totalorder %s62, 0
        // Predicated region
        $region157: #{bert_forward.1} parent=99 // pred_check
          %p1128 = pneg %p1127
        $region158: #{bert_forward.1} parent=99 // pred_check_branch
          %1130 = sbr.rel (%p1128) target = $region160
        $region159: #{bert_forward.1} parent=99 // pred_region
          %v1131 = vld [vmem:[%s1114] sm:$0xf]
          %v1132 = vld [vmem:[#allocation3] sm:$0xf]
          %v1133 = vld [vmem:[#allocation3 + $0x4] sm:$0xf]
          %v1134 = vld [vmem:[#allocation3 + $0x8] sm:$0xf]
          %v1135 = vld [vmem:[#allocation3 + $0xc] sm:$0xf]
          %v1136 = vld [vmem:[#allocation3 + $0x10] sm:$0xf]
          %v1137 = vld [vmem:[#allocation3 + $0x14] sm:$0xf]
          %v1138 = vld [vmem:[#allocation3 + $0x18] sm:$0xf]
          %v1139 = vld [vmem:[#allocation3 + $0x1c] sm:$0xf]
          %v1140 = vld [vmem:[#allocation3 + $0x20] sm:$0xf]
          %v1141 = vld [vmem:[#allocation3 + $0x24] sm:$0xf]
          %v1142 = vld [vmem:[#allocation3 + $0x28] sm:$0xf]
          %v1143 = vld [vmem:[#allocation3 + $0x2c] sm:$0xf]
          %v1144 = vld [vmem:[#allocation3 + $0x30] sm:$0xf]
          %v1145 = vld [vmem:[#allocation3 + $0x34] sm:$0xf]
          %v1146 = vld [vmem:[#allocation3 + $0x38] sm:$0xf]
          %v1147 = vld [vmem:[#allocation3 + $0x3c] sm:$0xf]
          %v1148 = vld [vmem:[%s2] sm:$0xff]
          %v1165 = vunpack.c.l.b16 %v1132
          %v1166 = vunpack.c.l.b16 %v1133
          %v1167 = vunpack.c.l.b16 %v1134
          %v1168 = vunpack.c.l.b16 %v1135
          %v1169 = vunpack.c.l.b16 %v1136
          %v1170 = vunpack.c.l.b16 %v1137
          %v1171 = vunpack.c.l.b16 %v1138
          %v1172 = vunpack.c.l.b16 %v1139
          %v1173 = vunpack.c.l.b16 %v1140
          %v1174 = vunpack.c.l.b16 %v1141
          %v1175 = vunpack.c.l.b16 %v1142
          %v1176 = vunpack.c.l.b16 %v1143
          %v1177 = vunpack.c.l.b16 %v1144
          %v1178 = vunpack.c.l.b16 %v1145
          %v1179 = vunpack.c.l.b16 %v1146
          %v1180 = vunpack.c.l.b16 %v1147
          %v1181 = vpack.c.b16 %v1166, %v1165
          %v1182 = vpack.c.b16 %v1168, %v1167
          %v1183 = vpack.c.b16 %v1170, %v1169
          %v1184 = vpack.c.b16 %v1172, %v1171
          %v1185 = vpack.c.b16 %v1174, %v1173
          %v1186 = vpack.c.b16 %v1176, %v1175
          %v1187 = vpack.c.b16 %v1178, %v1177
          %v1188 = vpack.c.b16 %v1180, %v1179
          %1197 = vmatprep.subr.bf16.mxu0 0
          %1198 = vmatpush1.bf16.msra.mxu0 %v1188
          %1199 = vmatprep.subr.bf16.mxu0 0
          %1200 = vmatpush1.bf16.msra.mxu0 %v1187
          %1201 = vmatprep.subr.bf16.mxu0 0
          %1202 = vmatpush1.bf16.msra.mxu0 %v1186
          %1203 = vmatprep.subr.bf16.mxu0 0
          %1204 = vmatpush1.bf16.msra.mxu0 %v1185
          %1205 = vmatprep.subr.bf16.mxu0 0
          %1206 = vmatpush1.bf16.msra.mxu0 %v1184
          %1207 = vmatprep.subr.bf16.mxu0 0
          %1208 = vmatpush1.bf16.msra.mxu0 %v1183
          %1209 = vmatprep.subr.bf16.mxu0 0
          %1210 = vmatpush1.bf16.msra.mxu0 %v1182
          %1211 = vmatprep.subr.bf16.mxu0 0
          %1212 = vmatpush1.bf16.msra.mxu0 %v1181
          %1213 = vmatprep.subr.bf16.mxu0 0
          %1214 = vmatpush2.bf16.msra.mxu0 0
          %1215 = vmatprep.subr.bf16.mxu0 0
          %1216 = vmatpush2.bf16.msra.mxu0 0
          %1217 = vmatprep.subr.bf16.mxu0 0
          %1218 = vmatpush2.bf16.msra.mxu0 0
          %1219 = vmatprep.subr.bf16.mxu0 0
          %1220 = vmatpush2.bf16.msra.mxu0 0
          %1221 = vmatprep.subr.bf16.mxu0 0
          %1222 = vmatpush2.bf16.msra.mxu0 0
          %1223 = vmatprep.subr.bf16.mxu0 0
          %1224 = vmatpush2.bf16.msra.mxu0 0
          %1225 = vmatprep.subr.bf16.mxu0 0
          %1226 = vmatpush2.bf16.msra.mxu0 0
          %1227 = vmatprep.subr.bf16.mxu0 0
          %1228 = vmatpush2.bf16.msra.mxu0 0
          %1229 = vmatprep.mubr.bf16.mxu0 0
          %1230 = vmatmul.mubr.bf16.gmra.mxu0 %v1131
          %v1231 = vpop.f32.mrf.mxu0
          %v1232 = vadd.f32 %v1148, %v1231
          %v1233 = vpop.f32.mrf.mxu0
          %v1234 = vpop.f32.mrf.mxu0
          %v1235 = vpop.f32.mrf.mxu0
          %1236 = vdwg.mxu0
          %v1237 = vld [vmem:[#allocation6] sm:$0x1]
          %v1238 = vld [vmem:[#allocation8] sm:$0x1]
          %1239 = vadd.xlane.f32.xlu0 %v1232
          %v1240 = vpop.xlane.xlu0 %1239
          %v1241 = vrcp.pop 128.0
          %v1242 = vmul.f32 %v1240, %v1241
          %v1243 = vsub.f32 %v1232, %v1242
          %v1244 = vmul.f32 %v1243, %v1243
          %1245 = vadd.xlane.f32.xlu0 %v1244
          %v1246 = vpop.xlane.xlu0 %1245
          %v1247 = vmul.f32 %v1246, %v1241
          %v1248 = vadd.f32 %v1247, 1e-12
          %v1249 = vrsqrt.pop %v1248
          %v1250 = vmul.f32 %v1243, %v1249
          %v1252 = vlaneseq
          %v1253 = vshrl.u32 %v1252, 7
          %v1254 = vsub.s32 0, %v1253
          %v1255 = vrot.slane %v1237, %v1254
          %v1257 = vmul.f32 %v1250, %v1255
          %v1259 = vlaneseq
          %v1260 = vshrl.u32 %v1259, 7
          %v1261 = vsub.s32 0, %v1260
          %v1262 = vrot.slane %v1238, %v1261
          %v1264 = vadd.f32 %v1257, %v1262
          %1265 = vst [vmem:[#allocation2] sm:$0xff] %v1264
        $region160: #{bert_forward.1} parent=99 // pred_fallthru
          _
        %v1266 = vld [vmem:[#allocation2] sm:$0xff]
        %v1267 = vld [vmem:[%s1117] sm:$0x1]
        %vm1268 = vcmp.eq.s32.totalorder %v1267, 0
        %v1269 = vsel %vm1268, -10000.0, 0.0
        %v1270 = vpack.c.bf16 %v1266, %v1266
        %v1271 = vld [vmem:[%s915] sm:$0xff]
        %v1272 = vld [vmem:[%s915 + $0x8] sm:$0xf]
        %v1273 = vld [vmem:[%s915 + $0xc] sm:$0xff]
        %v1274 = vld [vmem:[%s915 + $0x14] sm:$0xf]
        %v1275 = vld [vmem:[%s915 + $0x18] sm:$0xff]
        %v1276 = vld [vmem:[%s915 + $0x20] sm:$0xf]
        %v1277 = vld [vmem:[%s915 + $0x24] sm:$0xff]
        %v1278 = vld [vmem:[%s915 + $0x2c] sm:$0xf]
        %v1279 = vld [vmem:[%s915 + $0x30] sm:$0xff]
        %v1280 = vld [vmem:[%s915 + $0x38] sm:$0xf]
        %v1281 = vld [vmem:[%s915 + $0x3c] sm:$0xff]
        %v1282 = vld [vmem:[%s915 + $0x44] sm:$0xf]
        %v1283 = vld [vmem:[%s915 + $0x48] sm:$0xff]
        %v1284 = vld [vmem:[%s915 + $0x50] sm:$0xf]
        %v1285 = vld [vmem:[%s915 + $0x54] sm:$0xff]
        %v1286 = vld [vmem:[%s915 + $0x5c] sm:$0xf]
        %v1287 = vld [vmem:[%s915 + $0x60] sm:$0xff]
        %v1288 = vld [vmem:[%s915 + $0x68] sm:$0xf]
        %v1289 = vld [vmem:[%s915 + $0x6c] sm:$0xff]
        %v1290 = vld [vmem:[%s915 + $0x74] sm:$0xf]
        %v1291 = vld [vmem:[%s915 + $0x78] sm:$0xff]
        %v1292 = vld [vmem:[%s915 + $0x80] sm:$0xf]
        %v1293 = vld [vmem:[%s915 + $0x84] sm:$0xff]
        %v1294 = vld [vmem:[%s915 + $0x8c] sm:$0xf]
        %v1295 = vld [vmem:[%s915 + $0x90] sm:$0xff]
        %v1296 = vld [vmem:[%s915 + $0x98] sm:$0xf]
        %v1297 = vld [vmem:[%s915 + $0x9c] sm:$0xff]
        %v1298 = vld [vmem:[%s915 + $0xa4] sm:$0xf]
        %v1299 = vld [vmem:[%s915 + $0xa8] sm:$0xff]
        %v1300 = vld [vmem:[%s915 + $0xb0] sm:$0xf]
        %v1301 = vld [vmem:[%s915 + $0xb4] sm:$0xff]
        %v1302 = vld [vmem:[%s915 + $0xbc] sm:$0xf]
        %v1303 = vld [vmem:[%s1121] sm:$0x7]
        %v1305 = vlaneseq
        %v1306 = vshrl.u32 %v1305, 7
        %v1307 = vsub.s32 0, %v1306
        %v1308 = vrot.slane %v1303, %v1307
        %v1309 = vlaneseq
        %v1310 = vshrl.u32 %v1309, 7
        %v1311 = vsub.s32 1, %v1310
        %v1312 = vrot.slane %v1303, %v1311
        %v1313 = vlaneseq
        %v1314 = vshrl.u32 %v1313, 7
        %v1315 = vsub.s32 2, %v1314
        %v1316 = vrot.slane %v1303, %v1315
        %v1352 = vunpack.c.l.b16 %v1271
        %v1353 = vunpack.c.h.b16 %v1271
        %v1354 = vunpack.c.l.b16 %v1272
        %v1355 = vunpack.c.l.b16 %v1273
        %v1356 = vunpack.c.h.b16 %v1273
        %v1357 = vunpack.c.l.b16 %v1274
        %v1358 = vunpack.c.l.b16 %v1275
        %v1359 = vunpack.c.h.b16 %v1275
        %v1360 = vunpack.c.l.b16 %v1276
        %v1361 = vunpack.c.l.b16 %v1277
        %v1362 = vunpack.c.h.b16 %v1277
        %v1363 = vunpack.c.l.b16 %v1278
        %v1364 = vunpack.c.l.b16 %v1279
        %v1365 = vunpack.c.h.b16 %v1279
        %v1366 = vunpack.c.l.b16 %v1280
        %v1367 = vunpack.c.l.b16 %v1281
        %v1368 = vunpack.c.h.b16 %v1281
        %v1369 = vunpack.c.l.b16 %v1282
        %v1370 = vunpack.c.l.b16 %v1283
        %v1371 = vunpack.c.h.b16 %v1283
        %v1372 = vunpack.c.l.b16 %v1284
        %v1373 = vunpack.c.l.b16 %v1285
        %v1374 = vunpack.c.h.b16 %v1285
        %v1375 = vunpack.c.l.b16 %v1286
        %v1376 = vunpack.c.l.b16 %v1287
        %v1377 = vunpack.c.h.b16 %v1287
        %v1378 = vunpack.c.l.b16 %v1288
        %v1379 = vunpack.c.l.b16 %v1289
        %v1380 = vunpack.c.h.b16 %v1289
        %v1381 = vunpack.c.l.b16 %v1290
        %v1382 = vunpack.c.l.b16 %v1291
        %v1383 = vunpack.c.h.b16 %v1291
        %v1384 = vunpack.c.l.b16 %v1292
        %v1385 = vunpack.c.l.b16 %v1293
        %v1386 = vunpack.c.h.b16 %v1293
        %v1387 = vunpack.c.l.b16 %v1294
        %v1388 = vunpack.c.l.b16 %v1295
        %v1389 = vunpack.c.h.b16 %v1295
        %v1390 = vunpack.c.l.b16 %v1296
        %v1391 = vunpack.c.l.b16 %v1297
        %v1392 = vunpack.c.h.b16 %v1297
        %v1393 = vunpack.c.l.b16 %v1298
        %v1394 = vunpack.c.l.b16 %v1299
        %v1395 = vunpack.c.h.b16 %v1299
        %v1396 = vunpack.c.l.b16 %v1300
        %v1397 = vunpack.c.l.b16 %v1301
        %v1398 = vunpack.c.h.b16 %v1301
        %v1399 = vunpack.c.l.b16 %v1302
        %v1400 = vpack.c.b16 %v1355, %v1352
        %v1401 = vpack.c.b16 %v1356, %v1353
        %v1402 = vpack.c.b16 %v1357, %v1354
        %v1403 = vpack.c.b16 %v1361, %v1358
        %v1404 = vpack.c.b16 %v1362, %v1359
        %v1405 = vpack.c.b16 %v1363, %v1360
        %v1406 = vpack.c.b16 %v1367, %v1364
        %v1407 = vpack.c.b16 %v1368, %v1365
        %v1408 = vpack.c.b16 %v1369, %v1366
        %v1409 = vpack.c.b16 %v1373, %v1370
        %v1410 = vpack.c.b16 %v1374, %v1371
        %v1411 = vpack.c.b16 %v1375, %v1372
        %v1412 = vpack.c.b16 %v1379, %v1376
        %v1413 = vpack.c.b16 %v1380, %v1377
        %v1414 = vpack.c.b16 %v1381, %v1378
        %v1415 = vpack.c.b16 %v1385, %v1382
        %v1416 = vpack.c.b16 %v1386, %v1383
        %v1417 = vpack.c.b16 %v1387, %v1384
        %v1418 = vpack.c.b16 %v1391, %v1388
        %v1419 = vpack.c.b16 %v1392, %v1389
        %v1420 = vpack.c.b16 %v1393, %v1390
        %v1421 = vpack.c.b16 %v1397, %v1394
        %v1422 = vpack.c.b16 %v1398, %v1395
        %v1423 = vpack.c.b16 %v1399, %v1396
        %1448 = vmatprep.subr.bf16.mxu0 %v1422
        %1449 = vmatpush1.bf16.msra.mxu0 %v1421
        %1450 = vmatprep.subr.bf16.mxu0 %v1419
        %1451 = vmatpush1.bf16.msra.mxu0 %v1418
        %1452 = vmatprep.subr.bf16.mxu0 %v1416
        %1453 = vmatpush1.bf16.msra.mxu0 %v1415
        %1454 = vmatprep.subr.bf16.mxu0 %v1413
        %1455 = vmatpush1.bf16.msra.mxu0 %v1412
        %1456 = vmatprep.subr.bf16.mxu0 %v1410
        %1457 = vmatpush1.bf16.msra.mxu0 %v1409
        %1458 = vmatprep.subr.bf16.mxu0 %v1407
        %1459 = vmatpush1.bf16.msra.mxu0 %v1406
        %1460 = vmatprep.subr.bf16.mxu0 %v1404
        %1461 = vmatpush1.bf16.msra.mxu0 %v1403
        %1462 = vmatprep.subr.bf16.mxu0 %v1401
        %1463 = vmatpush1.bf16.msra.mxu0 %v1400
        %1464 = vmatprep.subr.bf16.mxu0 0
        %1465 = vmatpush2.bf16.msra.mxu0 0
        %1466 = vmatprep.subr.bf16.mxu0 0
        %1467 = vmatpush2.bf16.msra.mxu0 0
        %1468 = vmatprep.subr.bf16.mxu0 0
        %1469 = vmatpush2.bf16.msra.mxu0 0
        %1470 = vmatprep.subr.bf16.mxu0 0
        %1471 = vmatpush2.bf16.msra.mxu0 0
        %1472 = vmatprep.subr.bf16.mxu0 0
        %1473 = vmatpush2.bf16.msra.mxu0 0
        %1474 = vmatprep.subr.bf16.mxu0 0
        %1475 = vmatpush2.bf16.msra.mxu0 0
        %1476 = vmatprep.subr.bf16.mxu0 0
        %1477 = vmatpush2.bf16.msra.mxu0 0
        %1478 = vmatprep.subr.bf16.mxu0 0
        %1479 = vmatpush2.bf16.msra.mxu0 0
        %1480 = vmatprep.mubr.bf16.mxu0 0
        %1481 = vmatmul.mubr.bf16.gmra.mxu0 %v1270
        %v1482 = vpop.f32.mrf.mxu0
        %v1483 = vadd.f32 %v1308, %v1482
        %v1484 = vpop.f32.mrf.mxu0
        %v1485 = vadd.f32 %v1312, %v1484
        %v1486 = vpop.f32.mrf.mxu0
        %v1487 = vpop.f32.mrf.mxu0
        %1488 = vdwg.mxu0
        %1489 = vmatprep.subr.bf16.mxu0 0
        %1490 = vmatpush1.bf16.msra.mxu0 %v1423
        %1491 = vmatprep.subr.bf16.mxu0 0
        %1492 = vmatpush1.bf16.msra.mxu0 %v1420
        %1493 = vmatprep.subr.bf16.mxu0 0
        %1494 = vmatpush1.bf16.msra.mxu0 %v1417
        %1495 = vmatprep.subr.bf16.mxu0 0
        %1496 = vmatpush1.bf16.msra.mxu0 %v1414
        %1497 = vmatprep.subr.bf16.mxu0 0
        %1498 = vmatpush1.bf16.msra.mxu0 %v1411
        %1499 = vmatprep.subr.bf16.mxu0 0
        %1500 = vmatpush1.bf16.msra.mxu0 %v1408
        %1501 = vmatprep.subr.bf16.mxu0 0
        %1502 = vmatpush1.bf16.msra.mxu0 %v1405
        %1503 = vmatprep.subr.bf16.mxu0 0
        %1504 = vmatpush1.bf16.msra.mxu0 %v1402
        %1505 = vmatprep.subr.bf16.mxu0 0
        %1506 = vmatpush2.bf16.msra.mxu0 0
        %1507 = vmatprep.subr.bf16.mxu0 0
        %1508 = vmatpush2.bf16.msra.mxu0 0
        %1509 = vmatprep.subr.bf16.mxu0 0
        %1510 = vmatpush2.bf16.msra.mxu0 0
        %1511 = vmatprep.subr.bf16.mxu0 0
        %1512 = vmatpush2.bf16.msra.mxu0 0
        %1513 = vmatprep.subr.bf16.mxu0 0
        %1514 = vmatpush2.bf16.msra.mxu0 0
        %1515 = vmatprep.subr.bf16.mxu0 0
        %1516 = vmatpush2.bf16.msra.mxu0 0
        %1517 = vmatprep.subr.bf16.mxu0 0
        %1518 = vmatpush2.bf16.msra.mxu0 0
        %1519 = vmatprep.subr.bf16.mxu0 0
        %1520 = vmatpush2.bf16.msra.mxu0 0
        %1521 = vmatprep.mubr.bf16.mxu0 0
        %1522 = vmatmul.mubr.bf16.gmra.mxu0 %v1270
        %v1523 = vpop.f32.mrf.mxu0
        %v1524 = vadd.f32 %v1316, %v1523
        %v1525 = vpop.f32.mrf.mxu0
        %v1526 = vpop.f32.mrf.mxu0
        %v1527 = vpop.f32.mrf.mxu0
        %1528 = vdwg.mxu0
        %v1529 = vpack.c.bf16 %v1483, %v1483
        %v1530 = vpack.c.bf16 %v1485, %v1485
        %v1532 = vlaneseq
        %v1533 = vshrl.u32 %v1532, 7
        %v1534 = vsub.s32 0, %v1533
        %v1535 = vrot.slane %v1269, %v1534
        %vm1537 = vcmask 523264
        %v1539 = vsel %vm1537, %v1529, 0
        %v1542 = vsel %vm1537, %v1530, 0
        %1544 = vmatprep.subr.bf16.mxu0 0
        %1545 = vmatpush1.bf16.xpose.msra.mxu0 0
        %1546 = vmatprep.subr.bf16.mxu0 0
        %1547 = vmatpush1.bf16.xpose.msra.mxu0 0
        %1548 = vmatprep.subr.bf16.mxu0 0
        %1549 = vmatpush1.bf16.xpose.msra.mxu0 0
        %1550 = vmatprep.subr.bf16.mxu0 0
        %1551 = vmatpush1.bf16.xpose.msra.mxu0 0
        %1552 = vmatprep.subr.bf16.mxu0 0
        %1553 = vmatpush1.bf16.xpose.msra.mxu0 0
        %1554 = vmatprep.subr.bf16.mxu0 0
        %1555 = vmatpush1.bf16.xpose.msra.mxu0 0
        %1556 = vmatprep.subr.bf16.mxu0 0
        %1557 = vmatpush1.bf16.xpose.msra.mxu0 0
        %1558 = vmatprep.subr.bf16.mxu0 0
        %1559 = vmatpush1.bf16.xpose.msra.mxu0 %v1542
        %1560 = vmatprep.subr.bf16.mxu0 0
        %1561 = vmatpush2.bf16.xpose.msra.mxu0 0
        %1562 = vmatprep.subr.bf16.mxu0 0
        %1563 = vmatpush2.bf16.xpose.msra.mxu0 0
        %1564 = vmatprep.subr.bf16.mxu0 0
        %1565 = vmatpush2.bf16.xpose.msra.mxu0 0
        %1566 = vmatprep.subr.bf16.mxu0 0
        %1567 = vmatpush2.bf16.xpose.msra.mxu0 0
        %1568 = vmatprep.subr.bf16.mxu0 0
        %1569 = vmatpush2.bf16.xpose.msra.mxu0 0
        %1570 = vmatprep.subr.bf16.mxu0 0
        %1571 = vmatpush2.bf16.xpose.msra.mxu0 0
        %1572 = vmatprep.subr.bf16.mxu0 0
        %1573 = vmatpush2.bf16.xpose.msra.mxu0 0
        %1574 = vmatprep.subr.bf16.mxu0 0
        %1575 = vmatpush2.bf16.xpose.msra.mxu0 0
        %1576 = vmatprep.mubr.bf16.mxu0 0
        %1577 = vmatmul.mubr.bf16.gmra.mxu0 %v1539
        %v1578 = vpop.f32.mrf.mxu0
        %v1579 = vadd.f32 %v1535, %v1578
        %v1580 = vpop.f32.mrf.mxu0
        %v1581 = vpop.f32.mrf.mxu0
        %v1582 = vpop.f32.mrf.mxu0
        %1583 = vdwg.mxu0
        %vm1584 = vcmask 64512
        %v1585 = vsel %vm1584, %v1579, -inf
        %1586 = vmax.xlane.f32.xlu0 %v1585
        %v1587 = vpop.xlane.xlu0 %1586
        %v1588 = vsub.f32 %v1579, %v1587
        %v1589 = vmul.f32 %v1588, 1.442695
        %v1590 = vpow.pop %v1589
        %v1591 = vsel %vm1584, %v1590, 0.0
        %1592 = vadd.xlane.f32.xlu0 %v1591
        %v1593 = vpop.xlane.xlu0 %1592
        %v1594 = vrcp.pop %v1593
        %v1595 = vmul.f32 %v1590, %v1594
        %v1596 = vpack.c.bf16 %v1595, %v1595
        %v1597 = vpack.c.bf16 %v1524, %v1524
        %v1599 = vsel %vm1584, %v1596, 0
        %vm1601 = vcmask 1043456
        %v1603 = vsel %vm1601, %v1597, 0
        %1605 = vmatprep.subr.bf16.mxu0 0
        %1606 = vmatpush1.bf16.msra.mxu0 0
        %1607 = vmatprep.subr.bf16.mxu0 0
        %1608 = vmatpush1.bf16.msra.mxu0 0
        %1609 = vmatprep.subr.bf16.mxu0 0
        %1610 = vmatpush1.bf16.msra.mxu0 0
        %1611 = vmatprep.subr.bf16.mxu0 0
        %1612 = vmatpush1.bf16.msra.mxu0 0
        %1613 = vmatprep.subr.bf16.mxu0 0
        %1614 = vmatpush1.bf16.msra.mxu0 0
        %1615 = vmatprep.subr.bf16.mxu0 0
        %1616 = vmatpush1.bf16.msra.mxu0 0
        %1617 = vmatprep.subr.bf16.mxu0 0
        %1618 = vmatpush1.bf16.msra.mxu0 0
        %1619 = vmatprep.subr.bf16.mxu0 0
        %1620 = vmatpush1.bf16.msra.mxu0 %v1603
        %1621 = vmatprep.subr.bf16.mxu0 0
        %1622 = vmatpush2.bf16.msra.mxu0 0
        %1623 = vmatprep.subr.bf16.mxu0 0
        %1624 = vmatpush2.bf16.msra.mxu0 0
        %1625 = vmatprep.subr.bf16.mxu0 0
        %1626 = vmatpush2.bf16.msra.mxu0 0
        %1627 = vmatprep.subr.bf16.mxu0 0
        %1628 = vmatpush2.bf16.msra.mxu0 0
        %1629 = vmatprep.subr.bf16.mxu0 0
        %1630 = vmatpush2.bf16.msra.mxu0 0
        %1631 = vmatprep.subr.bf16.mxu0 0
        %1632 = vmatpush2.bf16.msra.mxu0 0
        %1633 = vmatprep.subr.bf16.mxu0 0
        %1634 = vmatpush2.bf16.msra.mxu0 0
        %1635 = vmatprep.subr.bf16.mxu0 0
        %1636 = vmatpush2.bf16.msra.mxu0 0
        %1637 = vmatprep.mubr.bf16.mxu0 0
        %1638 = vmatmul.mubr.bf16.gmra.mxu0 %v1599
        %v1639 = vpop.f32.mrf.mxu0
        %v1640 = vadd.f32 0.0, %v1639
        %v1641 = vpop.f32.mrf.mxu0
        %v1642 = vpop.f32.mrf.mxu0
        %v1643 = vpop.f32.mrf.mxu0
        %1644 = vdwg.mxu0
        %1646 = vrot.lane.b32.xlu0 %v1529, 64
        %v1647 = vpop.permute.xlu0 %1646
        %1649 = vrot.lane.b32.xlu0 %v1530, 64
        %v1650 = vpop.permute.xlu0 %1649
        %v1652 = vsel %vm1537, %v1647, 0
        %v1655 = vsel %vm1537, %v1650, 0
        %1657 = vmatprep.subr.bf16.mxu0 0
        %1658 = vmatpush1.bf16.xpose.msra.mxu0 0
        %1659 = vmatprep.subr.bf16.mxu0 0
        %1660 = vmatpush1.bf16.xpose.msra.mxu0 0
        %1661 = vmatprep.subr.bf16.mxu0 0
        %1662 = vmatpush1.bf16.xpose.msra.mxu0 0
        %1663 = vmatprep.subr.bf16.mxu0 0
        %1664 = vmatpush1.bf16.xpose.msra.mxu0 0
        %1665 = vmatprep.subr.bf16.mxu0 0
        %1666 = vmatpush1.bf16.xpose.msra.mxu0 0
        %1667 = vmatprep.subr.bf16.mxu0 0
        %1668 = vmatpush1.bf16.xpose.msra.mxu0 0
        %1669 = vmatprep.subr.bf16.mxu0 0
        %1670 = vmatpush1.bf16.xpose.msra.mxu0 0
        %1671 = vmatprep.subr.bf16.mxu0 0
        %1672 = vmatpush1.bf16.xpose.msra.mxu0 %v1655
        %1673 = vmatprep.subr.bf16.mxu0 0
        %1674 = vmatpush2.bf16.xpose.msra.mxu0 0
        %1675 = vmatprep.subr.bf16.mxu0 0
        %1676 = vmatpush2.bf16.xpose.msra.mxu0 0
        %1677 = vmatprep.subr.bf16.mxu0 0
        %1678 = vmatpush2.bf16.xpose.msra.mxu0 0
        %1679 = vmatprep.subr.bf16.mxu0 0
        %1680 = vmatpush2.bf16.xpose.msra.mxu0 0
        %1681 = vmatprep.subr.bf16.mxu0 0
        %1682 = vmatpush2.bf16.xpose.msra.mxu0 0
        %1683 = vmatprep.subr.bf16.mxu0 0
        %1684 = vmatpush2.bf16.xpose.msra.mxu0 0
        %1685 = vmatprep.subr.bf16.mxu0 0
        %1686 = vmatpush2.bf16.xpose.msra.mxu0 0
        %1687 = vmatprep.subr.bf16.mxu0 0
        %1688 = vmatpush2.bf16.xpose.msra.mxu0 0
        %1689 = vmatprep.mubr.bf16.mxu0 0
        %1690 = vmatmul.mubr.bf16.gmra.mxu0 %v1652
        %v1691 = vpop.f32.mrf.mxu0
        %v1692 = vadd.f32 %v1535, %v1691
        %v1693 = vpop.f32.mrf.mxu0
        %v1694 = vpop.f32.mrf.mxu0
        %v1695 = vpop.f32.mrf.mxu0
        %1696 = vdwg.mxu0
        %v1697 = vsel %vm1584, %v1692, -inf
        %1698 = vmax.xlane.f32.xlu0 %v1697
        %v1699 = vpop.xlane.xlu0 %1698
        %v1700 = vsub.f32 %v1692, %v1699
        %v1701 = vmul.f32 %v1700, 1.442695
        %v1702 = vpow.pop %v1701
        %v1703 = vsel %vm1584, %v1702, 0.0
        %1704 = vadd.xlane.f32.xlu0 %v1703
        %v1705 = vpop.xlane.xlu0 %1704
        %v1706 = vrcp.pop %v1705
        %v1707 = vmul.f32 %v1702, %v1706
        %v1708 = vpack.c.bf16 %v1707, %v1707
        %1710 = vrot.lane.b32.xlu0 %v1597, 64
        %v1711 = vpop.permute.xlu0 %1710
        %v1713 = vsel %vm1584, %v1708, 0
        %v1716 = vsel %vm1601, %v1711, 0
        %1718 = vmatprep.subr.bf16.mxu0 0
        %1719 = vmatpush1.bf16.msra.mxu0 0
        %1720 = vmatprep.subr.bf16.mxu0 0
        %1721 = vmatpush1.bf16.msra.mxu0 0
        %1722 = vmatprep.subr.bf16.mxu0 0
        %1723 = vmatpush1.bf16.msra.mxu0 0
        %1724 = vmatprep.subr.bf16.mxu0 0
        %1725 = vmatpush1.bf16.msra.mxu0 0
        %1726 = vmatprep.subr.bf16.mxu0 0
        %1727 = vmatpush1.bf16.msra.mxu0 0
        %1728 = vmatprep.subr.bf16.mxu0 0
        %1729 = vmatpush1.bf16.msra.mxu0 0
        %1730 = vmatprep.subr.bf16.mxu0 0
        %1731 = vmatpush1.bf16.msra.mxu0 0
        %1732 = vmatprep.subr.bf16.mxu0 0
        %1733 = vmatpush1.bf16.msra.mxu0 %v1716
        %1734 = vmatprep.subr.bf16.mxu0 0
        %1735 = vmatpush2.bf16.msra.mxu0 0
        %1736 = vmatprep.subr.bf16.mxu0 0
        %1737 = vmatpush2.bf16.msra.mxu0 0
        %1738 = vmatprep.subr.bf16.mxu0 0
        %1739 = vmatpush2.bf16.msra.mxu0 0
        %1740 = vmatprep.subr.bf16.mxu0 0
        %1741 = vmatpush2.bf16.msra.mxu0 0
        %1742 = vmatprep.subr.bf16.mxu0 0
        %1743 = vmatpush2.bf16.msra.mxu0 0
        %1744 = vmatprep.subr.bf16.mxu0 0
        %1745 = vmatpush2.bf16.msra.mxu0 0
        %1746 = vmatprep.subr.bf16.mxu0 0
        %1747 = vmatpush2.bf16.msra.mxu0 0
        %1748 = vmatprep.subr.bf16.mxu0 0
        %1749 = vmatpush2.bf16.msra.mxu0 0
        %1750 = vmatprep.mubr.bf16.mxu0 0
        %1751 = vmatmul.mubr.bf16.gmra.mxu0 %v1713
        %v1752 = vpop.f32.mrf.mxu0
        %v1753 = vadd.f32 0.0, %v1752
        %v1754 = vpop.f32.mrf.mxu0
        %v1755 = vpop.f32.mrf.mxu0
        %v1756 = vpop.f32.mrf.mxu0
        %1757 = vdwg.mxu0
        %1759 = vrot.lane.b32.xlu0 %v1753, 64
        %v1760 = vpop.permute.xlu0 %1759
        %v1762 = vsel %vm1537, %v1640, %v1760
        %v1763 = vpack.c.bf16 %v1762, %v1762
        %v1764 = vld [vmem:[%s924] sm:$0xf]
        %v1765 = vld [vmem:[%s924 + $0x4] sm:$0xf]
        %v1766 = vld [vmem:[%s924 + $0x8] sm:$0xf]
        %v1767 = vld [vmem:[%s924 + $0xc] sm:$0xf]
        %v1768 = vld [vmem:[%s924 + $0x10] sm:$0xf]
        %v1769 = vld [vmem:[%s924 + $0x14] sm:$0xf]
        %v1770 = vld [vmem:[%s924 + $0x18] sm:$0xf]
        %v1771 = vld [vmem:[%s924 + $0x1c] sm:$0xf]
        %v1772 = vld [vmem:[%s924 + $0x20] sm:$0xf]
        %v1773 = vld [vmem:[%s924 + $0x24] sm:$0xf]
        %v1774 = vld [vmem:[%s924 + $0x28] sm:$0xf]
        %v1775 = vld [vmem:[%s924 + $0x2c] sm:$0xf]
        %v1776 = vld [vmem:[%s924 + $0x30] sm:$0xf]
        %v1777 = vld [vmem:[%s924 + $0x34] sm:$0xf]
        %v1778 = vld [vmem:[%s924 + $0x38] sm:$0xf]
        %v1779 = vld [vmem:[%s924 + $0x3c] sm:$0xf]
        %v1780 = vld [vmem:[%s932] sm:$0x1]
        %v1782 = vlaneseq
        %v1783 = vshrl.u32 %v1782, 7
        %v1784 = vsub.s32 0, %v1783
        %v1785 = vrot.slane %v1780, %v1784
        %v1803 = vunpack.c.l.b16 %v1764
        %v1804 = vunpack.c.l.b16 %v1765
        %v1805 = vunpack.c.l.b16 %v1766
        %v1806 = vunpack.c.l.b16 %v1767
        %v1807 = vunpack.c.l.b16 %v1768
        %v1808 = vunpack.c.l.b16 %v1769
        %v1809 = vunpack.c.l.b16 %v1770
        %v1810 = vunpack.c.l.b16 %v1771
        %v1811 = vunpack.c.l.b16 %v1772
        %v1812 = vunpack.c.l.b16 %v1773
        %v1813 = vunpack.c.l.b16 %v1774
        %v1814 = vunpack.c.l.b16 %v1775
        %v1815 = vunpack.c.l.b16 %v1776
        %v1816 = vunpack.c.l.b16 %v1777
        %v1817 = vunpack.c.l.b16 %v1778
        %v1818 = vunpack.c.l.b16 %v1779
        %v1819 = vpack.c.b16 %v1804, %v1803
        %v1820 = vpack.c.b16 %v1806, %v1805
        %v1821 = vpack.c.b16 %v1808, %v1807
        %v1822 = vpack.c.b16 %v1810, %v1809
        %v1823 = vpack.c.b16 %v1812, %v1811
        %v1824 = vpack.c.b16 %v1814, %v1813
        %v1825 = vpack.c.b16 %v1816, %v1815
        %v1826 = vpack.c.b16 %v1818, %v1817
        %1835 = vmatprep.subr.bf16.mxu0 0
        %1836 = vmatpush1.bf16.msra.mxu0 %v1826
        %1837 = vmatprep.subr.bf16.mxu0 0
        %1838 = vmatpush1.bf16.msra.mxu0 %v1825
        %1839 = vmatprep.subr.bf16.mxu0 0
        %1840 = vmatpush1.bf16.msra.mxu0 %v1824
        %1841 = vmatprep.subr.bf16.mxu0 0
        %1842 = vmatpush1.bf16.msra.mxu0 %v1823
        %1843 = vmatprep.subr.bf16.mxu0 0
        %1844 = vmatpush1.bf16.msra.mxu0 %v1822
        %1845 = vmatprep.subr.bf16.mxu0 0
        %1846 = vmatpush1.bf16.msra.mxu0 %v1821
        %1847 = vmatprep.subr.bf16.mxu0 0
        %1848 = vmatpush1.bf16.msra.mxu0 %v1820
        %1849 = vmatprep.subr.bf16.mxu0 0
        %1850 = vmatpush1.bf16.msra.mxu0 %v1819
        %1851 = vmatprep.subr.bf16.mxu0 0
        %1852 = vmatpush2.bf16.msra.mxu0 0
        %1853 = vmatprep.subr.bf16.mxu0 0
        %1854 = vmatpush2.bf16.msra.mxu0 0
        %1855 = vmatprep.subr.bf16.mxu0 0
        %1856 = vmatpush2.bf16.msra.mxu0 0
        %1857 = vmatprep.subr.bf16.mxu0 0
        %1858 = vmatpush2.bf16.msra.mxu0 0
        %1859 = vmatprep.subr.bf16.mxu0 0
        %1860 = vmatpush2.bf16.msra.mxu0 0
        %1861 = vmatprep.subr.bf16.mxu0 0
        %1862 = vmatpush2.bf16.msra.mxu0 0
        %1863 = vmatprep.subr.bf16.mxu0 0
        %1864 = vmatpush2.bf16.msra.mxu0 0
        %1865 = vmatprep.subr.bf16.mxu0 0
        %1866 = vmatpush2.bf16.msra.mxu0 0
        %1867 = vmatprep.mubr.bf16.mxu0 0
        %1868 = vmatmul.mubr.bf16.gmra.mxu0 %v1763
        %v1869 = vpop.f32.mrf.mxu0
        %v1870 = vadd.f32 %v1785, %v1869
        %v1871 = vpop.f32.mrf.mxu0
        %v1872 = vpop.f32.mrf.mxu0
        %v1873 = vpop.f32.mrf.mxu0
        %1874 = vdwg.mxu0
        %v1875 = vadd.f32 %v1870, %v1266
        %v1876 = vld [vmem:[%s940] sm:$0x1]
        %v1877 = vld [vmem:[%s948] sm:$0x1]
        %1878 = vadd.xlane.f32.xlu0 %v1875
        %v1879 = vpop.xlane.xlu0 %1878
        %v1880 = vrcp.pop 128.0
        %v1881 = vmul.f32 %v1879, %v1880
        %v1882 = vsub.f32 %v1875, %v1881
        %v1883 = vmul.f32 %v1882, %v1882
        %1884 = vadd.xlane.f32.xlu0 %v1883
        %v1885 = vpop.xlane.xlu0 %1884
        %v1886 = vmul.f32 %v1885, %v1880
        %v1887 = vadd.f32 %v1886, 1e-12
        %v1888 = vrsqrt.pop %v1887
        %v1889 = vmul.f32 %v1882, %v1888
        %v1891 = vlaneseq
        %v1892 = vshrl.u32 %v1891, 7
        %v1893 = vsub.s32 0, %v1892
        %v1894 = vrot.slane %v1876, %v1893
        %v1896 = vmul.f32 %v1889, %v1894
        %v1898 = vlaneseq
        %v1899 = vshrl.u32 %v1898, 7
        %v1900 = vsub.s32 0, %v1899
        %v1901 = vrot.slane %v1877, %v1900
        %v1903 = vadd.f32 %v1896, %v1901
        %v1904 = vpack.c.bf16 %v1903, %v1903
        %v1905 = vld [vmem:[%s957] sm:$0xff]
        %v1906 = vld [vmem:[%s957 + $0x8] sm:$0xff]
        %v1907 = vld [vmem:[%s957 + $0x10] sm:$0xff]
        %v1908 = vld [vmem:[%s957 + $0x18] sm:$0xff]
        %v1909 = vld [vmem:[%s957 + $0x20] sm:$0xff]
        %v1910 = vld [vmem:[%s957 + $0x28] sm:$0xff]
        %v1911 = vld [vmem:[%s957 + $0x30] sm:$0xff]
        %v1912 = vld [vmem:[%s957 + $0x38] sm:$0xff]
        %v1913 = vld [vmem:[%s957 + $0x40] sm:$0xff]
        %v1914 = vld [vmem:[%s957 + $0x48] sm:$0xff]
        %v1915 = vld [vmem:[%s957 + $0x50] sm:$0xff]
        %v1916 = vld [vmem:[%s957 + $0x58] sm:$0xff]
        %v1917 = vld [vmem:[%s957 + $0x60] sm:$0xff]
        %v1918 = vld [vmem:[%s957 + $0x68] sm:$0xff]
        %v1919 = vld [vmem:[%s957 + $0x70] sm:$0xff]
        %v1920 = vld [vmem:[%s957 + $0x78] sm:$0xff]
        %v1921 = vld [vmem:[%s957 + $0x80] sm:$0xff]
        %v1922 = vld [vmem:[%s957 + $0x88] sm:$0xff]
        %v1923 = vld [vmem:[%s957 + $0x90] sm:$0xff]
        %v1924 = vld [vmem:[%s957 + $0x98] sm:$0xff]
        %v1925 = vld [vmem:[%s957 + $0xa0] sm:$0xff]
        %v1926 = vld [vmem:[%s957 + $0xa8] sm:$0xff]
        %v1927 = vld [vmem:[%s957 + $0xb0] sm:$0xff]
        %v1928 = vld [vmem:[%s957 + $0xb8] sm:$0xff]
        %v1929 = vld [vmem:[%s957 + $0xc0] sm:$0xff]
        %v1930 = vld [vmem:[%s957 + $0xc8] sm:$0xff]
        %v1931 = vld [vmem:[%s957 + $0xd0] sm:$0xff]
        %v1932 = vld [vmem:[%s957 + $0xd8] sm:$0xff]
        %v1933 = vld [vmem:[%s957 + $0xe0] sm:$0xff]
        %v1934 = vld [vmem:[%s957 + $0xe8] sm:$0xff]
        %v1935 = vld [vmem:[%s957 + $0xf0] sm:$0xff]
        %v1936 = vld [vmem:[%s957 + $0xf8] sm:$0xff]
        %v1937 = vld [vmem:[%s1125] sm:$0xf]
        %v1939 = vlaneseq
        %v1940 = vshrl.u32 %v1939, 7
        %v1941 = vsub.s32 0, %v1940
        %v1942 = vrot.slane %v1937, %v1941
        %v1943 = vlaneseq
        %v1944 = vshrl.u32 %v1943, 7
        %v1945 = vsub.s32 1, %v1944
        %v1946 = vrot.slane %v1937, %v1945
        %v1947 = vlaneseq
        %v1948 = vshrl.u32 %v1947, 7
        %v1949 = vsub.s32 2, %v1948
        %v1950 = vrot.slane %v1937, %v1949
        %v1951 = vlaneseq
        %v1952 = vshrl.u32 %v1951, 7
        %v1953 = vsub.s32 3, %v1952
        %v1954 = vrot.slane %v1937, %v1953
        %v1991 = vunpack.c.l.b16 %v1905
        %v1992 = vunpack.c.h.b16 %v1905
        %v1993 = vunpack.c.l.b16 %v1906
        %v1994 = vunpack.c.h.b16 %v1906
        %v1995 = vunpack.c.l.b16 %v1907
        %v1996 = vunpack.c.h.b16 %v1907
        %v1997 = vunpack.c.l.b16 %v1908
        %v1998 = vunpack.c.h.b16 %v1908
        %v1999 = vunpack.c.l.b16 %v1909
        %v2000 = vunpack.c.h.b16 %v1909
        %v2001 = vunpack.c.l.b16 %v1910
        %v2002 = vunpack.c.h.b16 %v1910
        %v2003 = vunpack.c.l.b16 %v1911
        %v2004 = vunpack.c.h.b16 %v1911
        %v2005 = vunpack.c.l.b16 %v1912
        %v2006 = vunpack.c.h.b16 %v1912
        %v2007 = vunpack.c.l.b16 %v1913
        %v2008 = vunpack.c.h.b16 %v1913
        %v2009 = vunpack.c.l.b16 %v1914
        %v2010 = vunpack.c.h.b16 %v1914
        %v2011 = vunpack.c.l.b16 %v1915
        %v2012 = vunpack.c.h.b16 %v1915
        %v2013 = vunpack.c.l.b16 %v1916
        %v2014 = vunpack.c.h.b16 %v1916
        %v2015 = vunpack.c.l.b16 %v1917
        %v2016 = vunpack.c.h.b16 %v1917
        %v2017 = vunpack.c.l.b16 %v1918
        %v2018 = vunpack.c.h.b16 %v1918
        %v2019 = vunpack.c.l.b16 %v1919
        %v2020 = vunpack.c.h.b16 %v1919
        %v2021 = vunpack.c.l.b16 %v1920
        %v2022 = vunpack.c.h.b16 %v1920
        %v2023 = vunpack.c.l.b16 %v1921
        %v2024 = vunpack.c.h.b16 %v1921
        %v2025 = vunpack.c.l.b16 %v1922
        %v2026 = vunpack.c.h.b16 %v1922
        %v2027 = vunpack.c.l.b16 %v1923
        %v2028 = vunpack.c.h.b16 %v1923
        %v2029 = vunpack.c.l.b16 %v1924
        %v2030 = vunpack.c.h.b16 %v1924
        %v2031 = vunpack.c.l.b16 %v1925
        %v2032 = vunpack.c.h.b16 %v1925
        %v2033 = vunpack.c.l.b16 %v1926
        %v2034 = vunpack.c.h.b16 %v1926
        %v2035 = vunpack.c.l.b16 %v1927
        %v2036 = vunpack.c.h.b16 %v1927
        %v2037 = vunpack.c.l.b16 %v1928
        %v2038 = vunpack.c.h.b16 %v1928
        %v2039 = vunpack.c.l.b16 %v1929
        %v2040 = vunpack.c.h.b16 %v1929
        %v2041 = vunpack.c.l.b16 %v1930
        %v2042 = vunpack.c.h.b16 %v1930
        %v2043 = vunpack.c.l.b16 %v1931
        %v2044 = vunpack.c.h.b16 %v1931
        %v2045 = vunpack.c.l.b16 %v1932
        %v2046 = vunpack.c.h.b16 %v1932
        %v2047 = vunpack.c.l.b16 %v1933
        %v2048 = vunpack.c.h.b16 %v1933
        %v2049 = vunpack.c.l.b16 %v1934
        %v2050 = vunpack.c.h.b16 %v1934
        %v2051 = vunpack.c.l.b16 %v1935
        %v2052 = vunpack.c.h.b16 %v1935
        %v2053 = vunpack.c.l.b16 %v1936
        %v2054 = vunpack.c.h.b16 %v1936
        %v2055 = vpack.c.b16 %v1995, %v1991
        %v2056 = vpack.c.b16 %v1996, %v1992
        %v2057 = vpack.c.b16 %v1997, %v1993
        %v2058 = vpack.c.b16 %v1998, %v1994
        %v2059 = vpack.c.b16 %v2003, %v1999
        %v2060 = vpack.c.b16 %v2004, %v2000
        %v2061 = vpack.c.b16 %v2005, %v2001
        %v2062 = vpack.c.b16 %v2006, %v2002
        %v2063 = vpack.c.b16 %v2011, %v2007
        %v2064 = vpack.c.b16 %v2012, %v2008
        %v2065 = vpack.c.b16 %v2013, %v2009
        %v2066 = vpack.c.b16 %v2014, %v2010
        %v2067 = vpack.c.b16 %v2019, %v2015
        %v2068 = vpack.c.b16 %v2020, %v2016
        %v2069 = vpack.c.b16 %v2021, %v2017
        %v2070 = vpack.c.b16 %v2022, %v2018
        %v2071 = vpack.c.b16 %v2027, %v2023
        %v2072 = vpack.c.b16 %v2028, %v2024
        %v2073 = vpack.c.b16 %v2029, %v2025
        %v2074 = vpack.c.b16 %v2030, %v2026
        %v2075 = vpack.c.b16 %v2035, %v2031
        %v2076 = vpack.c.b16 %v2036, %v2032
        %v2077 = vpack.c.b16 %v2037, %v2033
        %v2078 = vpack.c.b16 %v2038, %v2034
        %v2079 = vpack.c.b16 %v2043, %v2039
        %v2080 = vpack.c.b16 %v2044, %v2040
        %v2081 = vpack.c.b16 %v2045, %v2041
        %v2082 = vpack.c.b16 %v2046, %v2042
        %v2083 = vpack.c.b16 %v2051, %v2047
        %v2084 = vpack.c.b16 %v2052, %v2048
        %v2085 = vpack.c.b16 %v2053, %v2049
        %v2086 = vpack.c.b16 %v2054, %v2050
        %2119 = vmatprep.subr.bf16.mxu0 %v2084
        %2120 = vmatpush1.bf16.msra.mxu0 %v2083
        %2121 = vmatprep.subr.bf16.mxu0 %v2080
        %2122 = vmatpush1.bf16.msra.mxu0 %v2079
        %2123 = vmatprep.subr.bf16.mxu0 %v2076
        %2124 = vmatpush1.bf16.msra.mxu0 %v2075
        %2125 = vmatprep.subr.bf16.mxu0 %v2072
        %2126 = vmatpush1.bf16.msra.mxu0 %v2071
        %2127 = vmatprep.subr.bf16.mxu0 %v2068
        %2128 = vmatpush1.bf16.msra.mxu0 %v2067
        %2129 = vmatprep.subr.bf16.mxu0 %v2064
        %2130 = vmatpush1.bf16.msra.mxu0 %v2063
        %2131 = vmatprep.subr.bf16.mxu0 %v2060
        %2132 = vmatpush1.bf16.msra.mxu0 %v2059
        %2133 = vmatprep.subr.bf16.mxu0 %v2056
        %2134 = vmatpush1.bf16.msra.mxu0 %v2055
        %2135 = vmatprep.subr.bf16.mxu0 0
        %2136 = vmatpush2.bf16.msra.mxu0 0
        %2137 = vmatprep.subr.bf16.mxu0 0
        %2138 = vmatpush2.bf16.msra.mxu0 0
        %2139 = vmatprep.subr.bf16.mxu0 0
        %2140 = vmatpush2.bf16.msra.mxu0 0
        %2141 = vmatprep.subr.bf16.mxu0 0
        %2142 = vmatpush2.bf16.msra.mxu0 0
        %2143 = vmatprep.subr.bf16.mxu0 0
        %2144 = vmatpush2.bf16.msra.mxu0 0
        %2145 = vmatprep.subr.bf16.mxu0 0
        %2146 = vmatpush2.bf16.msra.mxu0 0
        %2147 = vmatprep.subr.bf16.mxu0 0
        %2148 = vmatpush2.bf16.msra.mxu0 0
        %2149 = vmatprep.subr.bf16.mxu0 0
        %2150 = vmatpush2.bf16.msra.mxu0 0
        %2151 = vmatprep.mubr.bf16.mxu0 0
        %2152 = vmatmul.mubr.bf16.gmra.mxu0 %v1904
        %v2153 = vpop.f32.mrf.mxu0
        %v2154 = vadd.f32 %v1942, %v2153
        %v2155 = vpop.f32.mrf.mxu0
        %v2156 = vadd.f32 %v1946, %v2155
        %v2157 = vpop.f32.mrf.mxu0
        %v2158 = vpop.f32.mrf.mxu0
        %2159 = vdwg.mxu0
        %2160 = vmatprep.subr.bf16.mxu0 %v2086
        %2161 = vmatpush1.bf16.msra.mxu0 %v2085
        %2162 = vmatprep.subr.bf16.mxu0 %v2082
        %2163 = vmatpush1.bf16.msra.mxu0 %v2081
        %2164 = vmatprep.subr.bf16.mxu0 %v2078
        %2165 = vmatpush1.bf16.msra.mxu0 %v2077
        %2166 = vmatprep.subr.bf16.mxu0 %v2074
        %2167 = vmatpush1.bf16.msra.mxu0 %v2073
        %2168 = vmatprep.subr.bf16.mxu0 %v2070
        %2169 = vmatpush1.bf16.msra.mxu0 %v2069
        %2170 = vmatprep.subr.bf16.mxu0 %v2066
        %2171 = vmatpush1.bf16.msra.mxu0 %v2065
        %2172 = vmatprep.subr.bf16.mxu0 %v2062
        %2173 = vmatpush1.bf16.msra.mxu0 %v2061
        %2174 = vmatprep.subr.bf16.mxu0 %v2058
        %2175 = vmatpush1.bf16.msra.mxu0 %v2057
        %2176 = vmatprep.subr.bf16.mxu0 0
        %2177 = vmatpush2.bf16.msra.mxu0 0
        %2178 = vmatprep.subr.bf16.mxu0 0
        %2179 = vmatpush2.bf16.msra.mxu0 0
        %2180 = vmatprep.subr.bf16.mxu0 0
        %2181 = vmatpush2.bf16.msra.mxu0 0
        %2182 = vmatprep.subr.bf16.mxu0 0
        %2183 = vmatpush2.bf16.msra.mxu0 0
        %2184 = vmatprep.subr.bf16.mxu0 0
        %2185 = vmatpush2.bf16.msra.mxu0 0
        %2186 = vmatprep.subr.bf16.mxu0 0
        %2187 = vmatpush2.bf16.msra.mxu0 0
        %2188 = vmatprep.subr.bf16.mxu0 0
        %2189 = vmatpush2.bf16.msra.mxu0 0
        %2190 = vmatprep.subr.bf16.mxu0 0
        %2191 = vmatpush2.bf16.msra.mxu0 0
        %2192 = vmatprep.mubr.bf16.mxu0 0
        %2193 = vmatmul.mubr.bf16.gmra.mxu0 %v1904
        %v2194 = vpop.f32.mrf.mxu0
        %v2195 = vadd.f32 %v1950, %v2194
        %v2196 = vpop.f32.mrf.mxu0
        %v2197 = vadd.f32 %v1954, %v2196
        %v2198 = vpop.f32.mrf.mxu0
        %v2199 = vpop.f32.mrf.mxu0
        %2200 = vdwg.mxu0
        %v2201 = vmul.f32 %v2154, %v2154
        %v2202 = vmul.f32 %v2156, %v2156
        %v2203 = vmul.f32 %v2195, %v2195
        %v2204 = vmul.f32 %v2197, %v2197
        %v2205 = vmul.f32 %v2154, %v2201
        %v2206 = vmul.f32 %v2156, %v2202
        %v2207 = vmul.f32 %v2195, %v2203
        %v2208 = vmul.f32 %v2197, %v2204
        %v2209 = vmul.f32 %v2205, 0.044715
        %v2210 = vmul.f32 %v2206, 0.044715
        %v2211 = vmul.f32 %v2207, 0.044715
        %v2212 = vmul.f32 %v2208, 0.044715
        %v2213 = vadd.f32 %v2154, %v2209
        %v2214 = vadd.f32 %v2156, %v2210
        %v2215 = vadd.f32 %v2195, %v2211
        %v2216 = vadd.f32 %v2197, %v2212
        %v2217 = vmul.f32 %v2213, 0.7978846
        %v2218 = vmul.f32 %v2214, 0.7978846
        %v2219 = vmul.f32 %v2215, 0.7978846
        %v2220 = vmul.f32 %v2216, 0.7978846
        %v2221 = vtanh.pop %v2217
        %v2222 = vtanh.pop %v2218
        %v2223 = vtanh.pop %v2219
        %v2224 = vtanh.pop %v2220
        %v2225 = vadd.f32 %v2221, 1.0
        %v2226 = vadd.f32 %v2222, 1.0
        %v2227 = vadd.f32 %v2223, 1.0
        %v2228 = vadd.f32 %v2224, 1.0
        %v2229 = vmul.f32 %v2225, 0.5
        %v2230 = vmul.f32 %v2226, 0.5
        %v2231 = vmul.f32 %v2227, 0.5
        %v2232 = vmul.f32 %v2228, 0.5
        %v2233 = vmul.f32 %v2154, %v2229
        %v2234 = vmul.f32 %v2156, %v2230
        %v2235 = vmul.f32 %v2195, %v2231
        %v2236 = vmul.f32 %v2197, %v2232
        %v2237 = vpack.c.bf16 %v2233, %v2233
        %v2238 = vpack.c.bf16 %v2234, %v2234
        %v2239 = vpack.c.bf16 %v2235, %v2235
        %v2240 = vpack.c.bf16 %v2236, %v2236
        %v2241 = vld [vmem:[%s966] sm:$0xf]
        %v2242 = vld [vmem:[%s966 + $0x4] sm:$0xf]
        %v2243 = vld [vmem:[%s966 + $0x8] sm:$0xf]
        %v2244 = vld [vmem:[%s966 + $0xc] sm:$0xf]
        %v2245 = vld [vmem:[%s966 + $0x10] sm:$0xf]
        %v2246 = vld [vmem:[%s966 + $0x14] sm:$0xf]
        %v2247 = vld [vmem:[%s966 + $0x18] sm:$0xf]
        %v2248 = vld [vmem:[%s966 + $0x1c] sm:$0xf]
        %v2249 = vld [vmem:[%s966 + $0x20] sm:$0xf]
        %v2250 = vld [vmem:[%s966 + $0x24] sm:$0xf]
        %v2251 = vld [vmem:[%s966 + $0x28] sm:$0xf]
        %v2252 = vld [vmem:[%s966 + $0x2c] sm:$0xf]
        %v2253 = vld [vmem:[%s966 + $0x30] sm:$0xf]
        %v2254 = vld [vmem:[%s966 + $0x34] sm:$0xf]
        %v2255 = vld [vmem:[%s966 + $0x38] sm:$0xf]
        %v2256 = vld [vmem:[%s966 + $0x3c] sm:$0xf]
        %v2257 = vld [vmem:[%s966 + $0x40] sm:$0xf]
        %v2258 = vld [vmem:[%s966 + $0x44] sm:$0xf]
        %v2259 = vld [vmem:[%s966 + $0x48] sm:$0xf]
        %v2260 = vld [vmem:[%s966 + $0x4c] sm:$0xf]
        %v2261 = vld [vmem:[%s966 + $0x50] sm:$0xf]
        %v2262 = vld [vmem:[%s966 + $0x54] sm:$0xf]
        %v2263 = vld [vmem:[%s966 + $0x58] sm:$0xf]
        %v2264 = vld [vmem:[%s966 + $0x5c] sm:$0xf]
        %v2265 = vld [vmem:[%s966 + $0x60] sm:$0xf]
        %v2266 = vld [vmem:[%s966 + $0x64] sm:$0xf]
        %v2267 = vld [vmem:[%s966 + $0x68] sm:$0xf]
        %v2268 = vld [vmem:[%s966 + $0x6c] sm:$0xf]
        %v2269 = vld [vmem:[%s966 + $0x70] sm:$0xf]
        %v2270 = vld [vmem:[%s966 + $0x74] sm:$0xf]
        %v2271 = vld [vmem:[%s966 + $0x78] sm:$0xf]
        %v2272 = vld [vmem:[%s966 + $0x7c] sm:$0xf]
        %v2273 = vld [vmem:[%s966 + $0x80] sm:$0xf]
        %v2274 = vld [vmem:[%s966 + $0x84] sm:$0xf]
        %v2275 = vld [vmem:[%s966 + $0x88] sm:$0xf]
        %v2276 = vld [vmem:[%s966 + $0x8c] sm:$0xf]
        %v2277 = vld [vmem:[%s966 + $0x90] sm:$0xf]
        %v2278 = vld [vmem:[%s966 + $0x94] sm:$0xf]
        %v2279 = vld [vmem:[%s966 + $0x98] sm:$0xf]
        %v2280 = vld [vmem:[%s966 + $0x9c] sm:$0xf]
        %v2281 = vld [vmem:[%s966 + $0xa0] sm:$0xf]
        %v2282 = vld [vmem:[%s966 + $0xa4] sm:$0xf]
        %v2283 = vld [vmem:[%s966 + $0xa8] sm:$0xf]
        %v2284 = vld [vmem:[%s966 + $0xac] sm:$0xf]
        %v2285 = vld [vmem:[%s966 + $0xb0] sm:$0xf]
        %v2286 = vld [vmem:[%s966 + $0xb4] sm:$0xf]
        %v2287 = vld [vmem:[%s966 + $0xb8] sm:$0xf]
        %v2288 = vld [vmem:[%s966 + $0xbc] sm:$0xf]
        %v2289 = vld [vmem:[%s966 + $0xc0] sm:$0xf]
        %v2290 = vld [vmem:[%s966 + $0xc4] sm:$0xf]
        %v2291 = vld [vmem:[%s966 + $0xc8] sm:$0xf]
        %v2292 = vld [vmem:[%s966 + $0xcc] sm:$0xf]
        %v2293 = vld [vmem:[%s966 + $0xd0] sm:$0xf]
        %v2294 = vld [vmem:[%s966 + $0xd4] sm:$0xf]
        %v2295 = vld [vmem:[%s966 + $0xd8] sm:$0xf]
        %v2296 = vld [vmem:[%s966 + $0xdc] sm:$0xf]
        %v2297 = vld [vmem:[%s966 + $0xe0] sm:$0xf]
        %v2298 = vld [vmem:[%s966 + $0xe4] sm:$0xf]
        %v2299 = vld [vmem:[%s966 + $0xe8] sm:$0xf]
        %v2300 = vld [vmem:[%s966 + $0xec] sm:$0xf]
        %v2301 = vld [vmem:[%s966 + $0xf0] sm:$0xf]
        %v2302 = vld [vmem:[%s966 + $0xf4] sm:$0xf]
        %v2303 = vld [vmem:[%s966 + $0xf8] sm:$0xf]
        %v2304 = vld [vmem:[%s966 + $0xfc] sm:$0xf]
        %v2305 = vld [vmem:[%s974] sm:$0x1]
        %v2307 = vlaneseq
        %v2308 = vshrl.u32 %v2307, 7
        %v2309 = vsub.s32 0, %v2308
        %v2310 = vrot.slane %v2305, %v2309
        %v2376 = vunpack.c.l.b16 %v2241
        %v2377 = vunpack.c.l.b16 %v2242
        %v2378 = vunpack.c.l.b16 %v2243
        %v2379 = vunpack.c.l.b16 %v2244
        %v2380 = vunpack.c.l.b16 %v2245
        %v2381 = vunpack.c.l.b16 %v2246
        %v2382 = vunpack.c.l.b16 %v2247
        %v2383 = vunpack.c.l.b16 %v2248
        %v2384 = vunpack.c.l.b16 %v2249
        %v2385 = vunpack.c.l.b16 %v2250
        %v2386 = vunpack.c.l.b16 %v2251
        %v2387 = vunpack.c.l.b16 %v2252
        %v2388 = vunpack.c.l.b16 %v2253
        %v2389 = vunpack.c.l.b16 %v2254
        %v2390 = vunpack.c.l.b16 %v2255
        %v2391 = vunpack.c.l.b16 %v2256
        %v2392 = vunpack.c.l.b16 %v2257
        %v2393 = vunpack.c.l.b16 %v2258
        %v2394 = vunpack.c.l.b16 %v2259
        %v2395 = vunpack.c.l.b16 %v2260
        %v2396 = vunpack.c.l.b16 %v2261
        %v2397 = vunpack.c.l.b16 %v2262
        %v2398 = vunpack.c.l.b16 %v2263
        %v2399 = vunpack.c.l.b16 %v2264
        %v2400 = vunpack.c.l.b16 %v2265
        %v2401 = vunpack.c.l.b16 %v2266
        %v2402 = vunpack.c.l.b16 %v2267
        %v2403 = vunpack.c.l.b16 %v2268
        %v2404 = vunpack.c.l.b16 %v2269
        %v2405 = vunpack.c.l.b16 %v2270
        %v2406 = vunpack.c.l.b16 %v2271
        %v2407 = vunpack.c.l.b16 %v2272
        %v2408 = vunpack.c.l.b16 %v2273
        %v2409 = vunpack.c.l.b16 %v2274
        %v2410 = vunpack.c.l.b16 %v2275
        %v2411 = vunpack.c.l.b16 %v2276
        %v2412 = vunpack.c.l.b16 %v2277
        %v2413 = vunpack.c.l.b16 %v2278
        %v2414 = vunpack.c.l.b16 %v2279
        %v2415 = vunpack.c.l.b16 %v2280
        %v2416 = vunpack.c.l.b16 %v2281
        %v2417 = vunpack.c.l.b16 %v2282
        %v2418 = vunpack.c.l.b16 %v2283
        %v2419 = vunpack.c.l.b16 %v2284
        %v2420 = vunpack.c.l.b16 %v2285
        %v2421 = vunpack.c.l.b16 %v2286
        %v2422 = vunpack.c.l.b16 %v2287
        %v2423 = vunpack.c.l.b16 %v2288
        %v2424 = vunpack.c.l.b16 %v2289
        %v2425 = vunpack.c.l.b16 %v2290
        %v2426 = vunpack.c.l.b16 %v2291
        %v2427 = vunpack.c.l.b16 %v2292
        %v2428 = vunpack.c.l.b16 %v2293
        %v2429 = vunpack.c.l.b16 %v2294
        %v2430 = vunpack.c.l.b16 %v2295
        %v2431 = vunpack.c.l.b16 %v2296
        %v2432 = vunpack.c.l.b16 %v2297
        %v2433 = vunpack.c.l.b16 %v2298
        %v2434 = vunpack.c.l.b16 %v2299
        %v2435 = vunpack.c.l.b16 %v2300
        %v2436 = vunpack.c.l.b16 %v2301
        %v2437 = vunpack.c.l.b16 %v2302
        %v2438 = vunpack.c.l.b16 %v2303
        %v2439 = vunpack.c.l.b16 %v2304
        %v2440 = vpack.c.b16 %v2377, %v2376
        %v2441 = vpack.c.b16 %v2379, %v2378
        %v2442 = vpack.c.b16 %v2381, %v2380
        %v2443 = vpack.c.b16 %v2383, %v2382
        %v2444 = vpack.c.b16 %v2385, %v2384
        %v2445 = vpack.c.b16 %v2387, %v2386
        %v2446 = vpack.c.b16 %v2389, %v2388
        %v2447 = vpack.c.b16 %v2391, %v2390
        %v2448 = vpack.c.b16 %v2393, %v2392
        %v2449 = vpack.c.b16 %v2395, %v2394
        %v2450 = vpack.c.b16 %v2397, %v2396
        %v2451 = vpack.c.b16 %v2399, %v2398
        %v2452 = vpack.c.b16 %v2401, %v2400
        %v2453 = vpack.c.b16 %v2403, %v2402
        %v2454 = vpack.c.b16 %v2405, %v2404
        %v2455 = vpack.c.b16 %v2407, %v2406
        %v2456 = vpack.c.b16 %v2409, %v2408
        %v2457 = vpack.c.b16 %v2411, %v2410
        %v2458 = vpack.c.b16 %v2413, %v2412
        %v2459 = vpack.c.b16 %v2415, %v2414
        %v2460 = vpack.c.b16 %v2417, %v2416
        %v2461 = vpack.c.b16 %v2419, %v2418
        %v2462 = vpack.c.b16 %v2421, %v2420
        %v2463 = vpack.c.b16 %v2423, %v2422
        %v2464 = vpack.c.b16 %v2425, %v2424
        %v2465 = vpack.c.b16 %v2427, %v2426
        %v2466 = vpack.c.b16 %v2429, %v2428
        %v2467 = vpack.c.b16 %v2431, %v2430
        %v2468 = vpack.c.b16 %v2433, %v2432
        %v2469 = vpack.c.b16 %v2435, %v2434
        %v2470 = vpack.c.b16 %v2437, %v2436
        %v2471 = vpack.c.b16 %v2439, %v2438
        %2504 = vmatprep.subr.bf16.mxu0 0
        %2505 = vmatpush1.bf16.msra.mxu0 %v2447
        %2506 = vmatprep.subr.bf16.mxu0 0
        %2507 = vmatpush1.bf16.msra.mxu0 %v2446
        %2508 = vmatprep.subr.bf16.mxu0 0
        %2509 = vmatpush1.bf16.msra.mxu0 %v2445
        %2510 = vmatprep.subr.bf16.mxu0 0
        %2511 = vmatpush1.bf16.msra.mxu0 %v2444
        %2512 = vmatprep.subr.bf16.mxu0 0
        %2513 = vmatpush1.bf16.msra.mxu0 %v2443
        %2514 = vmatprep.subr.bf16.mxu0 0
        %2515 = vmatpush1.bf16.msra.mxu0 %v2442
        %2516 = vmatprep.subr.bf16.mxu0 0
        %2517 = vmatpush1.bf16.msra.mxu0 %v2441
        %2518 = vmatprep.subr.bf16.mxu0 0
        %2519 = vmatpush1.bf16.msra.mxu0 %v2440
        %2520 = vmatprep.subr.bf16.mxu0 0
        %2521 = vmatpush2.bf16.msra.mxu0 %v2455
        %2522 = vmatprep.subr.bf16.mxu0 0
        %2523 = vmatpush2.bf16.msra.mxu0 %v2454
        %2524 = vmatprep.subr.bf16.mxu0 0
        %2525 = vmatpush2.bf16.msra.mxu0 %v2453
        %2526 = vmatprep.subr.bf16.mxu0 0
        %2527 = vmatpush2.bf16.msra.mxu0 %v2452
        %2528 = vmatprep.subr.bf16.mxu0 0
        %2529 = vmatpush2.bf16.msra.mxu0 %v2451
        %2530 = vmatprep.subr.bf16.mxu0 0
        %2531 = vmatpush2.bf16.msra.mxu0 %v2450
        %2532 = vmatprep.subr.bf16.mxu0 0
        %2533 = vmatpush2.bf16.msra.mxu0 %v2449
        %2534 = vmatprep.subr.bf16.mxu0 0
        %2535 = vmatpush2.bf16.msra.mxu0 %v2448
        %2536 = vmatprep.mubr.bf16.mxu0 %v2238
        %2537 = vmatmul.mubr.bf16.gmra.mxu0 %v2237
        %v2538 = vpop.f32.mrf.mxu0
        %v2539 = vadd.f32 %v2310, %v2538
        %v2540 = vpop.f32.mrf.mxu0
        %v2541 = vpop.f32.mrf.mxu0
        %v2542 = vpop.f32.mrf.mxu0
        %2543 = vdwg.mxu0
        %2544 = vmatprep.subr.bf16.mxu0 0
        %2545 = vmatpush1.bf16.msra.mxu0 %v2463
        %2546 = vmatprep.subr.bf16.mxu0 0
        %2547 = vmatpush1.bf16.msra.mxu0 %v2462
        %2548 = vmatprep.subr.bf16.mxu0 0
        %2549 = vmatpush1.bf16.msra.mxu0 %v2461
        %2550 = vmatprep.subr.bf16.mxu0 0
        %2551 = vmatpush1.bf16.msra.mxu0 %v2460
        %2552 = vmatprep.subr.bf16.mxu0 0
        %2553 = vmatpush1.bf16.msra.mxu0 %v2459
        %2554 = vmatprep.subr.bf16.mxu0 0
        %2555 = vmatpush1.bf16.msra.mxu0 %v2458
        %2556 = vmatprep.subr.bf16.mxu0 0
        %2557 = vmatpush1.bf16.msra.mxu0 %v2457
        %2558 = vmatprep.subr.bf16.mxu0 0
        %2559 = vmatpush1.bf16.msra.mxu0 %v2456
        %2560 = vmatprep.subr.bf16.mxu0 0
        %2561 = vmatpush2.bf16.msra.mxu0 %v2471
        %2562 = vmatprep.subr.bf16.mxu0 0
        %2563 = vmatpush2.bf16.msra.mxu0 %v2470
        %2564 = vmatprep.subr.bf16.mxu0 0
        %2565 = vmatpush2.bf16.msra.mxu0 %v2469
        %2566 = vmatprep.subr.bf16.mxu0 0
        %2567 = vmatpush2.bf16.msra.mxu0 %v2468
        %2568 = vmatprep.subr.bf16.mxu0 0
        %2569 = vmatpush2.bf16.msra.mxu0 %v2467
        %2570 = vmatprep.subr.bf16.mxu0 0
        %2571 = vmatpush2.bf16.msra.mxu0 %v2466
        %2572 = vmatprep.subr.bf16.mxu0 0
        %2573 = vmatpush2.bf16.msra.mxu0 %v2465
        %2574 = vmatprep.subr.bf16.mxu0 0
        %2575 = vmatpush2.bf16.msra.mxu0 %v2464
        %2576 = vmatprep.mubr.bf16.mxu0 %v2240
        %2577 = vmatmul.mubr.bf16.gmra.mxu0 %v2239
        %v2578 = vpop.f32.mrf.mxu0
        %v2579 = vadd.f32 %v2539, %v2578
        %v2580 = vpop.f32.mrf.mxu0
        %v2581 = vpop.f32.mrf.mxu0
        %v2582 = vpop.f32.mrf.mxu0
        %2583 = vdwg.mxu0
        %v2584 = vadd.f32 %v2579, %v1903
        %v2585 = vld [vmem:[%s982] sm:$0x1]
        %v2586 = vld [vmem:[%s990] sm:$0x1]
        %2587 = vadd.xlane.f32.xlu0 %v2584
        %v2588 = vpop.xlane.xlu0 %2587
        %v2589 = vmul.f32 %v2588, %v1880
        %v2590 = vsub.f32 %v2584, %v2589
        %v2591 = vmul.f32 %v2590, %v2590
        %2592 = vadd.xlane.f32.xlu0 %v2591
        %v2593 = vpop.xlane.xlu0 %2592
        %v2594 = vmul.f32 %v2593, %v1880
        %v2595 = vadd.f32 %v2594, 1e-12
        %v2596 = vrsqrt.pop %v2595
        %v2597 = vmul.f32 %v2590, %v2596
        %v2599 = vlaneseq
        %v2600 = vshrl.u32 %v2599, 7
        %v2601 = vsub.s32 0, %v2600
        %v2602 = vrot.slane %v2585, %v2601
        %v2604 = vmul.f32 %v2597, %v2602
        %v2606 = vlaneseq
        %v2607 = vshrl.u32 %v2606, 7
        %v2608 = vsub.s32 0, %v2607
        %v2609 = vrot.slane %v2586, %v2608
        %v2611 = vadd.f32 %v2604, %v2609
        %2612 = vst [vmem:[#allocation2] sm:$0xff] %v2611
        %p2613 = scmp.eq.s32.totalorder %s62, 1
        // Predicated region
        $region161: #{bert_forward.1} parent=99 // pred_check
          %p2614 = pneg %p2613
        $region162: #{bert_forward.1} parent=99 // pred_check_branch
          %2616 = sbr.rel (%p2614) target = $region164
        $region163: #{bert_forward.1} parent=99 // pred_region
          %2617 = vst [vmem:[%s1104] sm:$0xff] %v2611
          %v2618 = vpack.c.bf16 %v2611, %v2611
          %v2619 = vld [vmem:[#allocation24] sm:$0xf]
          %v2620 = vld [vmem:[#allocation24 + $0x4] sm:$0xf]
          %v2621 = vld [vmem:[#allocation24 + $0x8] sm:$0xf]
          %v2622 = vld [vmem:[#allocation24 + $0xc] sm:$0xf]
          %v2623 = vld [vmem:[#allocation24 + $0x10] sm:$0xf]
          %v2624 = vld [vmem:[#allocation24 + $0x14] sm:$0xf]
          %v2625 = vld [vmem:[#allocation24 + $0x18] sm:$0xf]
          %v2626 = vld [vmem:[#allocation24 + $0x1c] sm:$0xf]
          %v2627 = vld [vmem:[#allocation24 + $0x20] sm:$0xf]
          %v2628 = vld [vmem:[#allocation24 + $0x24] sm:$0xf]
          %v2629 = vld [vmem:[#allocation24 + $0x28] sm:$0xf]
          %v2630 = vld [vmem:[#allocation24 + $0x2c] sm:$0xf]
          %v2631 = vld [vmem:[#allocation24 + $0x30] sm:$0xf]
          %v2632 = vld [vmem:[#allocation24 + $0x34] sm:$0xf]
          %v2633 = vld [vmem:[#allocation24 + $0x38] sm:$0xf]
          %v2634 = vld [vmem:[#allocation24 + $0x3c] sm:$0xf]
          %v2635 = vld [vmem:[%s19] sm:$0x1]
          %v2652 = vunpack.c.l.b16 %v2619
          %v2653 = vunpack.c.l.b16 %v2620
          %v2654 = vunpack.c.l.b16 %v2621
          %v2655 = vunpack.c.l.b16 %v2622
          %v2656 = vunpack.c.l.b16 %v2623
          %v2657 = vunpack.c.l.b16 %v2624
          %v2658 = vunpack.c.l.b16 %v2625
          %v2659 = vunpack.c.l.b16 %v2626
          %v2660 = vunpack.c.l.b16 %v2627
          %v2661 = vunpack.c.l.b16 %v2628
          %v2662 = vunpack.c.l.b16 %v2629
          %v2663 = vunpack.c.l.b16 %v2630
          %v2664 = vunpack.c.l.b16 %v2631
          %v2665 = vunpack.c.l.b16 %v2632
          %v2666 = vunpack.c.l.b16 %v2633
          %v2667 = vunpack.c.l.b16 %v2634
          %v2668 = vpack.c.b16 %v2653, %v2652
          %v2669 = vpack.c.b16 %v2655, %v2654
          %v2670 = vpack.c.b16 %v2657, %v2656
          %v2671 = vpack.c.b16 %v2659, %v2658
          %v2672 = vpack.c.b16 %v2661, %v2660
          %v2673 = vpack.c.b16 %v2663, %v2662
          %v2674 = vpack.c.b16 %v2665, %v2664
          %v2675 = vpack.c.b16 %v2667, %v2666
          %2684 = vmatprep.subr.bf16.mxu0 0
          %2685 = vmatpush1.bf16.msra.mxu0 %v2675
          %2686 = vmatprep.subr.bf16.mxu0 0
          %2687 = vmatpush1.bf16.msra.mxu0 %v2674
          %2688 = vmatprep.subr.bf16.mxu0 0
          %2689 = vmatpush1.bf16.msra.mxu0 %v2673
          %2690 = vmatprep.subr.bf16.mxu0 0
          %2691 = vmatpush1.bf16.msra.mxu0 %v2672
          %2692 = vmatprep.subr.bf16.mxu0 0
          %2693 = vmatpush1.bf16.msra.mxu0 %v2671
          %2694 = vmatprep.subr.bf16.mxu0 0
          %2695 = vmatpush1.bf16.msra.mxu0 %v2670
          %2696 = vmatprep.subr.bf16.mxu0 0
          %2697 = vmatpush1.bf16.msra.mxu0 %v2669
          %2698 = vmatprep.subr.bf16.mxu0 0
          %2699 = vmatpush1.bf16.msra.mxu0 %v2668
          %2700 = vmatprep.subr.bf16.mxu0 0
          %2701 = vmatpush2.bf16.msra.mxu0 0
          %2702 = vmatprep.subr.bf16.mxu0 0
          %2703 = vmatpush2.bf16.msra.mxu0 0
          %2704 = vmatprep.subr.bf16.mxu0 0
          %2705 = vmatpush2.bf16.msra.mxu0 0
          %2706 = vmatprep.subr.bf16.mxu0 0
          %2707 = vmatpush2.bf16.msra.mxu0 0
          %2708 = vmatprep.subr.bf16.mxu0 0
          %2709 = vmatpush2.bf16.msra.mxu0 0
          %2710 = vmatprep.subr.bf16.mxu0 0
          %2711 = vmatpush2.bf16.msra.mxu0 0
          %2712 = vmatprep.subr.bf16.mxu0 0
          %2713 = vmatpush2.bf16.msra.mxu0 0
          %2714 = vmatprep.subr.bf16.mxu0 0
          %2715 = vmatpush2.bf16.msra.mxu0 0
          %2716 = vmatprep.mubr.bf16.mxu0 0
          %2717 = vmatmul.mubr.bf16.gmra.mxu0 %v2618
          %v2718 = vpop.f32.mrf.mxu0
          %v2719 = vadd.f32 %v2635, %v2718
          %v2720 = vpop.f32.mrf.mxu0
          %v2721 = vpop.f32.mrf.mxu0
          %v2722 = vpop.f32.mrf.mxu0
          %2723 = vdwg.mxu0
          %v2724 = vtanh.pop %v2719
          %2725 = vst [vmem:[%s1110] sm:$0x1] %v2724
        $region164: #{bert_forward.1} parent=99 // pred_fallthru
          _
        %s2726 = sand.u32 %s567, 1
        %s2727 = scalar_lea.sflag [#allocation5], %s2726
        %s2728 = sand.u32 %s567, 1
        %s2729 = smul.addr %s2728, 8
        %s2730 = scalar_lea.vmem [#allocation26], %s2729
        %s2731 = sand.u32 %s593, 1
        %s2732 = scalar_lea.sflag [#allocation28], %s2731
        %s2733 = sand.u32 %s593, 1
        %s2734 = scalar_lea.vmem [#allocation27], %s2733
        // Predicated region
        $region165: #{bert_forward.1} parent=99 // pred_check
          %p2735 = pneg %p577
        $region166: #{bert_forward.1} parent=99 // pred_check_branch
          %2737 = sbr.rel (%p2735) target = $region168
        $region167: #{bert_forward.1} parent=99 // pred_region
          %s2739 = ssub.s32 128, 128
          %2740 = vsyncadd %s2727, %s2739
          %s2741 = smul.addr %s61, 128
          %s2742 = scalar_lea.hbm %s20, %s2741
          %s2744 = sshll.u32 %s2730, 4
          %s2745 = int_to_ptr.vmem [resolvable:$true] %s2744
          %2747 = dma.vmem_to_hbm [thread:$0]  %s2745, 128, %s2742, %s2727
        $region168: #{bert_forward.1} parent=99 // pred_fallthru
          _
        // Predicated region
        $region169: #{bert_forward.1} parent=99 // pred_check
          %p2748 = pneg %p603
        $region170: #{bert_forward.1} parent=99 // pred_check_branch
          %2750 = sbr.rel (%p2748) target = $region172
        $region171: #{bert_forward.1} parent=99 // pred_region
          %s2752 = ssub.s32 16, 16
          %2753 = vsyncadd %s2732, %s2752
          %s2754 = smul.addr %s61, 16
          %s2755 = scalar_lea.hbm %s21, %s2754
          %s2757 = sshll.u32 %s2734, 4
          %s2758 = int_to_ptr.vmem [resolvable:$true] %s2757
          %2760 = dma.vmem_to_hbm [thread:$0]  %s2758, 16, %s2755, %s2732
        $region172: #{bert_forward.1} parent=99 // pred_fallthru
          _
      $region100: #{bert_forward.1} parent=5 // pred_fallthru
        _
      %p2761 = scmp.le.s32.totalorder 2, %s52
      // Predicated region
      $region173: #{bert_forward.1} parent=5 // pred_check
        %p2762 = pneg %p2761
      $region174: #{bert_forward.1} parent=5 // pred_check_branch
        %2764 = sbr.rel (%p2762) target = $region176
      $region175: #{bert_forward.1} parent=5 // pred_region
        %s2765 = ssub.s32 %s52, 2
        // Predicated region
        $region177: #{bert_forward.1} parent=175 // pred_check
          %p2766 = pneg %p583
        $region178: #{bert_forward.1} parent=175 // pred_check_branch
          %2768 = sbr.rel (%p2766) target = $region180
        $region179: #{bert_forward.1} parent=175 // pred_region
          %s2769 = sand.u32 %s568, 1
          %s2770 = scalar_lea.sflag [#allocation5], %s2769
          %s2771 = sand.u32 %s568, 1
          %s2772 = smul.addr %s2771, 8
          %s2773 = scalar_lea.vmem [#allocation26], %s2772
          %2774 = dma.done %s2770, 128
        $region180: #{bert_forward.1} parent=175 // pred_fallthru
          _
        // Predicated region
        $region181: #{bert_forward.1} parent=175 // pred_check
          %p2775 = pneg %p609
        $region182: #{bert_forward.1} parent=175 // pred_check_branch
          %2777 = sbr.rel (%p2775) target = $region184
        $region183: #{bert_forward.1} parent=175 // pred_region
          %s2778 = sand.u32 %s594, 1
          %s2779 = scalar_lea.sflag [#allocation28], %s2778
          %s2780 = sand.u32 %s594, 1
          %s2781 = scalar_lea.vmem [#allocation27], %s2780
          %2782 = dma.done %s2779, 16
        $region184: #{bert_forward.1} parent=175 // pred_fallthru
          _
      $region176: #{bert_forward.1} parent=5 // pred_fallthru
        _
    $region6: #{bert_forward.1} parent=1 // loop_footer
      %s56 = sadd.s32 1, %s52
    $region7: #{bert_forward.1} parent=1 // loop_footer_branch
      %51 = sbr.rel target = $region3
    $region8: #{bert_forward.1} parent=1 // loop_exit
      _
    %2783 = vsyncpa [#allocation4], 1
    %s2784 = scalar_lea.sflag [#allocation4], 1
    %2785 = vsyncpa %s2784, 1
    %2786 = vsyncpa [#allocation7], 1
    %2787 = vsyncpa [#allocation10], 1
    %s2788 = scalar_lea.sflag [#allocation10], 1
    %2789 = vsyncpa %s2788, 1
    %2790 = vsyncpa [#allocation13], 1
    %s2791 = scalar_lea.sflag [#allocation13], 1
    %2792 = vsyncpa %s2791, 1
    %2793 = vsyncpa [#allocation16], 1
    %s2794 = scalar_lea.sflag [#allocation16], 1
    %2795 = vsyncpa %s2794, 1
    %2796 = vsyncpa [#allocation19], 1
    %s2797 = scalar_lea.sflag [#allocation19], 1
    %2798 = vsyncpa %s2797, 1
    %2799 = vsyncpa [#allocation22], 1
    %s2800 = scalar_lea.sflag [#allocation22], 1
    %2801 = vsyncpa %s2800, 1
    %2802 = vsyncpa [#allocation25], 1
    %2803 = vsyncpa [#allocation5], 1
    %s2804 = scalar_lea.sflag [#allocation5], 1
    %2805 = vsyncpa %s2804, 1
    %2806 = vsyncpa [#allocation28], 1
    %s2807 = scalar_lea.sflag [#allocation28], 1
    %2808 = vsyncpa %s2807, 1

</llo_original>
